<compile_context>
chip_gen: v7x
topology: tpu7x:2x2x1
jax: 0.10.0
libtpu: 0.0.40
codegen_flags: <defaults>
</compile_context>

<pallas_src>
import functools

import jax
import jax.numpy as jnp
from jax.experimental import pallas as pl
from jax.experimental.pallas import tpu as pltpu

NUM_CLASSES = 4
FEATURE_DIM = 768
HIDDEN = 512
EMBED = 768
NCAT = HIDDEN + FEATURE_DIM        # fused [w1 | wp] output width = 1280
LOGITS_PAD = 128                   # lane-dense logits slab; sliced to 4 in wrapper

# Conservative x-stream VMEM budget so the default scoped VMEM is enough on
# every generation (v5e 16 MiB, v6e/v7x 32 MiB): double-buffered x tiles stay
# <= ~8 MiB; bf16 weights are single-buffered (~2 MiB).
_X_VMEM_BUDGET = 8 * 1024 * 1024


def _head_kernel(x_ref, wcat_ref, bcat_ref, w2_ref, b2_ref,
                 logits_ref, feat_ref, acc_ref, *, inv_hw, hw, ragged):
    """Grid = (batch blocks [parallel], spatial tiles [arbitrary/reduction]).

    x_ref     : (Bb, TILE, 768)  bf16/f32 spatial tile (streamed, pipelined)
    wcat_ref  : (768, 1280)      bf16  [w1 | wp] fused, single-buffered
    bcat_ref  : (1, 1280)        f32   [b1 | bp]
    w2_ref    : (512, 128)       bf16  w2 zero-padded to 128 lanes
    b2_ref    : (1, 128)         f32
    logits_ref: (Bb, 128)        f32 (padded)    feat_ref: (Bb, 768) f32
    acc_ref   : (Bb, SLAB, 768)  f32 running spatial sum (scratch, persists)
    """
    k = pl.program_id(1)

    @pl.when(k == 0)
    def _init():
        acc_ref[...] = jnp.zeros_like(acc_ref)

    xt = x_ref[...].astype(jnp.float32)
    bb, tile, csz = xt.shape
    if ragged:
        # Last spatial tile runs past hw; mask the out-of-bounds rows to zero.
        rows = jax.lax.broadcasted_iota(jnp.int32, (1, tile, 1), 1) + k * tile
        xt = jnp.where(rows < hw, xt, 0.0)

    slab = acc_ref.shape[1]
    if slab == 1:
        acc_ref[...] += jnp.sum(xt, axis=1, keepdims=True)
    else:
        # Keep the accumulator SLAB(=8) sublanes tall: the streaming phase is
        # pure VPU vadds of 8-sublane slabs (hidden under the x DMA); the one
        # cross-sublane (XLU) reduce happens only at finalize.
        acc_ref[...] += jnp.sum(xt.reshape(bb, tile // slab, slab, csz), axis=1)

    @pl.when(k == pl.num_programs(1) - 1)
    def _finalize():
        pooled = jnp.sum(acc_ref[...], axis=1) * inv_hw      # AdaptiveAvgPool2d(1)
        pooled_bf = pooled.astype(jnp.bfloat16)
        # Fused Linear(768,512) || image_projection Linear(768,768):
        # one lane-dense bf16 MXU pass; the split at column 512 is lane-tile free.
        hf = jnp.dot(pooled_bf, wcat_ref[...],
                     preferred_element_type=jnp.float32) + bcat_ref[...]
        h = jnp.maximum(hf[:, :HIDDEN], 0.0)                  # ReLU
        feat_ref[...] = hf[:, HIDDEN:]                        # (Bb, 768)
        # Dropout(p=0.5) is identity in eval mode.
        # TODO(synk): training-mode dropout (PRNG mask) not implemented.
        logits_ref[...] = jnp.dot(h.astype(jnp.bfloat16), w2_ref[...],
                                  preferred_element_type=jnp.float32) + b2_ref[...]


def pack_head_params(params):
    """Pack the head weights ONCE at parameter-init time (not per forward):
    fuse [w1 | wp], pad the 4-wide logits head to 128 lanes, cast matmul
    weights to bf16 (native single-pass MXU dtype; f32 accumulation)."""
    w_cat = jnp.concatenate([params["w1"], params["wp"]], axis=1).astype(jnp.bfloat16)
    b_cat = jnp.concatenate([params["b1"], params["bp"]], axis=1).astype(jnp.float32)
    w2p = jnp.pad(params["w2"],
                  ((0, 0), (0, LOGITS_PAD - NUM_CLASSES))).astype(jnp.bfloat16)
    b2p = jnp.pad(params["b2"],
                  ((0, 0), (0, LOGITS_PAD - NUM_CLASSES))).astype(jnp.float32)
    return {"w_cat": w_cat, "b_cat": b_cat, "w2p": w2p, "b2p": b2p}


def _choose_tiling(b_blk, hw, esize, tile_hw):
    """Prefer one single block (no per-step overhead, no padding/masking);
    otherwise a large (<=1024) multiple-of-8 tile sized to the VMEM budget."""
    if tile_hw is not None:
        tile = hw if tile_hw >= hw else tile_hw
    elif b_blk * hw * EMBED * esize <= _X_VMEM_BUDGET:
        tile = hw                                        # single-block fast path
    else:
        per_row = 2 * b_blk * EMBED * esize              # double-buffered bytes/row
        tile = max(8, min(1024, (_X_VMEM_BUDGET // per_row) // 8 * 8))
    n_k = pl.cdiv(hw, tile)
    ragged = (hw % tile) != 0
    return tile, n_k, ragged


def swin_unet_classifier_head(bottleneck_nhwc, packed, *, tile_hw=None):
    """bottleneck_nhwc: (B, h, w, 768) encoder output (NHWC, bf16 or f32).
    packed: output of pack_head_params().  Returns (logits, image_features)."""
    B, h, w, C = bottleneck_nhwc.shape
    assert C == EMBED
    hw = h * w
    # Free reshape (contiguous); NO dtype cast / pad here -- the kernel streams
    # the encoder's native dtype and accumulates in f32.
    x = bottleneck_nhwc.reshape(B, hw, C)
    esize = x.dtype.itemsize

    # Megacore (v7x): split the batch over a leading "parallel" grid axis when
    # each per-core block keeps >= 8 sublanes.
    n_b = 2 if (B >= 16 and B % 16 == 0) else 1
    b_blk = B // n_b

    tile, n_k, ragged = _choose_tiling(b_blk, hw, esize, tile_hw)
    if tile != hw:
        assert tile % 8 == 0, "spatial tile must be a multiple of 8 sublanes"
    slab = 8 if tile % 8 == 0 else 1

    kernel = functools.partial(_head_kernel, inv_hw=1.0 / float(hw),
                               hw=hw, ragged=ragged)

    cost = pl.CostEstimate(
        flops=int(B * hw * EMBED                       # pooling adds
                  + 2 * B * EMBED * NCAT               # fused [w1|wp] matmul
                  + 2 * B * HIDDEN * LOGITS_PAD),      # padded logits matmul
        transcendentals=0,
        bytes_accessed=int(B * hw * EMBED * esize
                           + (EMBED * NCAT + HIDDEN * LOGITS_PAD) * 2
                           + (NCAT + LOGITS_PAD) * 4
                           + B * (LOGITS_PAD + FEATURE_DIM) * 4),
    )

    const = pl.Buffered(1)   # constant block index -> drop the dead 2nd buffer
    logits_pad, feats = pl.pallas_call(
        kernel,
        grid=(n_b, n_k),
        in_specs=[
            pl.BlockSpec((b_blk, tile, C), lambda b, k: (b, k, 0)),           # x tile
            pl.BlockSpec((EMBED, NCAT), lambda b, k: (0, 0), pipeline_mode=const),
            pl.BlockSpec((1, NCAT), lambda b, k: (0, 0), pipeline_mode=const),
            pl.BlockSpec((HIDDEN, LOGITS_PAD), lambda b, k: (0, 0), pipeline_mode=const),
            pl.BlockSpec((1, LOGITS_PAD), lambda b, k: (0, 0), pipeline_mode=const),
        ],
        out_specs=(
            pl.BlockSpec((b_blk, LOGITS_PAD), lambda b, k: (b, 0)),
            pl.BlockSpec((b_blk, FEATURE_DIM), lambda b, k: (b, 0)),
        ),
        out_shape=(
            jax.ShapeDtypeStruct((B, LOGITS_PAD), jnp.float32),
            jax.ShapeDtypeStruct((B, FEATURE_DIM), jnp.float32),
        ),
        scratch_shapes=[pltpu.VMEM((b_blk, slab, EMBED), jnp.float32)],
        compiler_params=pltpu.CompilerParams(
            dimension_semantics=("parallel", "arbitrary")),
        cost_estimate=cost,
    )(x, packed["w_cat"], packed["b_cat"], packed["w2p"], packed["b2p"])

    return logits_pad[:, :NUM_CLASSES], feats


def stub_encoder(x_nchw, w_embed, b_embed, patch=4):
    """Deterministic stand-in for the Swin-UNet encoder (plain JAX glue).
    Maps NCHW input to an NHWC bottleneck of channel dim 768 via a patch-embed
    linear projection and emits bf16 (cast fused into the encoder epilogue).
    Returns (bottleneck, None) to match `bottleneck, _ = self.encoder(x)`."""
    B, C, H, W = x_nchw.shape
    hp, wp_ = H // patch, W // patch
    p = x_nchw.reshape(B, C, hp, patch, wp_, patch)
    p = p.transpose(0, 2, 4, 1, 3, 5).reshape(B, hp, wp_, C * patch * patch)
    bottleneck = (p @ w_embed + b_embed).astype(jnp.bfloat16)   # (B, hp, wp, 768)
    return bottleneck, None


def head_reference(bottleneck_nhwc, params):
    """Pure-JAX reference with the same dtype policy as the kernel
    (f32 pooling of the streamed values, bf16 matmul inputs, f32 accumulation)."""
    B = bottleneck_nhwc.shape[0]
    x = bottleneck_nhwc.reshape(B, -1, EMBED).astype(jnp.float32)
    pooled = jnp.mean(x, axis=1)
    pooled_bf = pooled.astype(jnp.bfloat16)
    h = jnp.maximum(
        jnp.dot(pooled_bf, params["w1"].astype(jnp.bfloat16),
                preferred_element_type=jnp.float32) + params["b1"], 0.0)
    logits = jnp.dot(h.astype(jnp.bfloat16), params["w2"].astype(jnp.bfloat16),
                     preferred_element_type=jnp.float32) + params["b2"]
    feats = jnp.dot(pooled_bf, params["wp"].astype(jnp.bfloat16),
                    preferred_element_type=jnp.float32) + params["bp"]
    return logits, feats


def init_params(key, in_patch_dim):
    ks = jax.random.split(key, 4)

    def lin(k, fan_in, fan_out):
        bound = 1.0 / jnp.sqrt(fan_in)
        kw, kb = jax.random.split(k)
        w = jax.random.uniform(kw, (fan_in, fan_out), jnp.float32, -bound, bound)
        b = jax.random.uniform(kb, (1, fan_out), jnp.float32, -bound, bound)
        return w, b

    w1, b1 = lin(ks[0], EMBED, HIDDEN)
    w2, b2 = lin(ks[1], HIDDEN, NUM_CLASSES)
    wp, bp = lin(ks[2], EMBED, FEATURE_DIM)
    we, be = lin(ks[3], in_patch_dim, EMBED)
    return {"w1": w1, "b1": b1, "w2": w2, "b2": b2, "wp": wp, "bp": bp,
            "w_embed": we, "b_embed": be}


if __name__ == "__main__":
    key = jax.random.PRNGKey(0)
    k_x, k_p, k_b = jax.random.split(key, 3)

    # Small example input consistent with an image-classifier forward: NCHW.
    B, Cin, H, W, patch = 2, 4, 16, 16, 4
    x = jax.random.normal(k_x, (B, Cin, H, W), jnp.float32)

    params = init_params(k_p, Cin * patch * patch)
    packed = pack_head_params(params)          # one-time weight packing

    # encoder (stub, plain JAX) -> bottleneck NHWC (B, 4, 4, 768) bf16
    bottleneck, _ = stub_encoder(x, params["w_embed"], params["b_embed"][0],
                                 patch=patch)

    # 1) single-block fast path (hw=16 fits VMEM -> 1 grid step, no masking)
    logits, image_features = swin_unet_classifier_head(bottleneck, packed)
    jax.block_until_ready((logits, image_features))
    logits_ref, feats_ref = head_reference(bottleneck, params)
    assert logits.shape == (B, NUM_CLASSES)
    assert image_features.shape == (B, FEATURE_DIM)
    assert jnp.allclose(logits, logits_ref, atol=2e-3, rtol=2e-3)
    assert jnp.allclose(image_features, feats_ref, atol=2e-3, rtol=2e-3)

    # 2) multi-step streaming path (tile override) -> exercises the accumulator
    #    init/finalize and the 8-sublane slab accumulation.
    logits2, feats2 = swin_unet_classifier_head(bottleneck, packed, tile_hw=8)
    jax.block_until_ready((logits2, feats2))
    assert jnp.allclose(logits2, logits_ref, atol=2e-3, rtol=2e-3)
    assert jnp.allclose(feats2, feats_ref, atol=2e-3, rtol=2e-3)

    # 3) ragged 7x7 Swin bottleneck + batch-parallel (megacore) split at B=16:
    #    exercises in-kernel row masking and the "parallel" batch grid axis.
    B3 = 16
    bot3 = jax.random.normal(k_b, (B3, 7, 7, EMBED), jnp.float32).astype(jnp.bfloat16)
    logits3, feats3 = swin_unet_classifier_head(bot3, packed, tile_hw=16)
    jax.block_until_ready((logits3, feats3))
    l3_ref, f3_ref = head_reference(bot3, params)
    assert logits3.shape == (B3, NUM_CLASSES)
    assert jnp.allclose(logits3, l3_ref, atol=2e-3, rtol=2e-3)
    assert jnp.allclose(feats3, f3_ref, atol=2e-3, rtol=2e-3)

    print("KERNEL_OK")
</pallas_src>

<mosaic_0001>
module attributes {stable_mosaic.version = 11 : i64} {
  func.func @_head_kernel(%arg0: i32, %arg1: i32, %arg2: memref<2x16x768xbf16, #tpu.memory_space<vmem>>, %arg3: memref<768x1280xbf16, #tpu.memory_space<vmem>>, %arg4: memref<1x1280xf32, #tpu.memory_space<vmem>>, %arg5: memref<512x128xbf16, #tpu.memory_space<vmem>>, %arg6: memref<1x128xf32, #tpu.memory_space<vmem>>, %arg7: memref<2x128xf32, #tpu.memory_space<vmem>>, %arg8: memref<2x768xf32, #tpu.memory_space<vmem>>, %arg9: memref<2x8x768xf32, #tpu.memory_space<vmem>>) attributes {dimension_semantics = [#tpu.dimension_semantics<parallel>, #tpu.dimension_semantics<arbitrary>], iteration_bounds = array<i64: 1, 1>, scalar_prefetch = 0 : i64, scratch_operands = 1 : i64, tpu.core_type = #tpu.core_type<tc>, window_params = [{transform_indices = @transform_0, window_bounds = array<i64: 2, 16, 768>}, {pipeline_mode = #tpu.pipeline_mode<synchronous>, transform_indices = @transform_1, window_bounds = array<i64: 768, 1280>}, {pipeline_mode = #tpu.pipeline_mode<synchronous>, transform_indices = @transform_2, window_bounds = array<i64: 1, 1280>}, {pipeline_mode = #tpu.pipeline_mode<synchronous>, transform_indices = @transform_3, window_bounds = array<i64: 512, 128>}, {pipeline_mode = #tpu.pipeline_mode<synchronous>, transform_indices = @transform_4, window_bounds = array<i64: 1, 128>}, {transform_indices = @transform_5, window_bounds = array<i64: 2, 128>}, {transform_indices = @transform_6, window_bounds = array<i64: 2, 768>}]} {
    %c0_i32 = arith.constant 0 : i32
    %0 = arith.cmpi eq, %arg1, %c0_i32 : i32
    %1 = arith.extui %0 : i1 to i32
    %c0_i32_0 = arith.constant 0 : i32
    %2 = arith.cmpi ne, %1, %c0_i32_0 : i32
    scf.if %2 {
      %cst_11 = arith.constant 0.000000e+00 : f32
      %13 = vector.broadcast %cst_11 : f32 to vector<2x8x768xf32>
      %c0_12 = arith.constant 0 : index
      %c0_13 = arith.constant 0 : index
      %c0_14 = arith.constant 0 : index
      %14 = vector.load %arg9[%c0_12, %c0_13, %c0_14] : memref<2x8x768xf32, #tpu.memory_space<vmem>>, vector<2x8x768xf32>
      tpu.vector_store %arg9[%c0_12, %c0_13, %c0_14], %13 {strides = array<i32>} : memref<2x8x768xf32, #tpu.memory_space<vmem>>, vector<2x8x768xf32>,
    } else {
    }
    %c0 = arith.constant 0 : index
    %c0_1 = arith.constant 0 : index
    %c0_2 = arith.constant 0 : index
    %3 = vector.load %arg2[%c0, %c0_1, %c0_2] : memref<2x16x768xbf16, #tpu.memory_space<vmem>>, vector<2x16x768xbf16>
    %4 = arith.extf %3 : vector<2x16x768xbf16> to vector<2x16x768xf32>
    %c0_3 = arith.constant 0 : index
    %c0_4 = arith.constant 0 : index
    %c0_5 = arith.constant 0 : index
    %5 = vector.load %arg9[%c0_3, %c0_4, %c0_5] : memref<2x8x768xf32, #tpu.memory_space<vmem>>, vector<2x8x768xf32>
    %6 = vector.shape_cast %4 : vector<2x16x768xf32> to vector<2x2x8x768xf32>
    %cst = arith.constant dense<0.000000e+00> : vector<2x8x768xf32>
    %7 = vector.multi_reduction <add>, %6, %cst [1] : vector<2x2x8x768xf32> to vector<2x8x768xf32>
    %8 = arith.addf %5, %7 : vector<2x8x768xf32>
    %c0_6 = arith.constant 0 : index
    %c0_7 = arith.constant 0 : index
    %c0_8 = arith.constant 0 : index
    %9 = vector.load %arg9[%c0_6, %c0_7, %c0_8] : memref<2x8x768xf32, #tpu.memory_space<vmem>>, vector<2x8x768xf32>
    tpu.vector_store %arg9[%c0_6, %c0_7, %c0_8], %8 {strides = array<i32>} : memref<2x8x768xf32, #tpu.memory_space<vmem>>, vector<2x8x768xf32>,
    %c0_i32_9 = arith.constant 0 : i32
    %10 = arith.cmpi eq, %arg1, %c0_i32_9 : i32
    %11 = arith.extui %10 : i1 to i32
    %c0_i32_10 = arith.constant 0 : i32
    %12 = arith.cmpi ne, %11, %c0_i32_10 : i32
    scf.if %12 {
      %c0_11 = arith.constant 0 : index
      %c0_12 = arith.constant 0 : index
      %c0_13 = arith.constant 0 : index
      %13 = vector.load %arg9[%c0_11, %c0_12, %c0_13] : memref<2x8x768xf32, #tpu.memory_space<vmem>>, vector<2x8x768xf32>
      %cst_14 = arith.constant dense<0.000000e+00> : vector<2x768xf32>
      %14 = vector.multi_reduction <add>, %13, %cst_14 [1] : vector<2x8x768xf32> to vector<2x768xf32>
      %cst_15 = arith.constant 6.250000e-02 : f32
      %15 = vector.broadcast %cst_15 : f32 to vector<2x768xf32>
      %16 = arith.mulf %14, %15 : vector<2x768xf32>
      %17 = arith.truncf %16 : vector<2x768xf32> to vector<2x768xbf16>
      %c0_16 = arith.constant 0 : index
      %c0_17 = arith.constant 0 : index
      %18 = vector.load %arg3[%c0_16, %c0_17] : memref<768x1280xbf16, #tpu.memory_space<vmem>>, vector<768x1280xbf16>
      %cst_18 = arith.constant dense<0.000000e+00> : vector<2x1280xf32>
      %19 = tpu.matmul %17, %18, %cst_18 {dimension_numbers = #tpu.dot_dimension_numbers<[1], [0], [0], [1], [0, 0, 1, 1], [], []>} : vector<2x768xbf16>, vector<768x1280xbf16>, vector<2x1280xf32> -> vector<2x1280xf32>
      %c0_19 = arith.constant 0 : index
      %c0_20 = arith.constant 0 : index
      %20 = vector.load %arg4[%c0_19, %c0_20] : memref<1x1280xf32, #tpu.memory_space<vmem>>, vector<1x1280xf32>
      %21 = vector.broadcast %20 : vector<1x1280xf32> to vector<2x1280xf32>
      %22 = arith.addf %19, %21 : vector<2x1280xf32>
      %23 = vector.extract_strided_slice %22 {offsets = [0, 0], sizes = [2, 512], strides = [1, 1]} : vector<2x1280xf32> to vector<2x512xf32>
      %cst_21 = arith.constant 0.000000e+00 : f32
      %24 = vector.broadcast %cst_21 : f32 to vector<2x512xf32>
      %25 = arith.maximumf %23, %24 : vector<2x512xf32>
      %26 = vector.extract_strided_slice %22 {offsets = [0, 512], sizes = [2, 768], strides = [1, 1]} : vector<2x1280xf32> to vector<2x768xf32>
      %c0_22 = arith.constant 0 : index
      %c0_23 = arith.constant 0 : index
      %27 = vector.load %arg8[%c0_22, %c0_23] : memref<2x768xf32, #tpu.memory_space<vmem>>, vector<2x768xf32>
      tpu.vector_store %arg8[%c0_22, %c0_23], %26 {strides = array<i32>} : memref<2x768xf32, #tpu.memory_space<vmem>>, vector<2x768xf32>,
      %28 = arith.truncf %25 : vector<2x512xf32> to vector<2x512xbf16>
      %c0_24 = arith.constant 0 : index
      %c0_25 = arith.constant 0 : index
      %29 = vector.load %arg5[%c0_24, %c0_25] : memref<512x128xbf16, #tpu.memory_space<vmem>>, vector<512x128xbf16>
      %cst_26 = arith.constant dense<0.000000e+00> : vector<2x128xf32>
      %30 = tpu.matmul %28, %29, %cst_26 {dimension_numbers = #tpu.dot_dimension_numbers<[1], [0], [0], [1], [0, 0, 1, 1], [], []>} : vector<2x512xbf16>, vector<512x128xbf16>, vector<2x128xf32> -> vector<2x128xf32>
      %c0_27 = arith.constant 0 : index
      %c0_28 = arith.constant 0 : index
      %31 = vector.load %arg6[%c0_27, %c0_28] : memref<1x128xf32, #tpu.memory_space<vmem>>, vector<1x128xf32>
      %32 = vector.broadcast %31 : vector<1x128xf32> to vector<2x128xf32>
      %33 = arith.addf %30, %32 : vector<2x128xf32>
      %c0_29 = arith.constant 0 : index
      %c0_30 = arith.constant 0 : index
      %34 = vector.load %arg7[%c0_29, %c0_30] : memref<2x128xf32, #tpu.memory_space<vmem>>, vector<2x128xf32>
      tpu.vector_store %arg7[%c0_29, %c0_30], %33 {strides = array<i32>} : memref<2x128xf32, #tpu.memory_space<vmem>>, vector<2x128xf32>,
    } else {
    }
    return
  }
  func.func @transform_0(%arg0: i32, %arg1: i32) -> (i32, i32, i32) {
    %c0_i32 = arith.constant 0 : i32
    %c0_i32_0 = arith.constant 0 : i32
    return %arg0, %arg1, %c0_i32 : i32, i32, i32
  }
  func.func @transform_1(%arg0: i32, %arg1: i32) -> (i32, i32) {
    %c0_i32 = arith.constant 0 : i32
    %c0_i32_0 = arith.constant 0 : i32
    %c0_i32_1 = arith.constant 0 : i32
    return %c0_i32, %c0_i32_0 : i32, i32
  }
  func.func @transform_2(%arg0: i32, %arg1: i32) -> (i32, i32) {
    %c0_i32 = arith.constant 0 : i32
    %c0_i32_0 = arith.constant 0 : i32
    %c0_i32_1 = arith.constant 0 : i32
    return %c0_i32, %c0_i32_0 : i32, i32
  }
  func.func @transform_3(%arg0: i32, %arg1: i32) -> (i32, i32) {
    %c0_i32 = arith.constant 0 : i32
    %c0_i32_0 = arith.constant 0 : i32
    %c0_i32_1 = arith.constant 0 : i32
    return %c0_i32, %c0_i32_0 : i32, i32
  }
  func.func @transform_4(%arg0: i32, %arg1: i32) -> (i32, i32) {
    %c0_i32 = arith.constant 0 : i32
    %c0_i32_0 = arith.constant 0 : i32
    %c0_i32_1 = arith.constant 0 : i32
    return %c0_i32, %c0_i32_0 : i32, i32
  }
  func.func @transform_5(%arg0: i32, %arg1: i32) -> (i32, i32) {
    %c0_i32 = arith.constant 0 : i32
    %c0_i32_0 = arith.constant 0 : i32
    return %arg0, %c0_i32 : i32, i32
  }
  func.func @transform_6(%arg0: i32, %arg1: i32) -> (i32, i32) {
    %c0_i32 = arith.constant 0 : i32
    %c0_i32_0 = arith.constant 0 : i32
    return %arg0, %c0_i32 : i32, i32
  }
}

</mosaic_0001>

<llo_original>
// kernel: tpu_custom_call.1
$region0: #{tpu_custom_call.1}
  #allocation0 [shape = 'u32[]', space=smem, size = 0x4, offset = 0x4, fixed_abs, tag = 'smem constant byte address 0x4 - core index']
  #allocation1 [shape = 'u32[144,128]{1,0:T(1,128)}', space=vmem, size = 0x12000, scoped, tag = 'internal scratch']
  #allocation2 [shape = 'f32[2,8,768]{2,1,0:T(8,128)}', space=vmem, size = 0xc000, scoped, tag = 'scratch operand']
  %s0 = inlined_call_operand.hbm [shape: bf16[2,16,768], index: 0, kind: input, shape index: {}]
  %s1 = inlined_call_operand.hbm [shape: bf16[768,1280], index: 1, kind: input, shape index: {}]
  %s2 = inlined_call_operand.hbm [shape: f32[1,1280], index: 2, kind: input, shape index: {}]
  %s3 = inlined_call_operand.hbm [shape: bf16[512,128], index: 3, kind: input, shape index: {}]
  %s4 = inlined_call_operand.hbm [shape: f32[1,128], index: 4, kind: input, shape index: {}]
  %s5 = inlined_call_operand.hbm [shape: f32[2,128], index: 5, kind: output, shape index: {0}]
  %s6 = inlined_call_operand.hbm [shape: f32[2,768], index: 6, kind: output, shape index: {1}]
  %7 = xla_tuple %s5, %s6
  %s8 = sld [smem:[#allocation0]]
  $region66: #{tpu_custom_call.1} parent=0
    _
  %s10 = ssub.s32 1, %s8
  %s11 = scalar_select 0, %s10, %s8
  $region1: #{tpu_custom_call.1} parent=0
    #allocation3 [shape = 'u8[49152]{0}', space=vmem, size = 0xc000, scoped, tag = 'input window, operand 0, single buffered']
    #allocation4 [shape = 's32[1]{0}', space=sflag, size = 0x4, scoped, tag = 'scoped memory for tpu_custom_call.1']
    #allocation5 [shape = 's32[1]{0}', space=sflag, size = 0x4, scoped, tag = 'scoped memory for tpu_custom_call.1']
    #allocation6 [shape = 'u8[1966080]{0}', space=vmem, size = 0x1e0000, scoped, tag = 'input window, operand 1, single buffered']
    #allocation7 [shape = 's32[1]{0}', space=sflag, size = 0x4, scoped, tag = 'scoped memory for tpu_custom_call.1']
    #allocation8 [shape = 'u8[5120]{0}', space=vmem, size = 0x1400, scoped, tag = 'input window, operand 2, single buffered']
    #allocation9 [shape = 'u8[131072]{0}', space=vmem, size = 0x20000, scoped, tag = 'input window, operand 3, single buffered']
    #allocation10 [shape = 's32[1]{0}', space=sflag, size = 0x4, scoped, tag = 'scoped memory for tpu_custom_call.1']
    #allocation11 [shape = 'u8[512]{0}', space=vmem, size = 0x400, scoped, tag = 'input window, operand 4, single buffered']
    #allocation12 [shape = 'u8[1024]{0}', space=vmem, size = 0x400, scoped, tag = 'output window, operand 0, single buffered']
    #allocation13 [shape = 'u8[6144]{0}', space=vmem, size = 0x1800, scoped, tag = 'output window, operand 1, single buffered']
    #allocation14 [shape = 's32[1]{0}', space=sflag, size = 0x4, scoped, tag = 'scoped memory for tpu_custom_call.1']
    %12 = vsyncpa [#allocation4], 0
    %13 = vsyncpa [#allocation7], 0
    %14 = vsyncpa [#allocation10], 0
    %15 = vsyncpa [#allocation5], 0
    %16 = vsyncpa [#allocation14], 0
    // Predicated region
    $region2: #{tpu_custom_call.1} parent=1 // pred_check
      _
    $region3: #{tpu_custom_call.1} parent=1 // pred_check_branch
      %18 = sbr.rel (0) target = $region5
    $region4: #{tpu_custom_call.1} parent=1 // pred_region
      %s20 = ssub.s32 1536, 1536
      %21 = vsyncadd [#allocation4], %s20
      %s22 = sshll.u32 [#allocation3], 4
      %s23 = int_to_ptr.vmem [resolvable:$true] %s22
      %28 = dma.hbm_to_vmem [thread:$0]  %s0, 1536, %s23, [#allocation4], 384, 384, 24
    $region5: #{tpu_custom_call.1} parent=1 // pred_fallthru
      _
    // Predicated region
    $region6: #{tpu_custom_call.1} parent=1 // pred_check
      _
    $region7: #{tpu_custom_call.1} parent=1 // pred_check_branch
      %30 = sbr.rel (0) target = $region9
    $region8: #{tpu_custom_call.1} parent=1 // pred_region
      %s32 = ssub.s32 61440, 61440
      %33 = vsyncadd [#allocation7], %s32
      %s34 = sshll.u32 [#allocation6], 4
      %s35 = int_to_ptr.vmem [resolvable:$true] %s34
      %40 = dma.hbm_to_vmem [thread:$0]  %s1, 61440, %s35, [#allocation7], 640, 640, 40
    $region9: #{tpu_custom_call.1} parent=1 // pred_fallthru
      _
    // Predicated region
    $region10: #{tpu_custom_call.1} parent=1 // pred_check
      _
    $region11: #{tpu_custom_call.1} parent=1 // pred_check_branch
      %42 = sbr.rel (0) target = $region13
    $region12: #{tpu_custom_call.1} parent=1 // pred_region
      %s44 = ssub.s32 160, 160
      %45 = vsyncadd [#allocation7], %s44
      %s47 = sshll.u32 [#allocation8], 4
      %s48 = int_to_ptr.vmem [resolvable:$true] %s47
      %50 = dma.hbm_to_vmem [thread:$0]  %s2, 160, %s48, [#allocation7]
    $region13: #{tpu_custom_call.1} parent=1 // pred_fallthru
      _
    // Predicated region
    $region14: #{tpu_custom_call.1} parent=1 // pred_check
      _
    $region15: #{tpu_custom_call.1} parent=1 // pred_check_branch
      %52 = sbr.rel (0) target = $region17
    $region16: #{tpu_custom_call.1} parent=1 // pred_region
      %s54 = ssub.s32 4096, 4096
      %55 = vsyncadd [#allocation10], %s54
      %s56 = sshll.u32 [#allocation9], 4
      %s57 = int_to_ptr.vmem [resolvable:$true] %s56
      %62 = dma.hbm_to_vmem [thread:$0]  %s3, 4096, %s57, [#allocation10], 64, 64, 4
    $region17: #{tpu_custom_call.1} parent=1 // pred_fallthru
      _
    // Predicated region
    $region18: #{tpu_custom_call.1} parent=1 // pred_check
      _
    $region19: #{tpu_custom_call.1} parent=1 // pred_check_branch
      %64 = sbr.rel (0) target = $region21
    $region20: #{tpu_custom_call.1} parent=1 // pred_region
      %s66 = ssub.s32 16, 16
      %67 = vsyncadd [#allocation10], %s66
      %s69 = sshll.u32 [#allocation11], 4
      %s70 = int_to_ptr.vmem [resolvable:$true] %s69
      %72 = dma.hbm_to_vmem [thread:$0]  %s4, 16, %s70, [#allocation10]
    $region21: #{tpu_custom_call.1} parent=1 // pred_fallthru
      _
    // Predicated region
    $region22: #{tpu_custom_call.1} parent=1 // pred_check
      _
    $region23: #{tpu_custom_call.1} parent=1 // pred_check_branch
      %74 = sbr.rel (0) target = $region25
    $region24: #{tpu_custom_call.1} parent=1 // pred_region
      %75 = dma.done [#allocation4], 1536
    $region25: #{tpu_custom_call.1} parent=1 // pred_fallthru
      _
    // Predicated region
    $region26: #{tpu_custom_call.1} parent=1 // pred_check
      _
    $region27: #{tpu_custom_call.1} parent=1 // pred_check_branch
      %77 = sbr.rel (0) target = $region29
    $region28: #{tpu_custom_call.1} parent=1 // pred_region
      %78 = dma.done [#allocation7], 61440
    $region29: #{tpu_custom_call.1} parent=1 // pred_fallthru
      _
    // Predicated region
    $region30: #{tpu_custom_call.1} parent=1 // pred_check
      _
    $region31: #{tpu_custom_call.1} parent=1 // pred_check_branch
      %80 = sbr.rel (0) target = $region33
    $region32: #{tpu_custom_call.1} parent=1 // pred_region
      %81 = dma.done [#allocation7], 160
    $region33: #{tpu_custom_call.1} parent=1 // pred_fallthru
      _
    // Predicated region
    $region34: #{tpu_custom_call.1} parent=1 // pred_check
      _
    $region35: #{tpu_custom_call.1} parent=1 // pred_check_branch
      %83 = sbr.rel (0) target = $region37
    $region36: #{tpu_custom_call.1} parent=1 // pred_region
      %84 = dma.done [#allocation10], 4096
    $region37: #{tpu_custom_call.1} parent=1 // pred_fallthru
      _
    // Predicated region
    $region38: #{tpu_custom_call.1} parent=1 // pred_check
      _
    $region39: #{tpu_custom_call.1} parent=1 // pred_check_branch
      %86 = sbr.rel (0) target = $region41
    $region40: #{tpu_custom_call.1} parent=1 // pred_region
      %87 = dma.done [#allocation10], 16
    $region41: #{tpu_custom_call.1} parent=1 // pred_fallthru
      _
    %p89 = scmp.eq.s32.totalorder 0, 0
    // Predicated region
    $region42: #{tpu_custom_call.1} parent=1 // pred_check
      %p90 = pneg %p89
    $region43: #{tpu_custom_call.1} parent=1 // pred_check_branch
      %92 = sbr.rel (%p90) target = $region45
    $region44: #{tpu_custom_call.1} parent=1 // pred_region
      %93 = vst [vmem:[#allocation2] sm:$0xff] 0.0
      %94 = vst [vmem:[#allocation2 + $0x8] sm:$0xff] 0.0
      %95 = vst [vmem:[#allocation2 + $0x10] sm:$0xff] 0.0
      %96 = vst [vmem:[#allocation2 + $0x18] sm:$0xff] 0.0
      %97 = vst [vmem:[#allocation2 + $0x20] sm:$0xff] 0.0
      %98 = vst [vmem:[#allocation2 + $0x28] sm:$0xff] 0.0
      %99 = vst [vmem:[#allocation2 + $0x30] sm:$0xff] 0.0
      %100 = vst [vmem:[#allocation2 + $0x38] sm:$0xff] 0.0
      %101 = vst [vmem:[#allocation2 + $0x40] sm:$0xff] 0.0
      %102 = vst [vmem:[#allocation2 + $0x48] sm:$0xff] 0.0
      %103 = vst [vmem:[#allocation2 + $0x50] sm:$0xff] 0.0
      %104 = vst [vmem:[#allocation2 + $0x58] sm:$0xff] 0.0
    $region45: #{tpu_custom_call.1} parent=1 // pred_fallthru
      _
    %v105 = vld [vmem:[#allocation3] sm:$0xff]
    %v106 = vld [vmem:[#allocation3 + $0x8] sm:$0xff]
    %v107 = vld [vmem:[#allocation3 + $0x10] sm:$0xff]
    %v108 = vld [vmem:[#allocation3 + $0x18] sm:$0xff]
    %v109 = vld [vmem:[#allocation3 + $0x20] sm:$0xff]
    %v110 = vld [vmem:[#allocation3 + $0x28] sm:$0xff]
    %v111 = vld [vmem:[#allocation3 + $0x30] sm:$0xff]
    %v112 = vld [vmem:[#allocation3 + $0x38] sm:$0xff]
    %v113 = vld [vmem:[#allocation3 + $0x40] sm:$0xff]
    %v114 = vld [vmem:[#allocation3 + $0x48] sm:$0xff]
    %v115 = vld [vmem:[#allocation3 + $0x50] sm:$0xff]
    %v116 = vld [vmem:[#allocation3 + $0x58] sm:$0xff]
    %v117 = vunpack.c.l.bf16 %v105
    %v118 = vunpack.c.h.bf16 %v105
    %v119 = vunpack.c.l.bf16 %v106
    %v120 = vunpack.c.h.bf16 %v106
    %v121 = vunpack.c.l.bf16 %v107
    %v122 = vunpack.c.h.bf16 %v107
    %v123 = vunpack.c.l.bf16 %v108
    %v124 = vunpack.c.h.bf16 %v108
    %v125 = vunpack.c.l.bf16 %v109
    %v126 = vunpack.c.h.bf16 %v109
    %v127 = vunpack.c.l.bf16 %v110
    %v128 = vunpack.c.h.bf16 %v110
    %v129 = vunpack.c.l.bf16 %v111
    %v130 = vunpack.c.h.bf16 %v111
    %v131 = vunpack.c.l.bf16 %v112
    %v132 = vunpack.c.h.bf16 %v112
    %v133 = vunpack.c.l.bf16 %v113
    %v134 = vunpack.c.h.bf16 %v113
    %v135 = vunpack.c.l.bf16 %v114
    %v136 = vunpack.c.h.bf16 %v114
    %v137 = vunpack.c.l.bf16 %v115
    %v138 = vunpack.c.h.bf16 %v115
    %v139 = vunpack.c.l.bf16 %v116
    %v140 = vunpack.c.h.bf16 %v116
    %v141 = vld [vmem:[#allocation2] sm:$0xff]
    %v142 = vld [vmem:[#allocation2 + $0x8] sm:$0xff]
    %v143 = vld [vmem:[#allocation2 + $0x10] sm:$0xff]
    %v144 = vld [vmem:[#allocation2 + $0x18] sm:$0xff]
    %v145 = vld [vmem:[#allocation2 + $0x20] sm:$0xff]
    %v146 = vld [vmem:[#allocation2 + $0x28] sm:$0xff]
    %v147 = vld [vmem:[#allocation2 + $0x30] sm:$0xff]
    %v148 = vld [vmem:[#allocation2 + $0x38] sm:$0xff]
    %v149 = vld [vmem:[#allocation2 + $0x40] sm:$0xff]
    %v150 = vld [vmem:[#allocation2 + $0x48] sm:$0xff]
    %v151 = vld [vmem:[#allocation2 + $0x50] sm:$0xff]
    %v152 = vld [vmem:[#allocation2 + $0x58] sm:$0xff]
    %v153 = vadd.f32 %v117, %v123
    %v154 = vadd.f32 %v118, %v124
    %v155 = vadd.f32 %v119, %v125
    %v156 = vadd.f32 %v120, %v126
    %v157 = vadd.f32 %v121, %v127
    %v158 = vadd.f32 %v122, %v128
    %v159 = vadd.f32 %v129, %v135
    %v160 = vadd.f32 %v130, %v136
    %v161 = vadd.f32 %v131, %v137
    %v162 = vadd.f32 %v132, %v138
    %v163 = vadd.f32 %v133, %v139
    %v164 = vadd.f32 %v134, %v140
    %v165 = vadd.f32 %v141, %v153
    %v166 = vadd.f32 %v142, %v154
    %v167 = vadd.f32 %v143, %v155
    %v168 = vadd.f32 %v144, %v156
    %v169 = vadd.f32 %v145, %v157
    %v170 = vadd.f32 %v146, %v158
    %v171 = vadd.f32 %v147, %v159
    %v172 = vadd.f32 %v148, %v160
    %v173 = vadd.f32 %v149, %v161
    %v174 = vadd.f32 %v150, %v162
    %v175 = vadd.f32 %v151, %v163
    %v176 = vadd.f32 %v152, %v164
    %177 = vst [vmem:[#allocation2] sm:$0xff] %v165
    %178 = vst [vmem:[#allocation2 + $0x8] sm:$0xff] %v166
    %179 = vst [vmem:[#allocation2 + $0x10] sm:$0xff] %v167
    %180 = vst [vmem:[#allocation2 + $0x18] sm:$0xff] %v168
    %181 = vst [vmem:[#allocation2 + $0x20] sm:$0xff] %v169
    %182 = vst [vmem:[#allocation2 + $0x28] sm:$0xff] %v170
    %183 = vst [vmem:[#allocation2 + $0x30] sm:$0xff] %v171
    %184 = vst [vmem:[#allocation2 + $0x38] sm:$0xff] %v172
    %185 = vst [vmem:[#allocation2 + $0x40] sm:$0xff] %v173
    %186 = vst [vmem:[#allocation2 + $0x48] sm:$0xff] %v174
    %187 = vst [vmem:[#allocation2 + $0x50] sm:$0xff] %v175
    %188 = vst [vmem:[#allocation2 + $0x58] sm:$0xff] %v176
    // Predicated region
    $region46: #{tpu_custom_call.1} parent=1 // pred_check
      %p189 = pneg %p89
    $region47: #{tpu_custom_call.1} parent=1 // pred_check_branch
      %191 = sbr.rel (%p189) target = $region49
    $region48: #{tpu_custom_call.1} parent=1 // pred_region
      %v192 = vld [vmem:[#allocation2] sm:$0xff]
      %v193 = vld [vmem:[#allocation2 + $0x8] sm:$0xff]
      %v194 = vld [vmem:[#allocation2 + $0x10] sm:$0xff]
      %v195 = vld [vmem:[#allocation2 + $0x18] sm:$0xff]
      %v196 = vld [vmem:[#allocation2 + $0x20] sm:$0xff]
      %v197 = vld [vmem:[#allocation2 + $0x28] sm:$0xff]
      %v198 = vld [vmem:[#allocation2 + $0x30] sm:$0xff]
      %v199 = vld [vmem:[#allocation2 + $0x38] sm:$0xff]
      %v200 = vld [vmem:[#allocation2 + $0x40] sm:$0xff]
      %v201 = vld [vmem:[#allocation2 + $0x48] sm:$0xff]
      %v202 = vld [vmem:[#allocation2 + $0x50] sm:$0xff]
      %v203 = vld [vmem:[#allocation2 + $0x58] sm:$0xff]
      %v204 = vrot.slane %v192, 4
      %v205 = vadd.f32 %v192, %v204
      %v206 = vrot.slane %v205, 2
      %v207 = vadd.f32 %v205, %v206
      %v208 = vrot.slane %v207, 1
      %v209 = vadd.f32 %v207, %v208
      %v210 = vrot.slane %v193, 4
      %v211 = vadd.f32 %v193, %v210
      %v212 = vrot.slane %v211, 2
      %v213 = vadd.f32 %v211, %v212
      %v214 = vrot.slane %v213, 1
      %v215 = vadd.f32 %v213, %v214
      %v216 = vrot.slane %v194, 4
      %v217 = vadd.f32 %v194, %v216
      %v218 = vrot.slane %v217, 2
      %v219 = vadd.f32 %v217, %v218
      %v220 = vrot.slane %v219, 1
      %v221 = vadd.f32 %v219, %v220
      %v222 = vrot.slane %v195, 4
      %v223 = vadd.f32 %v195, %v222
      %v224 = vrot.slane %v223, 2
      %v225 = vadd.f32 %v223, %v224
      %v226 = vrot.slane %v225, 1
      %v227 = vadd.f32 %v225, %v226
      %v228 = vrot.slane %v196, 4
      %v229 = vadd.f32 %v196, %v228
      %v230 = vrot.slane %v229, 2
      %v231 = vadd.f32 %v229, %v230
      %v232 = vrot.slane %v231, 1
      %v233 = vadd.f32 %v231, %v232
      %v234 = vrot.slane %v197, 4
      %v235 = vadd.f32 %v197, %v234
      %v236 = vrot.slane %v235, 2
      %v237 = vadd.f32 %v235, %v236
      %v238 = vrot.slane %v237, 1
      %v239 = vadd.f32 %v237, %v238
      %v240 = vrot.slane %v198, 4
      %v241 = vadd.f32 %v198, %v240
      %v242 = vrot.slane %v241, 2
      %v243 = vadd.f32 %v241, %v242
      %v244 = vrot.slane %v243, 1
      %v245 = vadd.f32 %v243, %v244
      %v246 = vrot.slane %v199, 4
      %v247 = vadd.f32 %v199, %v246
      %v248 = vrot.slane %v247, 2
      %v249 = vadd.f32 %v247, %v248
      %v250 = vrot.slane %v249, 1
      %v251 = vadd.f32 %v249, %v250
      %v252 = vrot.slane %v200, 4
      %v253 = vadd.f32 %v200, %v252
      %v254 = vrot.slane %v253, 2
      %v255 = vadd.f32 %v253, %v254
      %v256 = vrot.slane %v255, 1
      %v257 = vadd.f32 %v255, %v256
      %v258 = vrot.slane %v201, 4
      %v259 = vadd.f32 %v201, %v258
      %v260 = vrot.slane %v259, 2
      %v261 = vadd.f32 %v259, %v260
      %v262 = vrot.slane %v261, 1
      %v263 = vadd.f32 %v261, %v262
      %v264 = vrot.slane %v202, 4
      %v265 = vadd.f32 %v202, %v264
      %v266 = vrot.slane %v265, 2
      %v267 = vadd.f32 %v265, %v266
      %v268 = vrot.slane %v267, 1
      %v269 = vadd.f32 %v267, %v268
      %v270 = vrot.slane %v203, 4
      %v271 = vadd.f32 %v203, %v270
      %v272 = vrot.slane %v271, 2
      %v273 = vadd.f32 %v271, %v272
      %v274 = vrot.slane %v273, 1
      %v275 = vadd.f32 %v273, %v274
      %v276 = vmul.f32 %v209, 0.0625
      %v277 = vmul.f32 %v215, 0.0625
      %v278 = vmul.f32 %v221, 0.0625
      %v279 = vmul.f32 %v227, 0.0625
      %v280 = vmul.f32 %v233, 0.0625
      %v281 = vmul.f32 %v239, 0.0625
      %v282 = vmul.f32 %v245, 0.0625
      %v283 = vmul.f32 %v251, 0.0625
      %v284 = vmul.f32 %v257, 0.0625
      %v285 = vmul.f32 %v263, 0.0625
      %v286 = vmul.f32 %v269, 0.0625
      %v287 = vmul.f32 %v275, 0.0625
      %v288 = vpack.c.bf16 %v276, %v276
      %v289 = vpack.c.bf16 %v277, %v277
      %v290 = vpack.c.bf16 %v278, %v278
      %v291 = vpack.c.bf16 %v279, %v279
      %v292 = vpack.c.bf16 %v280, %v280
      %v293 = vpack.c.bf16 %v281, %v281
      %v294 = vpack.c.bf16 %v282, %v282
      %v295 = vpack.c.bf16 %v283, %v283
      %v296 = vpack.c.bf16 %v284, %v284
      %v297 = vpack.c.bf16 %v285, %v285
      %v298 = vpack.c.bf16 %v286, %v286
      %v299 = vpack.c.bf16 %v287, %v287
      %v300 = vld [vmem:[#allocation6] sm:$0xff]
      %v301 = vld [vmem:[#allocation6 + $0x8] sm:$0xff]
      %v302 = vld [vmem:[#allocation6 + $0x10] sm:$0xff]
      %v303 = vld [vmem:[#allocation6 + $0x18] sm:$0xff]
      %v304 = vld [vmem:[#allocation6 + $0x20] sm:$0xff]
      %v305 = vld [vmem:[#allocation6 + $0x28] sm:$0xff]
      %v306 = vld [vmem:[#allocation6 + $0x30] sm:$0xff]
      %v307 = vld [vmem:[#allocation6 + $0x38] sm:$0xff]
      %v308 = vld [vmem:[#allocation6 + $0x40] sm:$0xff]
      %v309 = vld [vmem:[#allocation6 + $0x48] sm:$0xff]
      %v310 = vld [vmem:[#allocation6 + $0x50] sm:$0xff]
      %v311 = vld [vmem:[#allocation6 + $0x58] sm:$0xff]
      %v312 = vld [vmem:[#allocation6 + $0x60] sm:$0xff]
      %v313 = vld [vmem:[#allocation6 + $0x68] sm:$0xff]
      %v314 = vld [vmem:[#allocation6 + $0x70] sm:$0xff]
      %v315 = vld [vmem:[#allocation6 + $0x78] sm:$0xff]
      %v316 = vld [vmem:[#allocation6 + $0x80] sm:$0xff]
      %v317 = vld [vmem:[#allocation6 + $0x88] sm:$0xff]
      %v318 = vld [vmem:[#allocation6 + $0x90] sm:$0xff]
      %v319 = vld [vmem:[#allocation6 + $0x98] sm:$0xff]
      %v320 = vld [vmem:[#allocation6 + $0xa0] sm:$0xff]
      %v321 = vld [vmem:[#allocation6 + $0xa8] sm:$0xff]
      %v322 = vld [vmem:[#allocation6 + $0xb0] sm:$0xff]
      %v323 = vld [vmem:[#allocation6 + $0xb8] sm:$0xff]
      %v324 = vld [vmem:[#allocation6 + $0xc0] sm:$0xff]
      %v325 = vld [vmem:[#allocation6 + $0xc8] sm:$0xff]
      %v326 = vld [vmem:[#allocation6 + $0xd0] sm:$0xff]
      %v327 = vld [vmem:[#allocation6 + $0xd8] sm:$0xff]
      %v328 = vld [vmem:[#allocation6 + $0xe0] sm:$0xff]
      %v329 = vld [vmem:[#allocation6 + $0xe8] sm:$0xff]
      %v330 = vld [vmem:[#allocation6 + $0xf0] sm:$0xff]
      %v331 = vld [vmem:[#allocation6 + $0xf8] sm:$0xff]
      %v332 = vld [vmem:[#allocation6 + $0x100] sm:$0xff]
      %v333 = vld [vmem:[#allocation6 + $0x108] sm:$0xff]
      %v334 = vld [vmem:[#allocation6 + $0x110] sm:$0xff]
      %v335 = vld [vmem:[#allocation6 + $0x118] sm:$0xff]
      %v336 = vld [vmem:[#allocation6 + $0x120] sm:$0xff]
      %v337 = vld [vmem:[#allocation6 + $0x128] sm:$0xff]
      %v338 = vld [vmem:[#allocation6 + $0x130] sm:$0xff]
      %v339 = vld [vmem:[#allocation6 + $0x138] sm:$0xff]
      %v340 = vld [vmem:[#allocation6 + $0x140] sm:$0xff]
      %v341 = vld [vmem:[#allocation6 + $0x148] sm:$0xff]
      %v342 = vld [vmem:[#allocation6 + $0x150] sm:$0xff]
      %v343 = vld [vmem:[#allocation6 + $0x158] sm:$0xff]
      %v344 = vld [vmem:[#allocation6 + $0x160] sm:$0xff]
      %v345 = vld [vmem:[#allocation6 + $0x168] sm:$0xff]
      %v346 = vld [vmem:[#allocation6 + $0x170] sm:$0xff]
      %v347 = vld [vmem:[#allocation6 + $0x178] sm:$0xff]
      %v348 = vld [vmem:[#allocation6 + $0x180] sm:$0xff]
      %v349 = vld [vmem:[#allocation6 + $0x188] sm:$0xff]
      %v350 = vld [vmem:[#allocation6 + $0x190] sm:$0xff]
      %v351 = vld [vmem:[#allocation6 + $0x198] sm:$0xff]
      %v352 = vld [vmem:[#allocation6 + $0x1a0] sm:$0xff]
      %v353 = vld [vmem:[#allocation6 + $0x1a8] sm:$0xff]
      %v354 = vld [vmem:[#allocation6 + $0x1b0] sm:$0xff]
      %v355 = vld [vmem:[#allocation6 + $0x1b8] sm:$0xff]
      %v356 = vld [vmem:[#allocation6 + $0x1c0] sm:$0xff]
      %v357 = vld [vmem:[#allocation6 + $0x1c8] sm:$0xff]
      %v358 = vld [vmem:[#allocation6 + $0x1d0] sm:$0xff]
      %v359 = vld [vmem:[#allocation6 + $0x1d8] sm:$0xff]
      %v360 = vld [vmem:[#allocation6 + $0x1e0] sm:$0xff]
      %v361 = vld [vmem:[#allocation6 + $0x1e8] sm:$0xff]
      %v362 = vld [vmem:[#allocation6 + $0x1f0] sm:$0xff]
      %v363 = vld [vmem:[#allocation6 + $0x1f8] sm:$0xff]
      %v364 = vld [vmem:[#allocation6 + $0x200] sm:$0xff]
      %v365 = vld [vmem:[#allocation6 + $0x208] sm:$0xff]
      %v366 = vld [vmem:[#allocation6 + $0x210] sm:$0xff]
      %v367 = vld [vmem:[#allocation6 + $0x218] sm:$0xff]
      %v368 = vld [vmem:[#allocation6 + $0x220] sm:$0xff]
      %v369 = vld [vmem:[#allocation6 + $0x228] sm:$0xff]
      %v370 = vld [vmem:[#allocation6 + $0x230] sm:$0xff]
      %v371 = vld [vmem:[#allocation6 + $0x238] sm:$0xff]
      %v372 = vld [vmem:[#allocation6 + $0x240] sm:$0xff]
      %v373 = vld [vmem:[#allocation6 + $0x248] sm:$0xff]
      %v374 = vld [vmem:[#allocation6 + $0x250] sm:$0xff]
      %v375 = vld [vmem:[#allocation6 + $0x258] sm:$0xff]
      %v376 = vld [vmem:[#allocation6 + $0x260] sm:$0xff]
      %v377 = vld [vmem:[#allocation6 + $0x268] sm:$0xff]
      %v378 = vld [vmem:[#allocation6 + $0x270] sm:$0xff]
      %v379 = vld [vmem:[#allocation6 + $0x278] sm:$0xff]
      %v380 = vld [vmem:[#allocation6 + $0x280] sm:$0xff]
      %v381 = vld [vmem:[#allocation6 + $0x288] sm:$0xff]
      %v382 = vld [vmem:[#allocation6 + $0x290] sm:$0xff]
      %v383 = vld [vmem:[#allocation6 + $0x298] sm:$0xff]
      %v384 = vld [vmem:[#allocation6 + $0x2a0] sm:$0xff]
      %v385 = vld [vmem:[#allocation6 + $0x2a8] sm:$0xff]
      %v386 = vld [vmem:[#allocation6 + $0x2b0] sm:$0xff]
      %v387 = vld [vmem:[#allocation6 + $0x2b8] sm:$0xff]
      %v388 = vld [vmem:[#allocation6 + $0x2c0] sm:$0xff]
      %v389 = vld [vmem:[#allocation6 + $0x2c8] sm:$0xff]
      %v390 = vld [vmem:[#allocation6 + $0x2d0] sm:$0xff]
      %v391 = vld [vmem:[#allocation6 + $0x2d8] sm:$0xff]
      %v392 = vld [vmem:[#allocation6 + $0x2e0] sm:$0xff]
      %v393 = vld [vmem:[#allocation6 + $0x2e8] sm:$0xff]
      %v394 = vld [vmem:[#allocation6 + $0x2f0] sm:$0xff]
      %v395 = vld [vmem:[#allocation6 + $0x2f8] sm:$0xff]
      %v396 = vld [vmem:[#allocation6 + $0x300] sm:$0xff]
      %v397 = vld [vmem:[#allocation6 + $0x308] sm:$0xff]
      %v398 = vld [vmem:[#allocation6 + $0x310] sm:$0xff]
      %v399 = vld [vmem:[#allocation6 + $0x318] sm:$0xff]
      %v400 = vld [vmem:[#allocation6 + $0x320] sm:$0xff]
      %v401 = vld [vmem:[#allocation6 + $0x328] sm:$0xff]
      %v402 = vld [vmem:[#allocation6 + $0x330] sm:$0xff]
      %v403 = vld [vmem:[#allocation6 + $0x338] sm:$0xff]
      %v404 = vld [vmem:[#allocation6 + $0x340] sm:$0xff]
      %v405 = vld [vmem:[#allocation6 + $0x348] sm:$0xff]
      %v406 = vld [vmem:[#allocation6 + $0x350] sm:$0xff]
      %v407 = vld [vmem:[#allocation6 + $0x358] sm:$0xff]
      %v408 = vld [vmem:[#allocation6 + $0x360] sm:$0xff]
      %v409 = vld [vmem:[#allocation6 + $0x368] sm:$0xff]
      %v410 = vld [vmem:[#allocation6 + $0x370] sm:$0xff]
      %v411 = vld [vmem:[#allocation6 + $0x378] sm:$0xff]
      %v412 = vld [vmem:[#allocation6 + $0x380] sm:$0xff]
      %v413 = vld [vmem:[#allocation6 + $0x388] sm:$0xff]
      %v414 = vld [vmem:[#allocation6 + $0x390] sm:$0xff]
      %v415 = vld [vmem:[#allocation6 + $0x398] sm:$0xff]
      %v416 = vld [vmem:[#allocation6 + $0x3a0] sm:$0xff]
      %v417 = vld [vmem:[#allocation6 + $0x3a8] sm:$0xff]
      %v418 = vld [vmem:[#allocation6 + $0x3b0] sm:$0xff]
      %v419 = vld [vmem:[#allocation6 + $0x3b8] sm:$0xff]
      %v420 = vld [vmem:[#allocation6 + $0x3c0] sm:$0xff]
      %v421 = vld [vmem:[#allocation6 + $0x3c8] sm:$0xff]
      %v422 = vld [vmem:[#allocation6 + $0x3d0] sm:$0xff]
      %v423 = vld [vmem:[#allocation6 + $0x3d8] sm:$0xff]
      %v424 = vld [vmem:[#allocation6 + $0x3e0] sm:$0xff]
      %v425 = vld [vmem:[#allocation6 + $0x3e8] sm:$0xff]
      %v426 = vld [vmem:[#allocation6 + $0x3f0] sm:$0xff]
      %v427 = vld [vmem:[#allocation6 + $0x3f8] sm:$0xff]
      %v428 = vld [vmem:[#allocation6 + $0x400] sm:$0xff]
      %v429 = vld [vmem:[#allocation6 + $0x408] sm:$0xff]
      %v430 = vld [vmem:[#allocation6 + $0x410] sm:$0xff]
      %v431 = vld [vmem:[#allocation6 + $0x418] sm:$0xff]
      %v432 = vld [vmem:[#allocation6 + $0x420] sm:$0xff]
      %v433 = vld [vmem:[#allocation6 + $0x428] sm:$0xff]
      %v434 = vld [vmem:[#allocation6 + $0x430] sm:$0xff]
      %v435 = vld [vmem:[#allocation6 + $0x438] sm:$0xff]
      %v436 = vld [vmem:[#allocation6 + $0x440] sm:$0xff]
      %v437 = vld [vmem:[#allocation6 + $0x448] sm:$0xff]
      %v438 = vld [vmem:[#allocation6 + $0x450] sm:$0xff]
      %v439 = vld [vmem:[#allocation6 + $0x458] sm:$0xff]
      %v440 = vld [vmem:[#allocation6 + $0x460] sm:$0xff]
      %v441 = vld [vmem:[#allocation6 + $0x468] sm:$0xff]
      %v442 = vld [vmem:[#allocation6 + $0x470] sm:$0xff]
      %v443 = vld [vmem:[#allocation6 + $0x478] sm:$0xff]
      %v444 = vld [vmem:[#allocation6 + $0x480] sm:$0xff]
      %v445 = vld [vmem:[#allocation6 + $0x488] sm:$0xff]
      %v446 = vld [vmem:[#allocation6 + $0x490] sm:$0xff]
      %v447 = vld [vmem:[#allocation6 + $0x498] sm:$0xff]
      %v448 = vld [vmem:[#allocation6 + $0x4a0] sm:$0xff]
      %v449 = vld [vmem:[#allocation6 + $0x4a8] sm:$0xff]
      %v450 = vld [vmem:[#allocation6 + $0x4b0] sm:$0xff]
      %v451 = vld [vmem:[#allocation6 + $0x4b8] sm:$0xff]
      %v452 = vld [vmem:[#allocation6 + $0x4c0] sm:$0xff]
      %v453 = vld [vmem:[#allocation6 + $0x4c8] sm:$0xff]
      %v454 = vld [vmem:[#allocation6 + $0x4d0] sm:$0xff]
      %v455 = vld [vmem:[#allocation6 + $0x4d8] sm:$0xff]
      %v456 = vld [vmem:[#allocation6 + $0x4e0] sm:$0xff]
      %v457 = vld [vmem:[#allocation6 + $0x4e8] sm:$0xff]
      %v458 = vld [vmem:[#allocation6 + $0x4f0] sm:$0xff]
      %v459 = vld [vmem:[#allocation6 + $0x4f8] sm:$0xff]
      %v460 = vld [vmem:[#allocation6 + $0x500] sm:$0xff]
      %v461 = vld [vmem:[#allocation6 + $0x508] sm:$0xff]
      %v462 = vld [vmem:[#allocation6 + $0x510] sm:$0xff]
      %v463 = vld [vmem:[#allocation6 + $0x518] sm:$0xff]
      %v464 = vld [vmem:[#allocation6 + $0x520] sm:$0xff]
      %v465 = vld [vmem:[#allocation6 + $0x528] sm:$0xff]
      %v466 = vld [vmem:[#allocation6 + $0x530] sm:$0xff]
      %v467 = vld [vmem:[#allocation6 + $0x538] sm:$0xff]
      %v468 = vld [vmem:[#allocation6 + $0x540] sm:$0xff]
      %v469 = vld [vmem:[#allocation6 + $0x548] sm:$0xff]
      %v470 = vld [vmem:[#allocation6 + $0x550] sm:$0xff]
      %v471 = vld [vmem:[#allocation6 + $0x558] sm:$0xff]
      %v472 = vld [vmem:[#allocation6 + $0x560] sm:$0xff]
      %v473 = vld [vmem:[#allocation6 + $0x568] sm:$0xff]
      %v474 = vld [vmem:[#allocation6 + $0x570] sm:$0xff]
      %v475 = vld [vmem:[#allocation6 + $0x578] sm:$0xff]
      %v476 = vld [vmem:[#allocation6 + $0x580] sm:$0xff]
      %v477 = vld [vmem:[#allocation6 + $0x588] sm:$0xff]
      %v478 = vld [vmem:[#allocation6 + $0x590] sm:$0xff]
      %v479 = vld [vmem:[#allocation6 + $0x598] sm:$0xff]
      %v480 = vld [vmem:[#allocation6 + $0x5a0] sm:$0xff]
      %v481 = vld [vmem:[#allocation6 + $0x5a8] sm:$0xff]
      %v482 = vld [vmem:[#allocation6 + $0x5b0] sm:$0xff]
      %v483 = vld [vmem:[#allocation6 + $0x5b8] sm:$0xff]
      %v484 = vld [vmem:[#allocation6 + $0x5c0] sm:$0xff]
      %v485 = vld [vmem:[#allocation6 + $0x5c8] sm:$0xff]
      %v486 = vld [vmem:[#allocation6 + $0x5d0] sm:$0xff]
      %v487 = vld [vmem:[#allocation6 + $0x5d8] sm:$0xff]
      %v488 = vld [vmem:[#allocation6 + $0x5e0] sm:$0xff]
      %v489 = vld [vmem:[#allocation6 + $0x5e8] sm:$0xff]
      %v490 = vld [vmem:[#allocation6 + $0x5f0] sm:$0xff]
      %v491 = vld [vmem:[#allocation6 + $0x5f8] sm:$0xff]
      %v492 = vld [vmem:[#allocation6 + $0x600] sm:$0xff]
      %v493 = vld [vmem:[#allocation6 + $0x608] sm:$0xff]
      %v494 = vld [vmem:[#allocation6 + $0x610] sm:$0xff]
      %v495 = vld [vmem:[#allocation6 + $0x618] sm:$0xff]
      %v496 = vld [vmem:[#allocation6 + $0x620] sm:$0xff]
      %v497 = vld [vmem:[#allocation6 + $0x628] sm:$0xff]
      %v498 = vld [vmem:[#allocation6 + $0x630] sm:$0xff]
      %v499 = vld [vmem:[#allocation6 + $0x638] sm:$0xff]
      %v500 = vld [vmem:[#allocation6 + $0x640] sm:$0xff]
      %v501 = vld [vmem:[#allocation6 + $0x648] sm:$0xff]
      %v502 = vld [vmem:[#allocation6 + $0x650] sm:$0xff]
      %v503 = vld [vmem:[#allocation6 + $0x658] sm:$0xff]
      %v504 = vld [vmem:[#allocation6 + $0x660] sm:$0xff]
      %v505 = vld [vmem:[#allocation6 + $0x668] sm:$0xff]
      %v506 = vld [vmem:[#allocation6 + $0x670] sm:$0xff]
      %v507 = vld [vmem:[#allocation6 + $0x678] sm:$0xff]
      %v508 = vld [vmem:[#allocation6 + $0x680] sm:$0xff]
      %v509 = vld [vmem:[#allocation6 + $0x688] sm:$0xff]
      %v510 = vld [vmem:[#allocation6 + $0x690] sm:$0xff]
      %v511 = vld [vmem:[#allocation6 + $0x698] sm:$0xff]
      %v512 = vld [vmem:[#allocation6 + $0x6a0] sm:$0xff]
      %v513 = vld [vmem:[#allocation6 + $0x6a8] sm:$0xff]
      %v514 = vld [vmem:[#allocation6 + $0x6b0] sm:$0xff]
      %v515 = vld [vmem:[#allocation6 + $0x6b8] sm:$0xff]
      %v516 = vld [vmem:[#allocation6 + $0x6c0] sm:$0xff]
      %v517 = vld [vmem:[#allocation6 + $0x6c8] sm:$0xff]
      %v518 = vld [vmem:[#allocation6 + $0x6d0] sm:$0xff]
      %v519 = vld [vmem:[#allocation6 + $0x6d8] sm:$0xff]
      %v520 = vld [vmem:[#allocation6 + $0x6e0] sm:$0xff]
      %v521 = vld [vmem:[#allocation6 + $0x6e8] sm:$0xff]
      %v522 = vld [vmem:[#allocation6 + $0x6f0] sm:$0xff]
      %v523 = vld [vmem:[#allocation6 + $0x6f8] sm:$0xff]
      %v524 = vld [vmem:[#allocation6 + $0x700] sm:$0xff]
      %v525 = vld [vmem:[#allocation6 + $0x708] sm:$0xff]
      %v526 = vld [vmem:[#allocation6 + $0x710] sm:$0xff]
      %v527 = vld [vmem:[#allocation6 + $0x718] sm:$0xff]
      %v528 = vld [vmem:[#allocation6 + $0x720] sm:$0xff]
      %v529 = vld [vmem:[#allocation6 + $0x728] sm:$0xff]
      %v530 = vld [vmem:[#allocation6 + $0x730] sm:$0xff]
      %v531 = vld [vmem:[#allocation6 + $0x738] sm:$0xff]
      %v532 = vld [vmem:[#allocation6 + $0x740] sm:$0xff]
      %v533 = vld [vmem:[#allocation6 + $0x748] sm:$0xff]
      %v534 = vld [vmem:[#allocation6 + $0x750] sm:$0xff]
      %v535 = vld [vmem:[#allocation6 + $0x758] sm:$0xff]
      %v536 = vld [vmem:[#allocation6 + $0x760] sm:$0xff]
      %v537 = vld [vmem:[#allocation6 + $0x768] sm:$0xff]
      %v538 = vld [vmem:[#allocation6 + $0x770] sm:$0xff]
      %v539 = vld [vmem:[#allocation6 + $0x778] sm:$0xff]
      %v540 = vld [vmem:[#allocation6 + $0x780] sm:$0xff]
      %v541 = vld [vmem:[#allocation6 + $0x788] sm:$0xff]
      %v542 = vld [vmem:[#allocation6 + $0x790] sm:$0xff]
      %v543 = vld [vmem:[#allocation6 + $0x798] sm:$0xff]
      %v544 = vld [vmem:[#allocation6 + $0x7a0] sm:$0xff]
      %v545 = vld [vmem:[#allocation6 + $0x7a8] sm:$0xff]
      %v546 = vld [vmem:[#allocation6 + $0x7b0] sm:$0xff]
      %v547 = vld [vmem:[#allocation6 + $0x7b8] sm:$0xff]
      %v548 = vld [vmem:[#allocation6 + $0x7c0] sm:$0xff]
      %v549 = vld [vmem:[#allocation6 + $0x7c8] sm:$0xff]
      %v550 = vld [vmem:[#allocation6 + $0x7d0] sm:$0xff]
      %v551 = vld [vmem:[#allocation6 + $0x7d8] sm:$0xff]
      %v552 = vld [vmem:[#allocation6 + $0x7e0] sm:$0xff]
      %v553 = vld [vmem:[#allocation6 + $0x7e8] sm:$0xff]
      %v554 = vld [vmem:[#allocation6 + $0x7f0] sm:$0xff]
      %v555 = vld [vmem:[#allocation6 + $0x7f8] sm:$0xff]
      %v556 = vld [vmem:[#allocation6 + $0x800] sm:$0xff]
      %v557 = vld [vmem:[#allocation6 + $0x808] sm:$0xff]
      %v558 = vld [vmem:[#allocation6 + $0x810] sm:$0xff]
      %v559 = vld [vmem:[#allocation6 + $0x818] sm:$0xff]
      %v560 = vld [vmem:[#allocation6 + $0x820] sm:$0xff]
      %v561 = vld [vmem:[#allocation6 + $0x828] sm:$0xff]
      %v562 = vld [vmem:[#allocation6 + $0x830] sm:$0xff]
      %v563 = vld [vmem:[#allocation6 + $0x838] sm:$0xff]
      %v564 = vld [vmem:[#allocation6 + $0x840] sm:$0xff]
      %v565 = vld [vmem:[#allocation6 + $0x848] sm:$0xff]
      %v566 = vld [vmem:[#allocation6 + $0x850] sm:$0xff]
      %v567 = vld [vmem:[#allocation6 + $0x858] sm:$0xff]
      %v568 = vld [vmem:[#allocation6 + $0x860] sm:$0xff]
      %v569 = vld [vmem:[#allocation6 + $0x868] sm:$0xff]
      %v570 = vld [vmem:[#allocation6 + $0x870] sm:$0xff]
      %v571 = vld [vmem:[#allocation6 + $0x878] sm:$0xff]
      %v572 = vld [vmem:[#allocation6 + $0x880] sm:$0xff]
      %v573 = vld [vmem:[#allocation6 + $0x888] sm:$0xff]
      %v574 = vld [vmem:[#allocation6 + $0x890] sm:$0xff]
      %v575 = vld [vmem:[#allocation6 + $0x898] sm:$0xff]
      %v576 = vld [vmem:[#allocation6 + $0x8a0] sm:$0xff]
      %v577 = vld [vmem:[#allocation6 + $0x8a8] sm:$0xff]
      %v578 = vld [vmem:[#allocation6 + $0x8b0] sm:$0xff]
      %v579 = vld [vmem:[#allocation6 + $0x8b8] sm:$0xff]
      %v580 = vld [vmem:[#allocation6 + $0x8c0] sm:$0xff]
      %v581 = vld [vmem:[#allocation6 + $0x8c8] sm:$0xff]
      %v582 = vld [vmem:[#allocation6 + $0x8d0] sm:$0xff]
      %v583 = vld [vmem:[#allocation6 + $0x8d8] sm:$0xff]
      %v584 = vld [vmem:[#allocation6 + $0x8e0] sm:$0xff]
      %v585 = vld [vmem:[#allocation6 + $0x8e8] sm:$0xff]
      %v586 = vld [vmem:[#allocation6 + $0x8f0] sm:$0xff]
      %v587 = vld [vmem:[#allocation6 + $0x8f8] sm:$0xff]
      %v588 = vld [vmem:[#allocation6 + $0x900] sm:$0xff]
      %v589 = vld [vmem:[#allocation6 + $0x908] sm:$0xff]
      %v590 = vld [vmem:[#allocation6 + $0x910] sm:$0xff]
      %v591 = vld [vmem:[#allocation6 + $0x918] sm:$0xff]
      %v592 = vld [vmem:[#allocation6 + $0x920] sm:$0xff]
      %v593 = vld [vmem:[#allocation6 + $0x928] sm:$0xff]
      %v594 = vld [vmem:[#allocation6 + $0x930] sm:$0xff]
      %v595 = vld [vmem:[#allocation6 + $0x938] sm:$0xff]
      %v596 = vld [vmem:[#allocation6 + $0x940] sm:$0xff]
      %v597 = vld [vmem:[#allocation6 + $0x948] sm:$0xff]
      %v598 = vld [vmem:[#allocation6 + $0x950] sm:$0xff]
      %v599 = vld [vmem:[#allocation6 + $0x958] sm:$0xff]
      %v600 = vld [vmem:[#allocation6 + $0x960] sm:$0xff]
      %v601 = vld [vmem:[#allocation6 + $0x968] sm:$0xff]
      %v602 = vld [vmem:[#allocation6 + $0x970] sm:$0xff]
      %v603 = vld [vmem:[#allocation6 + $0x978] sm:$0xff]
      %v604 = vld [vmem:[#allocation6 + $0x980] sm:$0xff]
      %v605 = vld [vmem:[#allocation6 + $0x988] sm:$0xff]
      %v606 = vld [vmem:[#allocation6 + $0x990] sm:$0xff]
      %v607 = vld [vmem:[#allocation6 + $0x998] sm:$0xff]
      %v608 = vld [vmem:[#allocation6 + $0x9a0] sm:$0xff]
      %v609 = vld [vmem:[#allocation6 + $0x9a8] sm:$0xff]
      %v610 = vld [vmem:[#allocation6 + $0x9b0] sm:$0xff]
      %v611 = vld [vmem:[#allocation6 + $0x9b8] sm:$0xff]
      %v612 = vld [vmem:[#allocation6 + $0x9c0] sm:$0xff]
      %v613 = vld [vmem:[#allocation6 + $0x9c8] sm:$0xff]
      %v614 = vld [vmem:[#allocation6 + $0x9d0] sm:$0xff]
      %v615 = vld [vmem:[#allocation6 + $0x9d8] sm:$0xff]
      %v616 = vld [vmem:[#allocation6 + $0x9e0] sm:$0xff]
      %v617 = vld [vmem:[#allocation6 + $0x9e8] sm:$0xff]
      %v618 = vld [vmem:[#allocation6 + $0x9f0] sm:$0xff]
      %v619 = vld [vmem:[#allocation6 + $0x9f8] sm:$0xff]
      %v620 = vld [vmem:[#allocation6 + $0xa00] sm:$0xff]
      %v621 = vld [vmem:[#allocation6 + $0xa08] sm:$0xff]
      %v622 = vld [vmem:[#allocation6 + $0xa10] sm:$0xff]
      %v623 = vld [vmem:[#allocation6 + $0xa18] sm:$0xff]
      %v624 = vld [vmem:[#allocation6 + $0xa20] sm:$0xff]
      %v625 = vld [vmem:[#allocation6 + $0xa28] sm:$0xff]
      %v626 = vld [vmem:[#allocation6 + $0xa30] sm:$0xff]
      %v627 = vld [vmem:[#allocation6 + $0xa38] sm:$0xff]
      %v628 = vld [vmem:[#allocation6 + $0xa40] sm:$0xff]
      %v629 = vld [vmem:[#allocation6 + $0xa48] sm:$0xff]
      %v630 = vld [vmem:[#allocation6 + $0xa50] sm:$0xff]
      %v631 = vld [vmem:[#allocation6 + $0xa58] sm:$0xff]
      %v632 = vld [vmem:[#allocation6 + $0xa60] sm:$0xff]
      %v633 = vld [vmem:[#allocation6 + $0xa68] sm:$0xff]
      %v634 = vld [vmem:[#allocation6 + $0xa70] sm:$0xff]
      %v635 = vld [vmem:[#allocation6 + $0xa78] sm:$0xff]
      %v636 = vld [vmem:[#allocation6 + $0xa80] sm:$0xff]
      %v637 = vld [vmem:[#allocation6 + $0xa88] sm:$0xff]
      %v638 = vld [vmem:[#allocation6 + $0xa90] sm:$0xff]
      %v639 = vld [vmem:[#allocation6 + $0xa98] sm:$0xff]
      %v640 = vld [vmem:[#allocation6 + $0xaa0] sm:$0xff]
      %v641 = vld [vmem:[#allocation6 + $0xaa8] sm:$0xff]
      %v642 = vld [vmem:[#allocation6 + $0xab0] sm:$0xff]
      %v643 = vld [vmem:[#allocation6 + $0xab8] sm:$0xff]
      %v644 = vld [vmem:[#allocation6 + $0xac0] sm:$0xff]
      %v645 = vld [vmem:[#allocation6 + $0xac8] sm:$0xff]
      %v646 = vld [vmem:[#allocation6 + $0xad0] sm:$0xff]
      %v647 = vld [vmem:[#allocation6 + $0xad8] sm:$0xff]
      %v648 = vld [vmem:[#allocation6 + $0xae0] sm:$0xff]
      %v649 = vld [vmem:[#allocation6 + $0xae8] sm:$0xff]
      %v650 = vld [vmem:[#allocation6 + $0xaf0] sm:$0xff]
      %v651 = vld [vmem:[#allocation6 + $0xaf8] sm:$0xff]
      %v652 = vld [vmem:[#allocation6 + $0xb00] sm:$0xff]
      %v653 = vld [vmem:[#allocation6 + $0xb08] sm:$0xff]
      %v654 = vld [vmem:[#allocation6 + $0xb10] sm:$0xff]
      %v655 = vld [vmem:[#allocation6 + $0xb18] sm:$0xff]
      %v656 = vld [vmem:[#allocation6 + $0xb20] sm:$0xff]
      %v657 = vld [vmem:[#allocation6 + $0xb28] sm:$0xff]
      %v658 = vld [vmem:[#allocation6 + $0xb30] sm:$0xff]
      %v659 = vld [vmem:[#allocation6 + $0xb38] sm:$0xff]
      %v660 = vld [vmem:[#allocation6 + $0xb40] sm:$0xff]
      %v661 = vld [vmem:[#allocation6 + $0xb48] sm:$0xff]
      %v662 = vld [vmem:[#allocation6 + $0xb50] sm:$0xff]
      %v663 = vld [vmem:[#allocation6 + $0xb58] sm:$0xff]
      %v664 = vld [vmem:[#allocation6 + $0xb60] sm:$0xff]
      %v665 = vld [vmem:[#allocation6 + $0xb68] sm:$0xff]
      %v666 = vld [vmem:[#allocation6 + $0xb70] sm:$0xff]
      %v667 = vld [vmem:[#allocation6 + $0xb78] sm:$0xff]
      %v668 = vld [vmem:[#allocation6 + $0xb80] sm:$0xff]
      %v669 = vld [vmem:[#allocation6 + $0xb88] sm:$0xff]
      %v670 = vld [vmem:[#allocation6 + $0xb90] sm:$0xff]
      %v671 = vld [vmem:[#allocation6 + $0xb98] sm:$0xff]
      %v672 = vld [vmem:[#allocation6 + $0xba0] sm:$0xff]
      %v673 = vld [vmem:[#allocation6 + $0xba8] sm:$0xff]
      %v674 = vld [vmem:[#allocation6 + $0xbb0] sm:$0xff]
      %v675 = vld [vmem:[#allocation6 + $0xbb8] sm:$0xff]
      %v676 = vld [vmem:[#allocation6 + $0xbc0] sm:$0xff]
      %v677 = vld [vmem:[#allocation6 + $0xbc8] sm:$0xff]
      %v678 = vld [vmem:[#allocation6 + $0xbd0] sm:$0xff]
      %v679 = vld [vmem:[#allocation6 + $0xbd8] sm:$0xff]
      %v680 = vld [vmem:[#allocation6 + $0xbe0] sm:$0xff]
      %v681 = vld [vmem:[#allocation6 + $0xbe8] sm:$0xff]
      %v682 = vld [vmem:[#allocation6 + $0xbf0] sm:$0xff]
      %v683 = vld [vmem:[#allocation6 + $0xbf8] sm:$0xff]
      %v684 = vld [vmem:[#allocation6 + $0xc00] sm:$0xff]
      %v685 = vld [vmem:[#allocation6 + $0xc08] sm:$0xff]
      %v686 = vld [vmem:[#allocation6 + $0xc10] sm:$0xff]
      %v687 = vld [vmem:[#allocation6 + $0xc18] sm:$0xff]
      %v688 = vld [vmem:[#allocation6 + $0xc20] sm:$0xff]
      %v689 = vld [vmem:[#allocation6 + $0xc28] sm:$0xff]
      %v690 = vld [vmem:[#allocation6 + $0xc30] sm:$0xff]
      %v691 = vld [vmem:[#allocation6 + $0xc38] sm:$0xff]
      %v692 = vld [vmem:[#allocation6 + $0xc40] sm:$0xff]
      %v693 = vld [vmem:[#allocation6 + $0xc48] sm:$0xff]
      %v694 = vld [vmem:[#allocation6 + $0xc50] sm:$0xff]
      %v695 = vld [vmem:[#allocation6 + $0xc58] sm:$0xff]
      %v696 = vld [vmem:[#allocation6 + $0xc60] sm:$0xff]
      %v697 = vld [vmem:[#allocation6 + $0xc68] sm:$0xff]
      %v698 = vld [vmem:[#allocation6 + $0xc70] sm:$0xff]
      %v699 = vld [vmem:[#allocation6 + $0xc78] sm:$0xff]
      %v700 = vld [vmem:[#allocation6 + $0xc80] sm:$0xff]
      %v701 = vld [vmem:[#allocation6 + $0xc88] sm:$0xff]
      %v702 = vld [vmem:[#allocation6 + $0xc90] sm:$0xff]
      %v703 = vld [vmem:[#allocation6 + $0xc98] sm:$0xff]
      %v704 = vld [vmem:[#allocation6 + $0xca0] sm:$0xff]
      %v705 = vld [vmem:[#allocation6 + $0xca8] sm:$0xff]
      %v706 = vld [vmem:[#allocation6 + $0xcb0] sm:$0xff]
      %v707 = vld [vmem:[#allocation6 + $0xcb8] sm:$0xff]
      %v708 = vld [vmem:[#allocation6 + $0xcc0] sm:$0xff]
      %v709 = vld [vmem:[#allocation6 + $0xcc8] sm:$0xff]
      %v710 = vld [vmem:[#allocation6 + $0xcd0] sm:$0xff]
      %v711 = vld [vmem:[#allocation6 + $0xcd8] sm:$0xff]
      %v712 = vld [vmem:[#allocation6 + $0xce0] sm:$0xff]
      %v713 = vld [vmem:[#allocation6 + $0xce8] sm:$0xff]
      %v714 = vld [vmem:[#allocation6 + $0xcf0] sm:$0xff]
      %v715 = vld [vmem:[#allocation6 + $0xcf8] sm:$0xff]
      %v716 = vld [vmem:[#allocation6 + $0xd00] sm:$0xff]
      %v717 = vld [vmem:[#allocation6 + $0xd08] sm:$0xff]
      %v718 = vld [vmem:[#allocation6 + $0xd10] sm:$0xff]
      %v719 = vld [vmem:[#allocation6 + $0xd18] sm:$0xff]
      %v720 = vld [vmem:[#allocation6 + $0xd20] sm:$0xff]
      %v721 = vld [vmem:[#allocation6 + $0xd28] sm:$0xff]
      %v722 = vld [vmem:[#allocation6 + $0xd30] sm:$0xff]
      %v723 = vld [vmem:[#allocation6 + $0xd38] sm:$0xff]
      %v724 = vld [vmem:[#allocation6 + $0xd40] sm:$0xff]
      %v725 = vld [vmem:[#allocation6 + $0xd48] sm:$0xff]
      %v726 = vld [vmem:[#allocation6 + $0xd50] sm:$0xff]
      %v727 = vld [vmem:[#allocation6 + $0xd58] sm:$0xff]
      %v728 = vld [vmem:[#allocation6 + $0xd60] sm:$0xff]
      %v729 = vld [vmem:[#allocation6 + $0xd68] sm:$0xff]
      %v730 = vld [vmem:[#allocation6 + $0xd70] sm:$0xff]
      %v731 = vld [vmem:[#allocation6 + $0xd78] sm:$0xff]
      %v732 = vld [vmem:[#allocation6 + $0xd80] sm:$0xff]
      %v733 = vld [vmem:[#allocation6 + $0xd88] sm:$0xff]
      %v734 = vld [vmem:[#allocation6 + $0xd90] sm:$0xff]
      %v735 = vld [vmem:[#allocation6 + $0xd98] sm:$0xff]
      %v736 = vld [vmem:[#allocation6 + $0xda0] sm:$0xff]
      %v737 = vld [vmem:[#allocation6 + $0xda8] sm:$0xff]
      %v738 = vld [vmem:[#allocation6 + $0xdb0] sm:$0xff]
      %v739 = vld [vmem:[#allocation6 + $0xdb8] sm:$0xff]
      %v740 = vld [vmem:[#allocation6 + $0xdc0] sm:$0xff]
      %v741 = vld [vmem:[#allocation6 + $0xdc8] sm:$0xff]
      %v742 = vld [vmem:[#allocation6 + $0xdd0] sm:$0xff]
      %v743 = vld [vmem:[#allocation6 + $0xdd8] sm:$0xff]
      %v744 = vld [vmem:[#allocation6 + $0xde0] sm:$0xff]
      %v745 = vld [vmem:[#allocation6 + $0xde8] sm:$0xff]
      %v746 = vld [vmem:[#allocation6 + $0xdf0] sm:$0xff]
      %v747 = vld [vmem:[#allocation6 + $0xdf8] sm:$0xff]
      %v748 = vld [vmem:[#allocation6 + $0xe00] sm:$0xff]
      %v749 = vld [vmem:[#allocation6 + $0xe08] sm:$0xff]
      %v750 = vld [vmem:[#allocation6 + $0xe10] sm:$0xff]
      %v751 = vld [vmem:[#allocation6 + $0xe18] sm:$0xff]
      %v752 = vld [vmem:[#allocation6 + $0xe20] sm:$0xff]
      %v753 = vld [vmem:[#allocation6 + $0xe28] sm:$0xff]
      %v754 = vld [vmem:[#allocation6 + $0xe30] sm:$0xff]
      %v755 = vld [vmem:[#allocation6 + $0xe38] sm:$0xff]
      %v756 = vld [vmem:[#allocation6 + $0xe40] sm:$0xff]
      %v757 = vld [vmem:[#allocation6 + $0xe48] sm:$0xff]
      %v758 = vld [vmem:[#allocation6 + $0xe50] sm:$0xff]
      %v759 = vld [vmem:[#allocation6 + $0xe58] sm:$0xff]
      %v760 = vld [vmem:[#allocation6 + $0xe60] sm:$0xff]
      %v761 = vld [vmem:[#allocation6 + $0xe68] sm:$0xff]
      %v762 = vld [vmem:[#allocation6 + $0xe70] sm:$0xff]
      %v763 = vld [vmem:[#allocation6 + $0xe78] sm:$0xff]
      %v764 = vld [vmem:[#allocation6 + $0xe80] sm:$0xff]
      %v765 = vld [vmem:[#allocation6 + $0xe88] sm:$0xff]
      %v766 = vld [vmem:[#allocation6 + $0xe90] sm:$0xff]
      %v767 = vld [vmem:[#allocation6 + $0xe98] sm:$0xff]
      %v768 = vld [vmem:[#allocation6 + $0xea0] sm:$0xff]
      %v769 = vld [vmem:[#allocation6 + $0xea8] sm:$0xff]
      %v770 = vld [vmem:[#allocation6 + $0xeb0] sm:$0xff]
      %v771 = vld [vmem:[#allocation6 + $0xeb8] sm:$0xff]
      %v772 = vld [vmem:[#allocation6 + $0xec0] sm:$0xff]
      %v773 = vld [vmem:[#allocation6 + $0xec8] sm:$0xff]
      %v774 = vld [vmem:[#allocation6 + $0xed0] sm:$0xff]
      %v775 = vld [vmem:[#allocation6 + $0xed8] sm:$0xff]
      %v776 = vld [vmem:[#allocation6 + $0xee0] sm:$0xff]
      %v777 = vld [vmem:[#allocation6 + $0xee8] sm:$0xff]
      %v778 = vld [vmem:[#allocation6 + $0xef0] sm:$0xff]
      %v779 = vld [vmem:[#allocation6 + $0xef8] sm:$0xff]
      %v780 = vld [vmem:[#allocation8] sm:$0xff]
      %v781 = vld [vmem:[#allocation8 + $0x8] sm:$0x3]
      %v784 = vlaneseq
      %v785 = vshrl.u32 %v784, 7
      %v786 = vsub.s32 0, %v785
      %v787 = vrot.slane %v780, %v786
      %v788 = vlaneseq
      %v789 = vshrl.u32 %v788, 7
      %v790 = vsub.s32 1, %v789
      %v791 = vrot.slane %v780, %v790
      %v792 = vlaneseq
      %v793 = vshrl.u32 %v792, 7
      %v794 = vsub.s32 2, %v793
      %v795 = vrot.slane %v780, %v794
      %v796 = vlaneseq
      %v797 = vshrl.u32 %v796, 7
      %v798 = vsub.s32 3, %v797
      %v799 = vrot.slane %v780, %v798
      %v800 = vlaneseq
      %v801 = vshrl.u32 %v800, 7
      %v802 = vsub.s32 4, %v801
      %v803 = vrot.slane %v780, %v802
      %v804 = vlaneseq
      %v805 = vshrl.u32 %v804, 7
      %v806 = vsub.s32 5, %v805
      %v807 = vrot.slane %v780, %v806
      %v808 = vlaneseq
      %v809 = vshrl.u32 %v808, 7
      %v810 = vsub.s32 6, %v809
      %v811 = vrot.slane %v780, %v810
      %v812 = vlaneseq
      %v813 = vshrl.u32 %v812, 7
      %v814 = vsub.s32 7, %v813
      %v815 = vrot.slane %v780, %v814
      %v816 = vlaneseq
      %v817 = vshrl.u32 %v816, 7
      %v818 = vsub.s32 0, %v817
      %v819 = vrot.slane %v781, %v818
      %v820 = vlaneseq
      %v821 = vshrl.u32 %v820, 7
      %v822 = vsub.s32 1, %v821
      %v823 = vrot.slane %v781, %v822
      %v846 = vunpack.c.l.b16 %v288
      %v847 = vunpack.c.l.b16 %v289
      %v848 = vunpack.c.l.b16 %v290
      %v849 = vunpack.c.l.b16 %v291
      %v850 = vunpack.c.l.b16 %v292
      %v851 = vunpack.c.l.b16 %v293
      %v852 = vunpack.c.l.b16 %v294
      %v853 = vunpack.c.l.b16 %v295
      %v854 = vunpack.c.l.b16 %v296
      %v855 = vunpack.c.l.b16 %v297
      %v856 = vunpack.c.l.b16 %v298
      %v857 = vunpack.c.l.b16 %v299
      %vm858 = vcmask 1041409
      %v859 = vsel %vm858, %v852, %v846
      %v860 = vsel %vm858, %v853, %v847
      %v861 = vsel %vm858, %v854, %v848
      %v862 = vsel %vm858, %v855, %v849
      %v863 = vsel %vm858, %v856, %v850
      %v864 = vsel %vm858, %v857, %v851
      %v865 = vpack.c.b16 %v859, %v859
      %v866 = vpack.c.b16 %v860, %v860
      %v867 = vpack.c.b16 %v861, %v861
      %v868 = vpack.c.b16 %v862, %v862
      %v869 = vpack.c.b16 %v863, %v863
      %v870 = vpack.c.b16 %v864, %v864
      %v1357 = vunpack.c.l.b16 %v300
      %v1358 = vunpack.c.h.b16 %v300
      %v1359 = vunpack.c.l.b16 %v301
      %v1360 = vunpack.c.h.b16 %v301
      %v1361 = vunpack.c.l.b16 %v302
      %v1362 = vunpack.c.h.b16 %v302
      %v1363 = vunpack.c.l.b16 %v303
      %v1364 = vunpack.c.h.b16 %v303
      %v1365 = vunpack.c.l.b16 %v304
      %v1366 = vunpack.c.h.b16 %v304
      %v1367 = vunpack.c.l.b16 %v305
      %v1368 = vunpack.c.h.b16 %v305
      %v1369 = vunpack.c.l.b16 %v306
      %v1370 = vunpack.c.h.b16 %v306
      %v1371 = vunpack.c.l.b16 %v307
      %v1372 = vunpack.c.h.b16 %v307
      %v1373 = vunpack.c.l.b16 %v308
      %v1374 = vunpack.c.h.b16 %v308
      %v1375 = vunpack.c.l.b16 %v309
      %v1376 = vunpack.c.h.b16 %v309
      %v1377 = vunpack.c.l.b16 %v310
      %v1378 = vunpack.c.h.b16 %v310
      %v1379 = vunpack.c.l.b16 %v311
      %v1380 = vunpack.c.h.b16 %v311
      %v1381 = vunpack.c.l.b16 %v312
      %v1382 = vunpack.c.h.b16 %v312
      %v1383 = vunpack.c.l.b16 %v313
      %v1384 = vunpack.c.h.b16 %v313
      %v1385 = vunpack.c.l.b16 %v314
      %v1386 = vunpack.c.h.b16 %v314
      %v1387 = vunpack.c.l.b16 %v315
      %v1388 = vunpack.c.h.b16 %v315
      %v1389 = vunpack.c.l.b16 %v316
      %v1390 = vunpack.c.h.b16 %v316
      %v1391 = vunpack.c.l.b16 %v317
      %v1392 = vunpack.c.h.b16 %v317
      %v1393 = vunpack.c.l.b16 %v318
      %v1394 = vunpack.c.h.b16 %v318
      %v1395 = vunpack.c.l.b16 %v319
      %v1396 = vunpack.c.h.b16 %v319
      %v1397 = vunpack.c.l.b16 %v320
      %v1398 = vunpack.c.h.b16 %v320
      %v1399 = vunpack.c.l.b16 %v321
      %v1400 = vunpack.c.h.b16 %v321
      %v1401 = vunpack.c.l.b16 %v322
      %v1402 = vunpack.c.h.b16 %v322
      %v1403 = vunpack.c.l.b16 %v323
      %v1404 = vunpack.c.h.b16 %v323
      %v1405 = vunpack.c.l.b16 %v324
      %v1406 = vunpack.c.h.b16 %v324
      %v1407 = vunpack.c.l.b16 %v325
      %v1408 = vunpack.c.h.b16 %v325
      %v1409 = vunpack.c.l.b16 %v326
      %v1410 = vunpack.c.h.b16 %v326
      %v1411 = vunpack.c.l.b16 %v327
      %v1412 = vunpack.c.h.b16 %v327
      %v1413 = vunpack.c.l.b16 %v328
      %v1414 = vunpack.c.h.b16 %v328
      %v1415 = vunpack.c.l.b16 %v329
      %v1416 = vunpack.c.h.b16 %v329
      %v1417 = vunpack.c.l.b16 %v330
      %v1418 = vunpack.c.h.b16 %v330
      %v1419 = vunpack.c.l.b16 %v331
      %v1420 = vunpack.c.h.b16 %v331
      %v1421 = vunpack.c.l.b16 %v332
      %v1422 = vunpack.c.h.b16 %v332
      %v1423 = vunpack.c.l.b16 %v333
      %v1424 = vunpack.c.h.b16 %v333
      %v1425 = vunpack.c.l.b16 %v334
      %v1426 = vunpack.c.h.b16 %v334
      %v1427 = vunpack.c.l.b16 %v335
      %v1428 = vunpack.c.h.b16 %v335
      %v1429 = vunpack.c.l.b16 %v336
      %v1430 = vunpack.c.h.b16 %v336
      %v1431 = vunpack.c.l.b16 %v337
      %v1432 = vunpack.c.h.b16 %v337
      %v1433 = vunpack.c.l.b16 %v338
      %v1434 = vunpack.c.h.b16 %v338
      %v1435 = vunpack.c.l.b16 %v339
      %v1436 = vunpack.c.h.b16 %v339
      %v1437 = vunpack.c.l.b16 %v340
      %v1438 = vunpack.c.h.b16 %v340
      %v1439 = vunpack.c.l.b16 %v341
      %v1440 = vunpack.c.h.b16 %v341
      %v1441 = vunpack.c.l.b16 %v342
      %v1442 = vunpack.c.h.b16 %v342
      %v1443 = vunpack.c.l.b16 %v343
      %v1444 = vunpack.c.h.b16 %v343
      %v1445 = vunpack.c.l.b16 %v344
      %v1446 = vunpack.c.h.b16 %v344
      %v1447 = vunpack.c.l.b16 %v345
      %v1448 = vunpack.c.h.b16 %v345
      %v1449 = vunpack.c.l.b16 %v346
      %v1450 = vunpack.c.h.b16 %v346
      %v1451 = vunpack.c.l.b16 %v347
      %v1452 = vunpack.c.h.b16 %v347
      %v1453 = vunpack.c.l.b16 %v348
      %v1454 = vunpack.c.h.b16 %v348
      %v1455 = vunpack.c.l.b16 %v349
      %v1456 = vunpack.c.h.b16 %v349
      %v1457 = vunpack.c.l.b16 %v350
      %v1458 = vunpack.c.h.b16 %v350
      %v1459 = vunpack.c.l.b16 %v351
      %v1460 = vunpack.c.h.b16 %v351
      %v1461 = vunpack.c.l.b16 %v352
      %v1462 = vunpack.c.h.b16 %v352
      %v1463 = vunpack.c.l.b16 %v353
      %v1464 = vunpack.c.h.b16 %v353
      %v1465 = vunpack.c.l.b16 %v354
      %v1466 = vunpack.c.h.b16 %v354
      %v1467 = vunpack.c.l.b16 %v355
      %v1468 = vunpack.c.h.b16 %v355
      %v1469 = vunpack.c.l.b16 %v356
      %v1470 = vunpack.c.h.b16 %v356
      %v1471 = vunpack.c.l.b16 %v357
      %v1472 = vunpack.c.h.b16 %v357
      %v1473 = vunpack.c.l.b16 %v358
      %v1474 = vunpack.c.h.b16 %v358
      %v1475 = vunpack.c.l.b16 %v359
      %v1476 = vunpack.c.h.b16 %v359
      %v1477 = vunpack.c.l.b16 %v360
      %v1478 = vunpack.c.h.b16 %v360
      %v1479 = vunpack.c.l.b16 %v361
      %v1480 = vunpack.c.h.b16 %v361
      %v1481 = vunpack.c.l.b16 %v362
      %v1482 = vunpack.c.h.b16 %v362
      %v1483 = vunpack.c.l.b16 %v363
      %v1484 = vunpack.c.h.b16 %v363
      %v1485 = vunpack.c.l.b16 %v364
      %v1486 = vunpack.c.h.b16 %v364
      %v1487 = vunpack.c.l.b16 %v365
      %v1488 = vunpack.c.h.b16 %v365
      %v1489 = vunpack.c.l.b16 %v366
      %v1490 = vunpack.c.h.b16 %v366
      %v1491 = vunpack.c.l.b16 %v367
      %v1492 = vunpack.c.h.b16 %v367
      %v1493 = vunpack.c.l.b16 %v368
      %v1494 = vunpack.c.h.b16 %v368
      %v1495 = vunpack.c.l.b16 %v369
      %v1496 = vunpack.c.h.b16 %v369
      %v1497 = vunpack.c.l.b16 %v370
      %v1498 = vunpack.c.h.b16 %v370
      %v1499 = vunpack.c.l.b16 %v371
      %v1500 = vunpack.c.h.b16 %v371
      %v1501 = vunpack.c.l.b16 %v372
      %v1502 = vunpack.c.h.b16 %v372
      %v1503 = vunpack.c.l.b16 %v373
      %v1504 = vunpack.c.h.b16 %v373
      %v1505 = vunpack.c.l.b16 %v374
      %v1506 = vunpack.c.h.b16 %v374
      %v1507 = vunpack.c.l.b16 %v375
      %v1508 = vunpack.c.h.b16 %v375
      %v1509 = vunpack.c.l.b16 %v376
      %v1510 = vunpack.c.h.b16 %v376
      %v1511 = vunpack.c.l.b16 %v377
      %v1512 = vunpack.c.h.b16 %v377
      %v1513 = vunpack.c.l.b16 %v378
      %v1514 = vunpack.c.h.b16 %v378
      %v1515 = vunpack.c.l.b16 %v379
      %v1516 = vunpack.c.h.b16 %v379
      %v1517 = vunpack.c.l.b16 %v380
      %v1518 = vunpack.c.h.b16 %v380
      %v1519 = vunpack.c.l.b16 %v381
      %v1520 = vunpack.c.h.b16 %v381
      %v1521 = vunpack.c.l.b16 %v382
      %v1522 = vunpack.c.h.b16 %v382
      %v1523 = vunpack.c.l.b16 %v383
      %v1524 = vunpack.c.h.b16 %v383
      %v1525 = vunpack.c.l.b16 %v384
      %v1526 = vunpack.c.h.b16 %v384
      %v1527 = vunpack.c.l.b16 %v385
      %v1528 = vunpack.c.h.b16 %v385
      %v1529 = vunpack.c.l.b16 %v386
      %v1530 = vunpack.c.h.b16 %v386
      %v1531 = vunpack.c.l.b16 %v387
      %v1532 = vunpack.c.h.b16 %v387
      %v1533 = vunpack.c.l.b16 %v388
      %v1534 = vunpack.c.h.b16 %v388
      %v1535 = vunpack.c.l.b16 %v389
      %v1536 = vunpack.c.h.b16 %v389
      %v1537 = vunpack.c.l.b16 %v390
      %v1538 = vunpack.c.h.b16 %v390
      %v1539 = vunpack.c.l.b16 %v391
      %v1540 = vunpack.c.h.b16 %v391
      %v1541 = vunpack.c.l.b16 %v392
      %v1542 = vunpack.c.h.b16 %v392
      %v1543 = vunpack.c.l.b16 %v393
      %v1544 = vunpack.c.h.b16 %v393
      %v1545 = vunpack.c.l.b16 %v394
      %v1546 = vunpack.c.h.b16 %v394
      %v1547 = vunpack.c.l.b16 %v395
      %v1548 = vunpack.c.h.b16 %v395
      %v1549 = vunpack.c.l.b16 %v396
      %v1550 = vunpack.c.h.b16 %v396
      %v1551 = vunpack.c.l.b16 %v397
      %v1552 = vunpack.c.h.b16 %v397
      %v1553 = vunpack.c.l.b16 %v398
      %v1554 = vunpack.c.h.b16 %v398
      %v1555 = vunpack.c.l.b16 %v399
      %v1556 = vunpack.c.h.b16 %v399
      %v1557 = vunpack.c.l.b16 %v400
      %v1558 = vunpack.c.h.b16 %v400
      %v1559 = vunpack.c.l.b16 %v401
      %v1560 = vunpack.c.h.b16 %v401
      %v1561 = vunpack.c.l.b16 %v402
      %v1562 = vunpack.c.h.b16 %v402
      %v1563 = vunpack.c.l.b16 %v403
      %v1564 = vunpack.c.h.b16 %v403
      %v1565 = vunpack.c.l.b16 %v404
      %v1566 = vunpack.c.h.b16 %v404
      %v1567 = vunpack.c.l.b16 %v405
      %v1568 = vunpack.c.h.b16 %v405
      %v1569 = vunpack.c.l.b16 %v406
      %v1570 = vunpack.c.h.b16 %v406
      %v1571 = vunpack.c.l.b16 %v407
      %v1572 = vunpack.c.h.b16 %v407
      %v1573 = vunpack.c.l.b16 %v408
      %v1574 = vunpack.c.h.b16 %v408
      %v1575 = vunpack.c.l.b16 %v409
      %v1576 = vunpack.c.h.b16 %v409
      %v1577 = vunpack.c.l.b16 %v410
      %v1578 = vunpack.c.h.b16 %v410
      %v1579 = vunpack.c.l.b16 %v411
      %v1580 = vunpack.c.h.b16 %v411
      %v1581 = vunpack.c.l.b16 %v412
      %v1582 = vunpack.c.h.b16 %v412
      %v1583 = vunpack.c.l.b16 %v413
      %v1584 = vunpack.c.h.b16 %v413
      %v1585 = vunpack.c.l.b16 %v414
      %v1586 = vunpack.c.h.b16 %v414
      %v1587 = vunpack.c.l.b16 %v415
      %v1588 = vunpack.c.h.b16 %v415
      %v1589 = vunpack.c.l.b16 %v416
      %v1590 = vunpack.c.h.b16 %v416
      %v1591 = vunpack.c.l.b16 %v417
      %v1592 = vunpack.c.h.b16 %v417
      %v1593 = vunpack.c.l.b16 %v418
      %v1594 = vunpack.c.h.b16 %v418
      %v1595 = vunpack.c.l.b16 %v419
      %v1596 = vunpack.c.h.b16 %v419
      %v1597 = vunpack.c.l.b16 %v420
      %v1598 = vunpack.c.h.b16 %v420
      %v1599 = vunpack.c.l.b16 %v421
      %v1600 = vunpack.c.h.b16 %v421
      %v1601 = vunpack.c.l.b16 %v422
      %v1602 = vunpack.c.h.b16 %v422
      %v1603 = vunpack.c.l.b16 %v423
      %v1604 = vunpack.c.h.b16 %v423
      %v1605 = vunpack.c.l.b16 %v424
      %v1606 = vunpack.c.h.b16 %v424
      %v1607 = vunpack.c.l.b16 %v425
      %v1608 = vunpack.c.h.b16 %v425
      %v1609 = vunpack.c.l.b16 %v426
      %v1610 = vunpack.c.h.b16 %v426
      %v1611 = vunpack.c.l.b16 %v427
      %v1612 = vunpack.c.h.b16 %v427
      %v1613 = vunpack.c.l.b16 %v428
      %v1614 = vunpack.c.h.b16 %v428
      %v1615 = vunpack.c.l.b16 %v429
      %v1616 = vunpack.c.h.b16 %v429
      %v1617 = vunpack.c.l.b16 %v430
      %v1618 = vunpack.c.h.b16 %v430
      %v1619 = vunpack.c.l.b16 %v431
      %v1620 = vunpack.c.h.b16 %v431
      %v1621 = vunpack.c.l.b16 %v432
      %v1622 = vunpack.c.h.b16 %v432
      %v1623 = vunpack.c.l.b16 %v433
      %v1624 = vunpack.c.h.b16 %v433
      %v1625 = vunpack.c.l.b16 %v434
      %v1626 = vunpack.c.h.b16 %v434
      %v1627 = vunpack.c.l.b16 %v435
      %v1628 = vunpack.c.h.b16 %v435
      %v1629 = vunpack.c.l.b16 %v436
      %v1630 = vunpack.c.h.b16 %v436
      %v1631 = vunpack.c.l.b16 %v437
      %v1632 = vunpack.c.h.b16 %v437
      %v1633 = vunpack.c.l.b16 %v438
      %v1634 = vunpack.c.h.b16 %v438
      %v1635 = vunpack.c.l.b16 %v439
      %v1636 = vunpack.c.h.b16 %v439
      %v1637 = vunpack.c.l.b16 %v440
      %v1638 = vunpack.c.h.b16 %v440
      %v1639 = vunpack.c.l.b16 %v441
      %v1640 = vunpack.c.h.b16 %v441
      %v1641 = vunpack.c.l.b16 %v442
      %v1642 = vunpack.c.h.b16 %v442
      %v1643 = vunpack.c.l.b16 %v443
      %v1644 = vunpack.c.h.b16 %v443
      %v1645 = vunpack.c.l.b16 %v444
      %v1646 = vunpack.c.h.b16 %v444
      %v1647 = vunpack.c.l.b16 %v445
      %v1648 = vunpack.c.h.b16 %v445
      %v1649 = vunpack.c.l.b16 %v446
      %v1650 = vunpack.c.h.b16 %v446
      %v1651 = vunpack.c.l.b16 %v447
      %v1652 = vunpack.c.h.b16 %v447
      %v1653 = vunpack.c.l.b16 %v448
      %v1654 = vunpack.c.h.b16 %v448
      %v1655 = vunpack.c.l.b16 %v449
      %v1656 = vunpack.c.h.b16 %v449
      %v1657 = vunpack.c.l.b16 %v450
      %v1658 = vunpack.c.h.b16 %v450
      %v1659 = vunpack.c.l.b16 %v451
      %v1660 = vunpack.c.h.b16 %v451
      %v1661 = vunpack.c.l.b16 %v452
      %v1662 = vunpack.c.h.b16 %v452
      %v1663 = vunpack.c.l.b16 %v453
      %v1664 = vunpack.c.h.b16 %v453
      %v1665 = vunpack.c.l.b16 %v454
      %v1666 = vunpack.c.h.b16 %v454
      %v1667 = vunpack.c.l.b16 %v455
      %v1668 = vunpack.c.h.b16 %v455
      %v1669 = vunpack.c.l.b16 %v456
      %v1670 = vunpack.c.h.b16 %v456
      %v1671 = vunpack.c.l.b16 %v457
      %v1672 = vunpack.c.h.b16 %v457
      %v1673 = vunpack.c.l.b16 %v458
      %v1674 = vunpack.c.h.b16 %v458
      %v1675 = vunpack.c.l.b16 %v459
      %v1676 = vunpack.c.h.b16 %v459
      %v1677 = vunpack.c.l.b16 %v460
      %v1678 = vunpack.c.h.b16 %v460
      %v1679 = vunpack.c.l.b16 %v461
      %v1680 = vunpack.c.h.b16 %v461
      %v1681 = vunpack.c.l.b16 %v462
      %v1682 = vunpack.c.h.b16 %v462
      %v1683 = vunpack.c.l.b16 %v463
      %v1684 = vunpack.c.h.b16 %v463
      %v1685 = vunpack.c.l.b16 %v464
      %v1686 = vunpack.c.h.b16 %v464
      %v1687 = vunpack.c.l.b16 %v465
      %v1688 = vunpack.c.h.b16 %v465
      %v1689 = vunpack.c.l.b16 %v466
      %v1690 = vunpack.c.h.b16 %v466
      %v1691 = vunpack.c.l.b16 %v467
      %v1692 = vunpack.c.h.b16 %v467
      %v1693 = vunpack.c.l.b16 %v468
      %v1694 = vunpack.c.h.b16 %v468
      %v1695 = vunpack.c.l.b16 %v469
      %v1696 = vunpack.c.h.b16 %v469
      %v1697 = vunpack.c.l.b16 %v470
      %v1698 = vunpack.c.h.b16 %v470
      %v1699 = vunpack.c.l.b16 %v471
      %v1700 = vunpack.c.h.b16 %v471
      %v1701 = vunpack.c.l.b16 %v472
      %v1702 = vunpack.c.h.b16 %v472
      %v1703 = vunpack.c.l.b16 %v473
      %v1704 = vunpack.c.h.b16 %v473
      %v1705 = vunpack.c.l.b16 %v474
      %v1706 = vunpack.c.h.b16 %v474
      %v1707 = vunpack.c.l.b16 %v475
      %v1708 = vunpack.c.h.b16 %v475
      %v1709 = vunpack.c.l.b16 %v476
      %v1710 = vunpack.c.h.b16 %v476
      %v1711 = vunpack.c.l.b16 %v477
      %v1712 = vunpack.c.h.b16 %v477
      %v1713 = vunpack.c.l.b16 %v478
      %v1714 = vunpack.c.h.b16 %v478
      %v1715 = vunpack.c.l.b16 %v479
      %v1716 = vunpack.c.h.b16 %v479
      %v1717 = vunpack.c.l.b16 %v480
      %v1718 = vunpack.c.h.b16 %v480
      %v1719 = vunpack.c.l.b16 %v481
      %v1720 = vunpack.c.h.b16 %v481
      %v1721 = vunpack.c.l.b16 %v482
      %v1722 = vunpack.c.h.b16 %v482
      %v1723 = vunpack.c.l.b16 %v483
      %v1724 = vunpack.c.h.b16 %v483
      %v1725 = vunpack.c.l.b16 %v484
      %v1726 = vunpack.c.h.b16 %v484
      %v1727 = vunpack.c.l.b16 %v485
      %v1728 = vunpack.c.h.b16 %v485
      %v1729 = vunpack.c.l.b16 %v486
      %v1730 = vunpack.c.h.b16 %v486
      %v1731 = vunpack.c.l.b16 %v487
      %v1732 = vunpack.c.h.b16 %v487
      %v1733 = vunpack.c.l.b16 %v488
      %v1734 = vunpack.c.h.b16 %v488
      %v1735 = vunpack.c.l.b16 %v489
      %v1736 = vunpack.c.h.b16 %v489
      %v1737 = vunpack.c.l.b16 %v490
      %v1738 = vunpack.c.h.b16 %v490
      %v1739 = vunpack.c.l.b16 %v491
      %v1740 = vunpack.c.h.b16 %v491
      %v1741 = vunpack.c.l.b16 %v492
      %v1742 = vunpack.c.h.b16 %v492
      %v1743 = vunpack.c.l.b16 %v493
      %v1744 = vunpack.c.h.b16 %v493
      %v1745 = vunpack.c.l.b16 %v494
      %v1746 = vunpack.c.h.b16 %v494
      %v1747 = vunpack.c.l.b16 %v495
      %v1748 = vunpack.c.h.b16 %v495
      %v1749 = vunpack.c.l.b16 %v496
      %v1750 = vunpack.c.h.b16 %v496
      %v1751 = vunpack.c.l.b16 %v497
      %v1752 = vunpack.c.h.b16 %v497
      %v1753 = vunpack.c.l.b16 %v498
      %v1754 = vunpack.c.h.b16 %v498
      %v1755 = vunpack.c.l.b16 %v499
      %v1756 = vunpack.c.h.b16 %v499
      %v1757 = vunpack.c.l.b16 %v500
      %v1758 = vunpack.c.h.b16 %v500
      %v1759 = vunpack.c.l.b16 %v501
      %v1760 = vunpack.c.h.b16 %v501
      %v1761 = vunpack.c.l.b16 %v502
      %v1762 = vunpack.c.h.b16 %v502
      %v1763 = vunpack.c.l.b16 %v503
      %v1764 = vunpack.c.h.b16 %v503
      %v1765 = vunpack.c.l.b16 %v504
      %v1766 = vunpack.c.h.b16 %v504
      %v1767 = vunpack.c.l.b16 %v505
      %v1768 = vunpack.c.h.b16 %v505
      %v1769 = vunpack.c.l.b16 %v506
      %v1770 = vunpack.c.h.b16 %v506
      %v1771 = vunpack.c.l.b16 %v507
      %v1772 = vunpack.c.h.b16 %v507
      %v1773 = vunpack.c.l.b16 %v508
      %v1774 = vunpack.c.h.b16 %v508
      %v1775 = vunpack.c.l.b16 %v509
      %v1776 = vunpack.c.h.b16 %v509
      %v1777 = vunpack.c.l.b16 %v510
      %v1778 = vunpack.c.h.b16 %v510
      %v1779 = vunpack.c.l.b16 %v511
      %v1780 = vunpack.c.h.b16 %v511
      %v1781 = vunpack.c.l.b16 %v512
      %v1782 = vunpack.c.h.b16 %v512
      %v1783 = vunpack.c.l.b16 %v513
      %v1784 = vunpack.c.h.b16 %v513
      %v1785 = vunpack.c.l.b16 %v514
      %v1786 = vunpack.c.h.b16 %v514
      %v1787 = vunpack.c.l.b16 %v515
      %v1788 = vunpack.c.h.b16 %v515
      %v1789 = vunpack.c.l.b16 %v516
      %v1790 = vunpack.c.h.b16 %v516
      %v1791 = vunpack.c.l.b16 %v517
      %v1792 = vunpack.c.h.b16 %v517
      %v1793 = vunpack.c.l.b16 %v518
      %v1794 = vunpack.c.h.b16 %v518
      %v1795 = vunpack.c.l.b16 %v519
      %v1796 = vunpack.c.h.b16 %v519
      %v1797 = vunpack.c.l.b16 %v520
      %v1798 = vunpack.c.h.b16 %v520
      %v1799 = vunpack.c.l.b16 %v521
      %v1800 = vunpack.c.h.b16 %v521
      %v1801 = vunpack.c.l.b16 %v522
      %v1802 = vunpack.c.h.b16 %v522
      %v1803 = vunpack.c.l.b16 %v523
      %v1804 = vunpack.c.h.b16 %v523
      %v1805 = vunpack.c.l.b16 %v524
      %v1806 = vunpack.c.h.b16 %v524
      %v1807 = vunpack.c.l.b16 %v525
      %v1808 = vunpack.c.h.b16 %v525
      %v1809 = vunpack.c.l.b16 %v526
      %v1810 = vunpack.c.h.b16 %v526
      %v1811 = vunpack.c.l.b16 %v527
      %v1812 = vunpack.c.h.b16 %v527
      %v1813 = vunpack.c.l.b16 %v528
      %v1814 = vunpack.c.h.b16 %v528
      %v1815 = vunpack.c.l.b16 %v529
      %v1816 = vunpack.c.h.b16 %v529
      %v1817 = vunpack.c.l.b16 %v530
      %v1818 = vunpack.c.h.b16 %v530
      %v1819 = vunpack.c.l.b16 %v531
      %v1820 = vunpack.c.h.b16 %v531
      %v1821 = vunpack.c.l.b16 %v532
      %v1822 = vunpack.c.h.b16 %v532
      %v1823 = vunpack.c.l.b16 %v533
      %v1824 = vunpack.c.h.b16 %v533
      %v1825 = vunpack.c.l.b16 %v534
      %v1826 = vunpack.c.h.b16 %v534
      %v1827 = vunpack.c.l.b16 %v535
      %v1828 = vunpack.c.h.b16 %v535
      %v1829 = vunpack.c.l.b16 %v536
      %v1830 = vunpack.c.h.b16 %v536
      %v1831 = vunpack.c.l.b16 %v537
      %v1832 = vunpack.c.h.b16 %v537
      %v1833 = vunpack.c.l.b16 %v538
      %v1834 = vunpack.c.h.b16 %v538
      %v1835 = vunpack.c.l.b16 %v539
      %v1836 = vunpack.c.h.b16 %v539
      %v1837 = vunpack.c.l.b16 %v540
      %v1838 = vunpack.c.h.b16 %v540
      %v1839 = vunpack.c.l.b16 %v541
      %v1840 = vunpack.c.h.b16 %v541
      %v1841 = vunpack.c.l.b16 %v542
      %v1842 = vunpack.c.h.b16 %v542
      %v1843 = vunpack.c.l.b16 %v543
      %v1844 = vunpack.c.h.b16 %v543
      %v1845 = vunpack.c.l.b16 %v544
      %v1846 = vunpack.c.h.b16 %v544
      %v1847 = vunpack.c.l.b16 %v545
      %v1848 = vunpack.c.h.b16 %v545
      %v1849 = vunpack.c.l.b16 %v546
      %v1850 = vunpack.c.h.b16 %v546
      %v1851 = vunpack.c.l.b16 %v547
      %v1852 = vunpack.c.h.b16 %v547
      %v1853 = vunpack.c.l.b16 %v548
      %v1854 = vunpack.c.h.b16 %v548
      %v1855 = vunpack.c.l.b16 %v549
      %v1856 = vunpack.c.h.b16 %v549
      %v1857 = vunpack.c.l.b16 %v550
      %v1858 = vunpack.c.h.b16 %v550
      %v1859 = vunpack.c.l.b16 %v551
      %v1860 = vunpack.c.h.b16 %v551
      %v1861 = vunpack.c.l.b16 %v552
      %v1862 = vunpack.c.h.b16 %v552
      %v1863 = vunpack.c.l.b16 %v553
      %v1864 = vunpack.c.h.b16 %v553
      %v1865 = vunpack.c.l.b16 %v554
      %v1866 = vunpack.c.h.b16 %v554
      %v1867 = vunpack.c.l.b16 %v555
      %v1868 = vunpack.c.h.b16 %v555
      %v1869 = vunpack.c.l.b16 %v556
      %v1870 = vunpack.c.h.b16 %v556
      %v1871 = vunpack.c.l.b16 %v557
      %v1872 = vunpack.c.h.b16 %v557
      %v1873 = vunpack.c.l.b16 %v558
      %v1874 = vunpack.c.h.b16 %v558
      %v1875 = vunpack.c.l.b16 %v559
      %v1876 = vunpack.c.h.b16 %v559
      %v1877 = vunpack.c.l.b16 %v560
      %v1878 = vunpack.c.h.b16 %v560
      %v1879 = vunpack.c.l.b16 %v561
      %v1880 = vunpack.c.h.b16 %v561
      %v1881 = vunpack.c.l.b16 %v562
      %v1882 = vunpack.c.h.b16 %v562
      %v1883 = vunpack.c.l.b16 %v563
      %v1884 = vunpack.c.h.b16 %v563
      %v1885 = vunpack.c.l.b16 %v564
      %v1886 = vunpack.c.h.b16 %v564
      %v1887 = vunpack.c.l.b16 %v565
      %v1888 = vunpack.c.h.b16 %v565
      %v1889 = vunpack.c.l.b16 %v566
      %v1890 = vunpack.c.h.b16 %v566
      %v1891 = vunpack.c.l.b16 %v567
      %v1892 = vunpack.c.h.b16 %v567
      %v1893 = vunpack.c.l.b16 %v568
      %v1894 = vunpack.c.h.b16 %v568
      %v1895 = vunpack.c.l.b16 %v569
      %v1896 = vunpack.c.h.b16 %v569
      %v1897 = vunpack.c.l.b16 %v570
      %v1898 = vunpack.c.h.b16 %v570
      %v1899 = vunpack.c.l.b16 %v571
      %v1900 = vunpack.c.h.b16 %v571
      %v1901 = vunpack.c.l.b16 %v572
      %v1902 = vunpack.c.h.b16 %v572
      %v1903 = vunpack.c.l.b16 %v573
      %v1904 = vunpack.c.h.b16 %v573
      %v1905 = vunpack.c.l.b16 %v574
      %v1906 = vunpack.c.h.b16 %v574
      %v1907 = vunpack.c.l.b16 %v575
      %v1908 = vunpack.c.h.b16 %v575
      %v1909 = vunpack.c.l.b16 %v576
      %v1910 = vunpack.c.h.b16 %v576
      %v1911 = vunpack.c.l.b16 %v577
      %v1912 = vunpack.c.h.b16 %v577
      %v1913 = vunpack.c.l.b16 %v578
      %v1914 = vunpack.c.h.b16 %v578
      %v1915 = vunpack.c.l.b16 %v579
      %v1916 = vunpack.c.h.b16 %v579
      %v1917 = vunpack.c.l.b16 %v580
      %v1918 = vunpack.c.h.b16 %v580
      %v1919 = vunpack.c.l.b16 %v581
      %v1920 = vunpack.c.h.b16 %v581
      %v1921 = vunpack.c.l.b16 %v582
      %v1922 = vunpack.c.h.b16 %v582
      %v1923 = vunpack.c.l.b16 %v583
      %v1924 = vunpack.c.h.b16 %v583
      %v1925 = vunpack.c.l.b16 %v584
      %v1926 = vunpack.c.h.b16 %v584
      %v1927 = vunpack.c.l.b16 %v585
      %v1928 = vunpack.c.h.b16 %v585
      %v1929 = vunpack.c.l.b16 %v586
      %v1930 = vunpack.c.h.b16 %v586
      %v1931 = vunpack.c.l.b16 %v587
      %v1932 = vunpack.c.h.b16 %v587
      %v1933 = vunpack.c.l.b16 %v588
      %v1934 = vunpack.c.h.b16 %v588
      %v1935 = vunpack.c.l.b16 %v589
      %v1936 = vunpack.c.h.b16 %v589
      %v1937 = vunpack.c.l.b16 %v590
      %v1938 = vunpack.c.h.b16 %v590
      %v1939 = vunpack.c.l.b16 %v591
      %v1940 = vunpack.c.h.b16 %v591
      %v1941 = vunpack.c.l.b16 %v592
      %v1942 = vunpack.c.h.b16 %v592
      %v1943 = vunpack.c.l.b16 %v593
      %v1944 = vunpack.c.h.b16 %v593
      %v1945 = vunpack.c.l.b16 %v594
      %v1946 = vunpack.c.h.b16 %v594
      %v1947 = vunpack.c.l.b16 %v595
      %v1948 = vunpack.c.h.b16 %v595
      %v1949 = vunpack.c.l.b16 %v596
      %v1950 = vunpack.c.h.b16 %v596
      %v1951 = vunpack.c.l.b16 %v597
      %v1952 = vunpack.c.h.b16 %v597
      %v1953 = vunpack.c.l.b16 %v598
      %v1954 = vunpack.c.h.b16 %v598
      %v1955 = vunpack.c.l.b16 %v599
      %v1956 = vunpack.c.h.b16 %v599
      %v1957 = vunpack.c.l.b16 %v600
      %v1958 = vunpack.c.h.b16 %v600
      %v1959 = vunpack.c.l.b16 %v601
      %v1960 = vunpack.c.h.b16 %v601
      %v1961 = vunpack.c.l.b16 %v602
      %v1962 = vunpack.c.h.b16 %v602
      %v1963 = vunpack.c.l.b16 %v603
      %v1964 = vunpack.c.h.b16 %v603
      %v1965 = vunpack.c.l.b16 %v604
      %v1966 = vunpack.c.h.b16 %v604
      %v1967 = vunpack.c.l.b16 %v605
      %v1968 = vunpack.c.h.b16 %v605
      %v1969 = vunpack.c.l.b16 %v606
      %v1970 = vunpack.c.h.b16 %v606
      %v1971 = vunpack.c.l.b16 %v607
      %v1972 = vunpack.c.h.b16 %v607
      %v1973 = vunpack.c.l.b16 %v608
      %v1974 = vunpack.c.h.b16 %v608
      %v1975 = vunpack.c.l.b16 %v609
      %v1976 = vunpack.c.h.b16 %v609
      %v1977 = vunpack.c.l.b16 %v610
      %v1978 = vunpack.c.h.b16 %v610
      %v1979 = vunpack.c.l.b16 %v611
      %v1980 = vunpack.c.h.b16 %v611
      %v1981 = vunpack.c.l.b16 %v612
      %v1982 = vunpack.c.h.b16 %v612
      %v1983 = vunpack.c.l.b16 %v613
      %v1984 = vunpack.c.h.b16 %v613
      %v1985 = vunpack.c.l.b16 %v614
      %v1986 = vunpack.c.h.b16 %v614
      %v1987 = vunpack.c.l.b16 %v615
      %v1988 = vunpack.c.h.b16 %v615
      %v1989 = vunpack.c.l.b16 %v616
      %v1990 = vunpack.c.h.b16 %v616
      %v1991 = vunpack.c.l.b16 %v617
      %v1992 = vunpack.c.h.b16 %v617
      %v1993 = vunpack.c.l.b16 %v618
      %v1994 = vunpack.c.h.b16 %v618
      %v1995 = vunpack.c.l.b16 %v619
      %v1996 = vunpack.c.h.b16 %v619
      %v1997 = vunpack.c.l.b16 %v620
      %v1998 = vunpack.c.h.b16 %v620
      %v1999 = vunpack.c.l.b16 %v621
      %v2000 = vunpack.c.h.b16 %v621
      %v2001 = vunpack.c.l.b16 %v622
      %v2002 = vunpack.c.h.b16 %v622
      %v2003 = vunpack.c.l.b16 %v623
      %v2004 = vunpack.c.h.b16 %v623
      %v2005 = vunpack.c.l.b16 %v624
      %v2006 = vunpack.c.h.b16 %v624
      %v2007 = vunpack.c.l.b16 %v625
      %v2008 = vunpack.c.h.b16 %v625
      %v2009 = vunpack.c.l.b16 %v626
      %v2010 = vunpack.c.h.b16 %v626
      %v2011 = vunpack.c.l.b16 %v627
      %v2012 = vunpack.c.h.b16 %v627
      %v2013 = vunpack.c.l.b16 %v628
      %v2014 = vunpack.c.h.b16 %v628
      %v2015 = vunpack.c.l.b16 %v629
      %v2016 = vunpack.c.h.b16 %v629
      %v2017 = vunpack.c.l.b16 %v630
      %v2018 = vunpack.c.h.b16 %v630
      %v2019 = vunpack.c.l.b16 %v631
      %v2020 = vunpack.c.h.b16 %v631
      %v2021 = vunpack.c.l.b16 %v632
      %v2022 = vunpack.c.h.b16 %v632
      %v2023 = vunpack.c.l.b16 %v633
      %v2024 = vunpack.c.h.b16 %v633
      %v2025 = vunpack.c.l.b16 %v634
      %v2026 = vunpack.c.h.b16 %v634
      %v2027 = vunpack.c.l.b16 %v635
      %v2028 = vunpack.c.h.b16 %v635
      %v2029 = vunpack.c.l.b16 %v636
      %v2030 = vunpack.c.h.b16 %v636
      %v2031 = vunpack.c.l.b16 %v637
      %v2032 = vunpack.c.h.b16 %v637
      %v2033 = vunpack.c.l.b16 %v638
      %v2034 = vunpack.c.h.b16 %v638
      %v2035 = vunpack.c.l.b16 %v639
      %v2036 = vunpack.c.h.b16 %v639
      %v2037 = vunpack.c.l.b16 %v640
      %v2038 = vunpack.c.h.b16 %v640
      %v2039 = vunpack.c.l.b16 %v641
      %v2040 = vunpack.c.h.b16 %v641
      %v2041 = vunpack.c.l.b16 %v642
      %v2042 = vunpack.c.h.b16 %v642
      %v2043 = vunpack.c.l.b16 %v643
      %v2044 = vunpack.c.h.b16 %v643
      %v2045 = vunpack.c.l.b16 %v644
      %v2046 = vunpack.c.h.b16 %v644
      %v2047 = vunpack.c.l.b16 %v645
      %v2048 = vunpack.c.h.b16 %v645
      %v2049 = vunpack.c.l.b16 %v646
      %v2050 = vunpack.c.h.b16 %v646
      %v2051 = vunpack.c.l.b16 %v647
      %v2052 = vunpack.c.h.b16 %v647
      %v2053 = vunpack.c.l.b16 %v648
      %v2054 = vunpack.c.h.b16 %v648
      %v2055 = vunpack.c.l.b16 %v649
      %v2056 = vunpack.c.h.b16 %v649
      %v2057 = vunpack.c.l.b16 %v650
      %v2058 = vunpack.c.h.b16 %v650
      %v2059 = vunpack.c.l.b16 %v651
      %v2060 = vunpack.c.h.b16 %v651
      %v2061 = vunpack.c.l.b16 %v652
      %v2062 = vunpack.c.h.b16 %v652
      %v2063 = vunpack.c.l.b16 %v653
      %v2064 = vunpack.c.h.b16 %v653
      %v2065 = vunpack.c.l.b16 %v654
      %v2066 = vunpack.c.h.b16 %v654
      %v2067 = vunpack.c.l.b16 %v655
      %v2068 = vunpack.c.h.b16 %v655
      %v2069 = vunpack.c.l.b16 %v656
      %v2070 = vunpack.c.h.b16 %v656
      %v2071 = vunpack.c.l.b16 %v657
      %v2072 = vunpack.c.h.b16 %v657
      %v2073 = vunpack.c.l.b16 %v658
      %v2074 = vunpack.c.h.b16 %v658
      %v2075 = vunpack.c.l.b16 %v659
      %v2076 = vunpack.c.h.b16 %v659
      %v2077 = vunpack.c.l.b16 %v660
      %v2078 = vunpack.c.h.b16 %v660
      %v2079 = vunpack.c.l.b16 %v661
      %v2080 = vunpack.c.h.b16 %v661
      %v2081 = vunpack.c.l.b16 %v662
      %v2082 = vunpack.c.h.b16 %v662
      %v2083 = vunpack.c.l.b16 %v663
      %v2084 = vunpack.c.h.b16 %v663
      %v2085 = vunpack.c.l.b16 %v664
      %v2086 = vunpack.c.h.b16 %v664
      %v2087 = vunpack.c.l.b16 %v665
      %v2088 = vunpack.c.h.b16 %v665
      %v2089 = vunpack.c.l.b16 %v666
      %v2090 = vunpack.c.h.b16 %v666
      %v2091 = vunpack.c.l.b16 %v667
      %v2092 = vunpack.c.h.b16 %v667
      %v2093 = vunpack.c.l.b16 %v668
      %v2094 = vunpack.c.h.b16 %v668
      %v2095 = vunpack.c.l.b16 %v669
      %v2096 = vunpack.c.h.b16 %v669
      %v2097 = vunpack.c.l.b16 %v670
      %v2098 = vunpack.c.h.b16 %v670
      %v2099 = vunpack.c.l.b16 %v671
      %v2100 = vunpack.c.h.b16 %v671
      %v2101 = vunpack.c.l.b16 %v672
      %v2102 = vunpack.c.h.b16 %v672
      %v2103 = vunpack.c.l.b16 %v673
      %v2104 = vunpack.c.h.b16 %v673
      %v2105 = vunpack.c.l.b16 %v674
      %v2106 = vunpack.c.h.b16 %v674
      %v2107 = vunpack.c.l.b16 %v675
      %v2108 = vunpack.c.h.b16 %v675
      %v2109 = vunpack.c.l.b16 %v676
      %v2110 = vunpack.c.h.b16 %v676
      %v2111 = vunpack.c.l.b16 %v677
      %v2112 = vunpack.c.h.b16 %v677
      %v2113 = vunpack.c.l.b16 %v678
      %v2114 = vunpack.c.h.b16 %v678
      %v2115 = vunpack.c.l.b16 %v679
      %v2116 = vunpack.c.h.b16 %v679
      %v2117 = vunpack.c.l.b16 %v680
      %v2118 = vunpack.c.h.b16 %v680
      %v2119 = vunpack.c.l.b16 %v681
      %v2120 = vunpack.c.h.b16 %v681
      %v2121 = vunpack.c.l.b16 %v682
      %v2122 = vunpack.c.h.b16 %v682
      %v2123 = vunpack.c.l.b16 %v683
      %v2124 = vunpack.c.h.b16 %v683
      %v2125 = vunpack.c.l.b16 %v684
      %v2126 = vunpack.c.h.b16 %v684
      %v2127 = vunpack.c.l.b16 %v685
      %v2128 = vunpack.c.h.b16 %v685
      %v2129 = vunpack.c.l.b16 %v686
      %v2130 = vunpack.c.h.b16 %v686
      %v2131 = vunpack.c.l.b16 %v687
      %v2132 = vunpack.c.h.b16 %v687
      %v2133 = vunpack.c.l.b16 %v688
      %v2134 = vunpack.c.h.b16 %v688
      %v2135 = vunpack.c.l.b16 %v689
      %v2136 = vunpack.c.h.b16 %v689
      %v2137 = vunpack.c.l.b16 %v690
      %v2138 = vunpack.c.h.b16 %v690
      %v2139 = vunpack.c.l.b16 %v691
      %v2140 = vunpack.c.h.b16 %v691
      %v2141 = vunpack.c.l.b16 %v692
      %v2142 = vunpack.c.h.b16 %v692
      %v2143 = vunpack.c.l.b16 %v693
      %v2144 = vunpack.c.h.b16 %v693
      %v2145 = vunpack.c.l.b16 %v694
      %v2146 = vunpack.c.h.b16 %v694
      %v2147 = vunpack.c.l.b16 %v695
      %v2148 = vunpack.c.h.b16 %v695
      %v2149 = vunpack.c.l.b16 %v696
      %v2150 = vunpack.c.h.b16 %v696
      %v2151 = vunpack.c.l.b16 %v697
      %v2152 = vunpack.c.h.b16 %v697
      %v2153 = vunpack.c.l.b16 %v698
      %v2154 = vunpack.c.h.b16 %v698
      %v2155 = vunpack.c.l.b16 %v699
      %v2156 = vunpack.c.h.b16 %v699
      %v2157 = vunpack.c.l.b16 %v700
      %v2158 = vunpack.c.h.b16 %v700
      %v2159 = vunpack.c.l.b16 %v701
      %v2160 = vunpack.c.h.b16 %v701
      %v2161 = vunpack.c.l.b16 %v702
      %v2162 = vunpack.c.h.b16 %v702
      %v2163 = vunpack.c.l.b16 %v703
      %v2164 = vunpack.c.h.b16 %v703
      %v2165 = vunpack.c.l.b16 %v704
      %v2166 = vunpack.c.h.b16 %v704
      %v2167 = vunpack.c.l.b16 %v705
      %v2168 = vunpack.c.h.b16 %v705
      %v2169 = vunpack.c.l.b16 %v706
      %v2170 = vunpack.c.h.b16 %v706
      %v2171 = vunpack.c.l.b16 %v707
      %v2172 = vunpack.c.h.b16 %v707
      %v2173 = vunpack.c.l.b16 %v708
      %v2174 = vunpack.c.h.b16 %v708
      %v2175 = vunpack.c.l.b16 %v709
      %v2176 = vunpack.c.h.b16 %v709
      %v2177 = vunpack.c.l.b16 %v710
      %v2178 = vunpack.c.h.b16 %v710
      %v2179 = vunpack.c.l.b16 %v711
      %v2180 = vunpack.c.h.b16 %v711
      %v2181 = vunpack.c.l.b16 %v712
      %v2182 = vunpack.c.h.b16 %v712
      %v2183 = vunpack.c.l.b16 %v713
      %v2184 = vunpack.c.h.b16 %v713
      %v2185 = vunpack.c.l.b16 %v714
      %v2186 = vunpack.c.h.b16 %v714
      %v2187 = vunpack.c.l.b16 %v715
      %v2188 = vunpack.c.h.b16 %v715
      %v2189 = vunpack.c.l.b16 %v716
      %v2190 = vunpack.c.h.b16 %v716
      %v2191 = vunpack.c.l.b16 %v717
      %v2192 = vunpack.c.h.b16 %v717
      %v2193 = vunpack.c.l.b16 %v718
      %v2194 = vunpack.c.h.b16 %v718
      %v2195 = vunpack.c.l.b16 %v719
      %v2196 = vunpack.c.h.b16 %v719
      %v2197 = vunpack.c.l.b16 %v720
      %v2198 = vunpack.c.h.b16 %v720
      %v2199 = vunpack.c.l.b16 %v721
      %v2200 = vunpack.c.h.b16 %v721
      %v2201 = vunpack.c.l.b16 %v722
      %v2202 = vunpack.c.h.b16 %v722
      %v2203 = vunpack.c.l.b16 %v723
      %v2204 = vunpack.c.h.b16 %v723
      %v2205 = vunpack.c.l.b16 %v724
      %v2206 = vunpack.c.h.b16 %v724
      %v2207 = vunpack.c.l.b16 %v725
      %v2208 = vunpack.c.h.b16 %v725
      %v2209 = vunpack.c.l.b16 %v726
      %v2210 = vunpack.c.h.b16 %v726
      %v2211 = vunpack.c.l.b16 %v727
      %v2212 = vunpack.c.h.b16 %v727
      %v2213 = vunpack.c.l.b16 %v728
      %v2214 = vunpack.c.h.b16 %v728
      %v2215 = vunpack.c.l.b16 %v729
      %v2216 = vunpack.c.h.b16 %v729
      %v2217 = vunpack.c.l.b16 %v730
      %v2218 = vunpack.c.h.b16 %v730
      %v2219 = vunpack.c.l.b16 %v731
      %v2220 = vunpack.c.h.b16 %v731
      %v2221 = vunpack.c.l.b16 %v732
      %v2222 = vunpack.c.h.b16 %v732
      %v2223 = vunpack.c.l.b16 %v733
      %v2224 = vunpack.c.h.b16 %v733
      %v2225 = vunpack.c.l.b16 %v734
      %v2226 = vunpack.c.h.b16 %v734
      %v2227 = vunpack.c.l.b16 %v735
      %v2228 = vunpack.c.h.b16 %v735
      %v2229 = vunpack.c.l.b16 %v736
      %v2230 = vunpack.c.h.b16 %v736
      %v2231 = vunpack.c.l.b16 %v737
      %v2232 = vunpack.c.h.b16 %v737
      %v2233 = vunpack.c.l.b16 %v738
      %v2234 = vunpack.c.h.b16 %v738
      %v2235 = vunpack.c.l.b16 %v739
      %v2236 = vunpack.c.h.b16 %v739
      %v2237 = vunpack.c.l.b16 %v740
      %v2238 = vunpack.c.h.b16 %v740
      %v2239 = vunpack.c.l.b16 %v741
      %v2240 = vunpack.c.h.b16 %v741
      %v2241 = vunpack.c.l.b16 %v742
      %v2242 = vunpack.c.h.b16 %v742
      %v2243 = vunpack.c.l.b16 %v743
      %v2244 = vunpack.c.h.b16 %v743
      %v2245 = vunpack.c.l.b16 %v744
      %v2246 = vunpack.c.h.b16 %v744
      %v2247 = vunpack.c.l.b16 %v745
      %v2248 = vunpack.c.h.b16 %v745
      %v2249 = vunpack.c.l.b16 %v746
      %v2250 = vunpack.c.h.b16 %v746
      %v2251 = vunpack.c.l.b16 %v747
      %v2252 = vunpack.c.h.b16 %v747
      %v2253 = vunpack.c.l.b16 %v748
      %v2254 = vunpack.c.h.b16 %v748
      %v2255 = vunpack.c.l.b16 %v749
      %v2256 = vunpack.c.h.b16 %v749
      %v2257 = vunpack.c.l.b16 %v750
      %v2258 = vunpack.c.h.b16 %v750
      %v2259 = vunpack.c.l.b16 %v751
      %v2260 = vunpack.c.h.b16 %v751
      %v2261 = vunpack.c.l.b16 %v752
      %v2262 = vunpack.c.h.b16 %v752
      %v2263 = vunpack.c.l.b16 %v753
      %v2264 = vunpack.c.h.b16 %v753
      %v2265 = vunpack.c.l.b16 %v754
      %v2266 = vunpack.c.h.b16 %v754
      %v2267 = vunpack.c.l.b16 %v755
      %v2268 = vunpack.c.h.b16 %v755
      %v2269 = vunpack.c.l.b16 %v756
      %v2270 = vunpack.c.h.b16 %v756
      %v2271 = vunpack.c.l.b16 %v757
      %v2272 = vunpack.c.h.b16 %v757
      %v2273 = vunpack.c.l.b16 %v758
      %v2274 = vunpack.c.h.b16 %v758
      %v2275 = vunpack.c.l.b16 %v759
      %v2276 = vunpack.c.h.b16 %v759
      %v2277 = vunpack.c.l.b16 %v760
      %v2278 = vunpack.c.h.b16 %v760
      %v2279 = vunpack.c.l.b16 %v761
      %v2280 = vunpack.c.h.b16 %v761
      %v2281 = vunpack.c.l.b16 %v762
      %v2282 = vunpack.c.h.b16 %v762
      %v2283 = vunpack.c.l.b16 %v763
      %v2284 = vunpack.c.h.b16 %v763
      %v2285 = vunpack.c.l.b16 %v764
      %v2286 = vunpack.c.h.b16 %v764
      %v2287 = vunpack.c.l.b16 %v765
      %v2288 = vunpack.c.h.b16 %v765
      %v2289 = vunpack.c.l.b16 %v766
      %v2290 = vunpack.c.h.b16 %v766
      %v2291 = vunpack.c.l.b16 %v767
      %v2292 = vunpack.c.h.b16 %v767
      %v2293 = vunpack.c.l.b16 %v768
      %v2294 = vunpack.c.h.b16 %v768
      %v2295 = vunpack.c.l.b16 %v769
      %v2296 = vunpack.c.h.b16 %v769
      %v2297 = vunpack.c.l.b16 %v770
      %v2298 = vunpack.c.h.b16 %v770
      %v2299 = vunpack.c.l.b16 %v771
      %v2300 = vunpack.c.h.b16 %v771
      %v2301 = vunpack.c.l.b16 %v772
      %v2302 = vunpack.c.h.b16 %v772
      %v2303 = vunpack.c.l.b16 %v773
      %v2304 = vunpack.c.h.b16 %v773
      %v2305 = vunpack.c.l.b16 %v774
      %v2306 = vunpack.c.h.b16 %v774
      %v2307 = vunpack.c.l.b16 %v775
      %v2308 = vunpack.c.h.b16 %v775
      %v2309 = vunpack.c.l.b16 %v776
      %v2310 = vunpack.c.h.b16 %v776
      %v2311 = vunpack.c.l.b16 %v777
      %v2312 = vunpack.c.h.b16 %v777
      %v2313 = vunpack.c.l.b16 %v778
      %v2314 = vunpack.c.h.b16 %v778
      %v2315 = vunpack.c.l.b16 %v779
      %v2316 = vunpack.c.h.b16 %v779
      %v2317 = vpack.c.b16 %v1367, %v1357
      %v2318 = vpack.c.b16 %v1368, %v1358
      %v2319 = vpack.c.b16 %v1369, %v1359
      %v2320 = vpack.c.b16 %v1370, %v1360
      %v2321 = vpack.c.b16 %v1371, %v1361
      %v2322 = vpack.c.b16 %v1372, %v1362
      %v2323 = vpack.c.b16 %v1373, %v1363
      %v2324 = vpack.c.b16 %v1374, %v1364
      %v2325 = vpack.c.b16 %v1375, %v1365
      %v2326 = vpack.c.b16 %v1376, %v1366
      %v2327 = vpack.c.b16 %v1387, %v1377
      %v2328 = vpack.c.b16 %v1388, %v1378
      %v2329 = vpack.c.b16 %v1389, %v1379
      %v2330 = vpack.c.b16 %v1390, %v1380
      %v2331 = vpack.c.b16 %v1391, %v1381
      %v2332 = vpack.c.b16 %v1392, %v1382
      %v2333 = vpack.c.b16 %v1393, %v1383
      %v2334 = vpack.c.b16 %v1394, %v1384
      %v2335 = vpack.c.b16 %v1395, %v1385
      %v2336 = vpack.c.b16 %v1396, %v1386
      %v2337 = vpack.c.b16 %v1407, %v1397
      %v2338 = vpack.c.b16 %v1408, %v1398
      %v2339 = vpack.c.b16 %v1409, %v1399
      %v2340 = vpack.c.b16 %v1410, %v1400
      %v2341 = vpack.c.b16 %v1411, %v1401
      %v2342 = vpack.c.b16 %v1412, %v1402
      %v2343 = vpack.c.b16 %v1413, %v1403
      %v2344 = vpack.c.b16 %v1414, %v1404
      %v2345 = vpack.c.b16 %v1415, %v1405
      %v2346 = vpack.c.b16 %v1416, %v1406
      %v2347 = vpack.c.b16 %v1427, %v1417
      %v2348 = vpack.c.b16 %v1428, %v1418
      %v2349 = vpack.c.b16 %v1429, %v1419
      %v2350 = vpack.c.b16 %v1430, %v1420
      %v2351 = vpack.c.b16 %v1431, %v1421
      %v2352 = vpack.c.b16 %v1432, %v1422
      %v2353 = vpack.c.b16 %v1433, %v1423
      %v2354 = vpack.c.b16 %v1434, %v1424
      %v2355 = vpack.c.b16 %v1435, %v1425
      %v2356 = vpack.c.b16 %v1436, %v1426
      %v2357 = vpack.c.b16 %v1447, %v1437
      %v2358 = vpack.c.b16 %v1448, %v1438
      %v2359 = vpack.c.b16 %v1449, %v1439
      %v2360 = vpack.c.b16 %v1450, %v1440
      %v2361 = vpack.c.b16 %v1451, %v1441
      %v2362 = vpack.c.b16 %v1452, %v1442
      %v2363 = vpack.c.b16 %v1453, %v1443
      %v2364 = vpack.c.b16 %v1454, %v1444
      %v2365 = vpack.c.b16 %v1455, %v1445
      %v2366 = vpack.c.b16 %v1456, %v1446
      %v2367 = vpack.c.b16 %v1467, %v1457
      %v2368 = vpack.c.b16 %v1468, %v1458
      %v2369 = vpack.c.b16 %v1469, %v1459
      %v2370 = vpack.c.b16 %v1470, %v1460
      %v2371 = vpack.c.b16 %v1471, %v1461
      %v2372 = vpack.c.b16 %v1472, %v1462
      %v2373 = vpack.c.b16 %v1473, %v1463
      %v2374 = vpack.c.b16 %v1474, %v1464
      %v2375 = vpack.c.b16 %v1475, %v1465
      %v2376 = vpack.c.b16 %v1476, %v1466
      %v2377 = vpack.c.b16 %v1487, %v1477
      %v2378 = vpack.c.b16 %v1488, %v1478
      %v2379 = vpack.c.b16 %v1489, %v1479
      %v2380 = vpack.c.b16 %v1490, %v1480
      %v2381 = vpack.c.b16 %v1491, %v1481
      %v2382 = vpack.c.b16 %v1492, %v1482
      %v2383 = vpack.c.b16 %v1493, %v1483
      %v2384 = vpack.c.b16 %v1494, %v1484
      %v2385 = vpack.c.b16 %v1495, %v1485
      %v2386 = vpack.c.b16 %v1496, %v1486
      %v2387 = vpack.c.b16 %v1507, %v1497
      %v2388 = vpack.c.b16 %v1508, %v1498
      %v2389 = vpack.c.b16 %v1509, %v1499
      %v2390 = vpack.c.b16 %v1510, %v1500
      %v2391 = vpack.c.b16 %v1511, %v1501
      %v2392 = vpack.c.b16 %v1512, %v1502
      %v2393 = vpack.c.b16 %v1513, %v1503
      %v2394 = vpack.c.b16 %v1514, %v1504
      %v2395 = vpack.c.b16 %v1515, %v1505
      %v2396 = vpack.c.b16 %v1516, %v1506
      %v2397 = vpack.c.b16 %v1527, %v1517
      %v2398 = vpack.c.b16 %v1528, %v1518
      %v2399 = vpack.c.b16 %v1529, %v1519
      %v2400 = vpack.c.b16 %v1530, %v1520
      %v2401 = vpack.c.b16 %v1531, %v1521
      %v2402 = vpack.c.b16 %v1532, %v1522
      %v2403 = vpack.c.b16 %v1533, %v1523
      %v2404 = vpack.c.b16 %v1534, %v1524
      %v2405 = vpack.c.b16 %v1535, %v1525
      %v2406 = vpack.c.b16 %v1536, %v1526
      %v2407 = vpack.c.b16 %v1547, %v1537
      %v2408 = vpack.c.b16 %v1548, %v1538
      %v2409 = vpack.c.b16 %v1549, %v1539
      %v2410 = vpack.c.b16 %v1550, %v1540
      %v2411 = vpack.c.b16 %v1551, %v1541
      %v2412 = vpack.c.b16 %v1552, %v1542
      %v2413 = vpack.c.b16 %v1553, %v1543
      %v2414 = vpack.c.b16 %v1554, %v1544
      %v2415 = vpack.c.b16 %v1555, %v1545
      %v2416 = vpack.c.b16 %v1556, %v1546
      %v2417 = vpack.c.b16 %v1567, %v1557
      %v2418 = vpack.c.b16 %v1568, %v1558
      %v2419 = vpack.c.b16 %v1569, %v1559
      %v2420 = vpack.c.b16 %v1570, %v1560
      %v2421 = vpack.c.b16 %v1571, %v1561
      %v2422 = vpack.c.b16 %v1572, %v1562
      %v2423 = vpack.c.b16 %v1573, %v1563
      %v2424 = vpack.c.b16 %v1574, %v1564
      %v2425 = vpack.c.b16 %v1575, %v1565
      %v2426 = vpack.c.b16 %v1576, %v1566
      %v2427 = vpack.c.b16 %v1587, %v1577
      %v2428 = vpack.c.b16 %v1588, %v1578
      %v2429 = vpack.c.b16 %v1589, %v1579
      %v2430 = vpack.c.b16 %v1590, %v1580
      %v2431 = vpack.c.b16 %v1591, %v1581
      %v2432 = vpack.c.b16 %v1592, %v1582
      %v2433 = vpack.c.b16 %v1593, %v1583
      %v2434 = vpack.c.b16 %v1594, %v1584
      %v2435 = vpack.c.b16 %v1595, %v1585
      %v2436 = vpack.c.b16 %v1596, %v1586
      %v2437 = vpack.c.b16 %v1607, %v1597
      %v2438 = vpack.c.b16 %v1608, %v1598
      %v2439 = vpack.c.b16 %v1609, %v1599
      %v2440 = vpack.c.b16 %v1610, %v1600
      %v2441 = vpack.c.b16 %v1611, %v1601
      %v2442 = vpack.c.b16 %v1612, %v1602
      %v2443 = vpack.c.b16 %v1613, %v1603
      %v2444 = vpack.c.b16 %v1614, %v1604
      %v2445 = vpack.c.b16 %v1615, %v1605
      %v2446 = vpack.c.b16 %v1616, %v1606
      %v2447 = vpack.c.b16 %v1627, %v1617
      %v2448 = vpack.c.b16 %v1628, %v1618
      %v2449 = vpack.c.b16 %v1629, %v1619
      %v2450 = vpack.c.b16 %v1630, %v1620
      %v2451 = vpack.c.b16 %v1631, %v1621
      %v2452 = vpack.c.b16 %v1632, %v1622
      %v2453 = vpack.c.b16 %v1633, %v1623
      %v2454 = vpack.c.b16 %v1634, %v1624
      %v2455 = vpack.c.b16 %v1635, %v1625
      %v2456 = vpack.c.b16 %v1636, %v1626
      %v2457 = vpack.c.b16 %v1647, %v1637
      %v2458 = vpack.c.b16 %v1648, %v1638
      %v2459 = vpack.c.b16 %v1649, %v1639
      %v2460 = vpack.c.b16 %v1650, %v1640
      %v2461 = vpack.c.b16 %v1651, %v1641
      %v2462 = vpack.c.b16 %v1652, %v1642
      %v2463 = vpack.c.b16 %v1653, %v1643
      %v2464 = vpack.c.b16 %v1654, %v1644
      %v2465 = vpack.c.b16 %v1655, %v1645
      %v2466 = vpack.c.b16 %v1656, %v1646
      %v2467 = vpack.c.b16 %v1667, %v1657
      %v2468 = vpack.c.b16 %v1668, %v1658
      %v2469 = vpack.c.b16 %v1669, %v1659
      %v2470 = vpack.c.b16 %v1670, %v1660
      %v2471 = vpack.c.b16 %v1671, %v1661
      %v2472 = vpack.c.b16 %v1672, %v1662
      %v2473 = vpack.c.b16 %v1673, %v1663
      %v2474 = vpack.c.b16 %v1674, %v1664
      %v2475 = vpack.c.b16 %v1675, %v1665
      %v2476 = vpack.c.b16 %v1676, %v1666
      %v2477 = vpack.c.b16 %v1687, %v1677
      %v2478 = vpack.c.b16 %v1688, %v1678
      %v2479 = vpack.c.b16 %v1689, %v1679
      %v2480 = vpack.c.b16 %v1690, %v1680
      %v2481 = vpack.c.b16 %v1691, %v1681
      %v2482 = vpack.c.b16 %v1692, %v1682
      %v2483 = vpack.c.b16 %v1693, %v1683
      %v2484 = vpack.c.b16 %v1694, %v1684
      %v2485 = vpack.c.b16 %v1695, %v1685
      %v2486 = vpack.c.b16 %v1696, %v1686
      %v2487 = vpack.c.b16 %v1707, %v1697
      %v2488 = vpack.c.b16 %v1708, %v1698
      %v2489 = vpack.c.b16 %v1709, %v1699
      %v2490 = vpack.c.b16 %v1710, %v1700
      %v2491 = vpack.c.b16 %v1711, %v1701
      %v2492 = vpack.c.b16 %v1712, %v1702
      %v2493 = vpack.c.b16 %v1713, %v1703
      %v2494 = vpack.c.b16 %v1714, %v1704
      %v2495 = vpack.c.b16 %v1715, %v1705
      %v2496 = vpack.c.b16 %v1716, %v1706
      %v2497 = vpack.c.b16 %v1727, %v1717
      %v2498 = vpack.c.b16 %v1728, %v1718
      %v2499 = vpack.c.b16 %v1729, %v1719
      %v2500 = vpack.c.b16 %v1730, %v1720
      %v2501 = vpack.c.b16 %v1731, %v1721
      %v2502 = vpack.c.b16 %v1732, %v1722
      %v2503 = vpack.c.b16 %v1733, %v1723
      %v2504 = vpack.c.b16 %v1734, %v1724
      %v2505 = vpack.c.b16 %v1735, %v1725
      %v2506 = vpack.c.b16 %v1736, %v1726
      %v2507 = vpack.c.b16 %v1747, %v1737
      %v2508 = vpack.c.b16 %v1748, %v1738
      %v2509 = vpack.c.b16 %v1749, %v1739
      %v2510 = vpack.c.b16 %v1750, %v1740
      %v2511 = vpack.c.b16 %v1751, %v1741
      %v2512 = vpack.c.b16 %v1752, %v1742
      %v2513 = vpack.c.b16 %v1753, %v1743
      %v2514 = vpack.c.b16 %v1754, %v1744
      %v2515 = vpack.c.b16 %v1755, %v1745
      %v2516 = vpack.c.b16 %v1756, %v1746
      %v2517 = vpack.c.b16 %v1767, %v1757
      %v2518 = vpack.c.b16 %v1768, %v1758
      %v2519 = vpack.c.b16 %v1769, %v1759
      %v2520 = vpack.c.b16 %v1770, %v1760
      %v2521 = vpack.c.b16 %v1771, %v1761
      %v2522 = vpack.c.b16 %v1772, %v1762
      %v2523 = vpack.c.b16 %v1773, %v1763
      %v2524 = vpack.c.b16 %v1774, %v1764
      %v2525 = vpack.c.b16 %v1775, %v1765
      %v2526 = vpack.c.b16 %v1776, %v1766
      %v2527 = vpack.c.b16 %v1787, %v1777
      %v2528 = vpack.c.b16 %v1788, %v1778
      %v2529 = vpack.c.b16 %v1789, %v1779
      %v2530 = vpack.c.b16 %v1790, %v1780
      %v2531 = vpack.c.b16 %v1791, %v1781
      %v2532 = vpack.c.b16 %v1792, %v1782
      %v2533 = vpack.c.b16 %v1793, %v1783
      %v2534 = vpack.c.b16 %v1794, %v1784
      %v2535 = vpack.c.b16 %v1795, %v1785
      %v2536 = vpack.c.b16 %v1796, %v1786
      %v2537 = vpack.c.b16 %v1807, %v1797
      %v2538 = vpack.c.b16 %v1808, %v1798
      %v2539 = vpack.c.b16 %v1809, %v1799
      %v2540 = vpack.c.b16 %v1810, %v1800
      %v2541 = vpack.c.b16 %v1811, %v1801
      %v2542 = vpack.c.b16 %v1812, %v1802
      %v2543 = vpack.c.b16 %v1813, %v1803
      %v2544 = vpack.c.b16 %v1814, %v1804
      %v2545 = vpack.c.b16 %v1815, %v1805
      %v2546 = vpack.c.b16 %v1816, %v1806
      %v2547 = vpack.c.b16 %v1827, %v1817
      %v2548 = vpack.c.b16 %v1828, %v1818
      %v2549 = vpack.c.b16 %v1829, %v1819
      %v2550 = vpack.c.b16 %v1830, %v1820
      %v2551 = vpack.c.b16 %v1831, %v1821
      %v2552 = vpack.c.b16 %v1832, %v1822
      %v2553 = vpack.c.b16 %v1833, %v1823
      %v2554 = vpack.c.b16 %v1834, %v1824
      %v2555 = vpack.c.b16 %v1835, %v1825
      %v2556 = vpack.c.b16 %v1836, %v1826
      %v2557 = vpack.c.b16 %v1847, %v1837
      %v2558 = vpack.c.b16 %v1848, %v1838
      %v2559 = vpack.c.b16 %v1849, %v1839
      %v2560 = vpack.c.b16 %v1850, %v1840
      %v2561 = vpack.c.b16 %v1851, %v1841
      %v2562 = vpack.c.b16 %v1852, %v1842
      %v2563 = vpack.c.b16 %v1853, %v1843
      %v2564 = vpack.c.b16 %v1854, %v1844
      %v2565 = vpack.c.b16 %v1855, %v1845
      %v2566 = vpack.c.b16 %v1856, %v1846
      %v2567 = vpack.c.b16 %v1867, %v1857
      %v2568 = vpack.c.b16 %v1868, %v1858
      %v2569 = vpack.c.b16 %v1869, %v1859
      %v2570 = vpack.c.b16 %v1870, %v1860
      %v2571 = vpack.c.b16 %v1871, %v1861
      %v2572 = vpack.c.b16 %v1872, %v1862
      %v2573 = vpack.c.b16 %v1873, %v1863
      %v2574 = vpack.c.b16 %v1874, %v1864
      %v2575 = vpack.c.b16 %v1875, %v1865
      %v2576 = vpack.c.b16 %v1876, %v1866
      %v2577 = vpack.c.b16 %v1887, %v1877
      %v2578 = vpack.c.b16 %v1888, %v1878
      %v2579 = vpack.c.b16 %v1889, %v1879
      %v2580 = vpack.c.b16 %v1890, %v1880
      %v2581 = vpack.c.b16 %v1891, %v1881
      %v2582 = vpack.c.b16 %v1892, %v1882
      %v2583 = vpack.c.b16 %v1893, %v1883
      %v2584 = vpack.c.b16 %v1894, %v1884
      %v2585 = vpack.c.b16 %v1895, %v1885
      %v2586 = vpack.c.b16 %v1896, %v1886
      %v2587 = vpack.c.b16 %v1907, %v1897
      %v2588 = vpack.c.b16 %v1908, %v1898
      %v2589 = vpack.c.b16 %v1909, %v1899
      %v2590 = vpack.c.b16 %v1910, %v1900
      %v2591 = vpack.c.b16 %v1911, %v1901
      %v2592 = vpack.c.b16 %v1912, %v1902
      %v2593 = vpack.c.b16 %v1913, %v1903
      %v2594 = vpack.c.b16 %v1914, %v1904
      %v2595 = vpack.c.b16 %v1915, %v1905
      %v2596 = vpack.c.b16 %v1916, %v1906
      %v2597 = vpack.c.b16 %v1927, %v1917
      %v2598 = vpack.c.b16 %v1928, %v1918
      %v2599 = vpack.c.b16 %v1929, %v1919
      %v2600 = vpack.c.b16 %v1930, %v1920
      %v2601 = vpack.c.b16 %v1931, %v1921
      %v2602 = vpack.c.b16 %v1932, %v1922
      %v2603 = vpack.c.b16 %v1933, %v1923
      %v2604 = vpack.c.b16 %v1934, %v1924
      %v2605 = vpack.c.b16 %v1935, %v1925
      %v2606 = vpack.c.b16 %v1936, %v1926
      %v2607 = vpack.c.b16 %v1947, %v1937
      %v2608 = vpack.c.b16 %v1948, %v1938
      %v2609 = vpack.c.b16 %v1949, %v1939
      %v2610 = vpack.c.b16 %v1950, %v1940
      %v2611 = vpack.c.b16 %v1951, %v1941
      %v2612 = vpack.c.b16 %v1952, %v1942
      %v2613 = vpack.c.b16 %v1953, %v1943
      %v2614 = vpack.c.b16 %v1954, %v1944
      %v2615 = vpack.c.b16 %v1955, %v1945
      %v2616 = vpack.c.b16 %v1956, %v1946
      %v2617 = vpack.c.b16 %v1967, %v1957
      %v2618 = vpack.c.b16 %v1968, %v1958
      %v2619 = vpack.c.b16 %v1969, %v1959
      %v2620 = vpack.c.b16 %v1970, %v1960
      %v2621 = vpack.c.b16 %v1971, %v1961
      %v2622 = vpack.c.b16 %v1972, %v1962
      %v2623 = vpack.c.b16 %v1973, %v1963
      %v2624 = vpack.c.b16 %v1974, %v1964
      %v2625 = vpack.c.b16 %v1975, %v1965
      %v2626 = vpack.c.b16 %v1976, %v1966
      %v2627 = vpack.c.b16 %v1987, %v1977
      %v2628 = vpack.c.b16 %v1988, %v1978
      %v2629 = vpack.c.b16 %v1989, %v1979
      %v2630 = vpack.c.b16 %v1990, %v1980
      %v2631 = vpack.c.b16 %v1991, %v1981
      %v2632 = vpack.c.b16 %v1992, %v1982
      %v2633 = vpack.c.b16 %v1993, %v1983
      %v2634 = vpack.c.b16 %v1994, %v1984
      %v2635 = vpack.c.b16 %v1995, %v1985
      %v2636 = vpack.c.b16 %v1996, %v1986
      %v2637 = vpack.c.b16 %v2007, %v1997
      %v2638 = vpack.c.b16 %v2008, %v1998
      %v2639 = vpack.c.b16 %v2009, %v1999
      %v2640 = vpack.c.b16 %v2010, %v2000
      %v2641 = vpack.c.b16 %v2011, %v2001
      %v2642 = vpack.c.b16 %v2012, %v2002
      %v2643 = vpack.c.b16 %v2013, %v2003
      %v2644 = vpack.c.b16 %v2014, %v2004
      %v2645 = vpack.c.b16 %v2015, %v2005
      %v2646 = vpack.c.b16 %v2016, %v2006
      %v2647 = vpack.c.b16 %v2027, %v2017
      %v2648 = vpack.c.b16 %v2028, %v2018
      %v2649 = vpack.c.b16 %v2029, %v2019
      %v2650 = vpack.c.b16 %v2030, %v2020
      %v2651 = vpack.c.b16 %v2031, %v2021
      %v2652 = vpack.c.b16 %v2032, %v2022
      %v2653 = vpack.c.b16 %v2033, %v2023
      %v2654 = vpack.c.b16 %v2034, %v2024
      %v2655 = vpack.c.b16 %v2035, %v2025
      %v2656 = vpack.c.b16 %v2036, %v2026
      %v2657 = vpack.c.b16 %v2047, %v2037
      %v2658 = vpack.c.b16 %v2048, %v2038
      %v2659 = vpack.c.b16 %v2049, %v2039
      %v2660 = vpack.c.b16 %v2050, %v2040
      %v2661 = vpack.c.b16 %v2051, %v2041
      %v2662 = vpack.c.b16 %v2052, %v2042
      %v2663 = vpack.c.b16 %v2053, %v2043
      %v2664 = vpack.c.b16 %v2054, %v2044
      %v2665 = vpack.c.b16 %v2055, %v2045
      %v2666 = vpack.c.b16 %v2056, %v2046
      %v2667 = vpack.c.b16 %v2067, %v2057
      %v2668 = vpack.c.b16 %v2068, %v2058
      %v2669 = vpack.c.b16 %v2069, %v2059
      %v2670 = vpack.c.b16 %v2070, %v2060
      %v2671 = vpack.c.b16 %v2071, %v2061
      %v2672 = vpack.c.b16 %v2072, %v2062
      %v2673 = vpack.c.b16 %v2073, %v2063
      %v2674 = vpack.c.b16 %v2074, %v2064
      %v2675 = vpack.c.b16 %v2075, %v2065
      %v2676 = vpack.c.b16 %v2076, %v2066
      %v2677 = vpack.c.b16 %v2087, %v2077
      %v2678 = vpack.c.b16 %v2088, %v2078
      %v2679 = vpack.c.b16 %v2089, %v2079
      %v2680 = vpack.c.b16 %v2090, %v2080
      %v2681 = vpack.c.b16 %v2091, %v2081
      %v2682 = vpack.c.b16 %v2092, %v2082
      %v2683 = vpack.c.b16 %v2093, %v2083
      %v2684 = vpack.c.b16 %v2094, %v2084
      %v2685 = vpack.c.b16 %v2095, %v2085
      %v2686 = vpack.c.b16 %v2096, %v2086
      %v2687 = vpack.c.b16 %v2107, %v2097
      %v2688 = vpack.c.b16 %v2108, %v2098
      %v2689 = vpack.c.b16 %v2109, %v2099
      %v2690 = vpack.c.b16 %v2110, %v2100
      %v2691 = vpack.c.b16 %v2111, %v2101
      %v2692 = vpack.c.b16 %v2112, %v2102
      %v2693 = vpack.c.b16 %v2113, %v2103
      %v2694 = vpack.c.b16 %v2114, %v2104
      %v2695 = vpack.c.b16 %v2115, %v2105
      %v2696 = vpack.c.b16 %v2116, %v2106
      %v2697 = vpack.c.b16 %v2127, %v2117
      %v2698 = vpack.c.b16 %v2128, %v2118
      %v2699 = vpack.c.b16 %v2129, %v2119
      %v2700 = vpack.c.b16 %v2130, %v2120
      %v2701 = vpack.c.b16 %v2131, %v2121
      %v2702 = vpack.c.b16 %v2132, %v2122
      %v2703 = vpack.c.b16 %v2133, %v2123
      %v2704 = vpack.c.b16 %v2134, %v2124
      %v2705 = vpack.c.b16 %v2135, %v2125
      %v2706 = vpack.c.b16 %v2136, %v2126
      %v2707 = vpack.c.b16 %v2147, %v2137
      %v2708 = vpack.c.b16 %v2148, %v2138
      %v2709 = vpack.c.b16 %v2149, %v2139
      %v2710 = vpack.c.b16 %v2150, %v2140
      %v2711 = vpack.c.b16 %v2151, %v2141
      %v2712 = vpack.c.b16 %v2152, %v2142
      %v2713 = vpack.c.b16 %v2153, %v2143
      %v2714 = vpack.c.b16 %v2154, %v2144
      %v2715 = vpack.c.b16 %v2155, %v2145
      %v2716 = vpack.c.b16 %v2156, %v2146
      %v2717 = vpack.c.b16 %v2167, %v2157
      %v2718 = vpack.c.b16 %v2168, %v2158
      %v2719 = vpack.c.b16 %v2169, %v2159
      %v2720 = vpack.c.b16 %v2170, %v2160
      %v2721 = vpack.c.b16 %v2171, %v2161
      %v2722 = vpack.c.b16 %v2172, %v2162
      %v2723 = vpack.c.b16 %v2173, %v2163
      %v2724 = vpack.c.b16 %v2174, %v2164
      %v2725 = vpack.c.b16 %v2175, %v2165
      %v2726 = vpack.c.b16 %v2176, %v2166
      %v2727 = vpack.c.b16 %v2187, %v2177
      %v2728 = vpack.c.b16 %v2188, %v2178
      %v2729 = vpack.c.b16 %v2189, %v2179
      %v2730 = vpack.c.b16 %v2190, %v2180
      %v2731 = vpack.c.b16 %v2191, %v2181
      %v2732 = vpack.c.b16 %v2192, %v2182
      %v2733 = vpack.c.b16 %v2193, %v2183
      %v2734 = vpack.c.b16 %v2194, %v2184
      %v2735 = vpack.c.b16 %v2195, %v2185
      %v2736 = vpack.c.b16 %v2196, %v2186
      %v2737 = vpack.c.b16 %v2207, %v2197
      %v2738 = vpack.c.b16 %v2208, %v2198
      %v2739 = vpack.c.b16 %v2209, %v2199
      %v2740 = vpack.c.b16 %v2210, %v2200
      %v2741 = vpack.c.b16 %v2211, %v2201
      %v2742 = vpack.c.b16 %v2212, %v2202
      %v2743 = vpack.c.b16 %v2213, %v2203
      %v2744 = vpack.c.b16 %v2214, %v2204
      %v2745 = vpack.c.b16 %v2215, %v2205
      %v2746 = vpack.c.b16 %v2216, %v2206
      %v2747 = vpack.c.b16 %v2227, %v2217
      %v2748 = vpack.c.b16 %v2228, %v2218
      %v2749 = vpack.c.b16 %v2229, %v2219
      %v2750 = vpack.c.b16 %v2230, %v2220
      %v2751 = vpack.c.b16 %v2231, %v2221
      %v2752 = vpack.c.b16 %v2232, %v2222
      %v2753 = vpack.c.b16 %v2233, %v2223
      %v2754 = vpack.c.b16 %v2234, %v2224
      %v2755 = vpack.c.b16 %v2235, %v2225
      %v2756 = vpack.c.b16 %v2236, %v2226
      %v2757 = vpack.c.b16 %v2247, %v2237
      %v2758 = vpack.c.b16 %v2248, %v2238
      %v2759 = vpack.c.b16 %v2249, %v2239
      %v2760 = vpack.c.b16 %v2250, %v2240
      %v2761 = vpack.c.b16 %v2251, %v2241
      %v2762 = vpack.c.b16 %v2252, %v2242
      %v2763 = vpack.c.b16 %v2253, %v2243
      %v2764 = vpack.c.b16 %v2254, %v2244
      %v2765 = vpack.c.b16 %v2255, %v2245
      %v2766 = vpack.c.b16 %v2256, %v2246
      %v2767 = vpack.c.b16 %v2267, %v2257
      %v2768 = vpack.c.b16 %v2268, %v2258
      %v2769 = vpack.c.b16 %v2269, %v2259
      %v2770 = vpack.c.b16 %v2270, %v2260
      %v2771 = vpack.c.b16 %v2271, %v2261
      %v2772 = vpack.c.b16 %v2272, %v2262
      %v2773 = vpack.c.b16 %v2273, %v2263
      %v2774 = vpack.c.b16 %v2274, %v2264
      %v2775 = vpack.c.b16 %v2275, %v2265
      %v2776 = vpack.c.b16 %v2276, %v2266
      %v2777 = vpack.c.b16 %v2287, %v2277
      %v2778 = vpack.c.b16 %v2288, %v2278
      %v2779 = vpack.c.b16 %v2289, %v2279
      %v2780 = vpack.c.b16 %v2290, %v2280
      %v2781 = vpack.c.b16 %v2291, %v2281
      %v2782 = vpack.c.b16 %v2292, %v2282
      %v2783 = vpack.c.b16 %v2293, %v2283
      %v2784 = vpack.c.b16 %v2294, %v2284
      %v2785 = vpack.c.b16 %v2295, %v2285
      %v2786 = vpack.c.b16 %v2296, %v2286
      %v2787 = vpack.c.b16 %v2307, %v2297
      %v2788 = vpack.c.b16 %v2308, %v2298
      %v2789 = vpack.c.b16 %v2309, %v2299
      %v2790 = vpack.c.b16 %v2310, %v2300
      %v2791 = vpack.c.b16 %v2311, %v2301
      %v2792 = vpack.c.b16 %v2312, %v2302
      %v2793 = vpack.c.b16 %v2313, %v2303
      %v2794 = vpack.c.b16 %v2314, %v2304
      %v2795 = vpack.c.b16 %v2315, %v2305
      %v2796 = vpack.c.b16 %v2316, %v2306
      %3277 = vmatprep.subr.bf16.mxu0 %v2318
      %3278 = vmatpush1.bf16.msra.mxu0 %v2317
      %3279 = vmatprep.subr.bf16.mxu0 %v2328
      %3280 = vmatpush1.bf16.msra.mxu0 %v2327
      %3281 = vmatprep.subr.bf16.mxu0 %v2338
      %3282 = vmatpush1.bf16.msra.mxu0 %v2337
      %3283 = vmatprep.subr.bf16.mxu0 %v2348
      %3284 = vmatpush1.bf16.msra.mxu0 %v2347
      %3285 = vmatprep.subr.bf16.mxu0 %v2358
      %3286 = vmatpush1.bf16.msra.mxu0 %v2357
      %3287 = vmatprep.subr.bf16.mxu0 %v2368
      %3288 = vmatpush1.bf16.msra.mxu0 %v2367
      %3289 = vmatprep.subr.bf16.mxu0 %v2378
      %3290 = vmatpush1.bf16.msra.mxu0 %v2377
      %3291 = vmatprep.subr.bf16.mxu0 %v2388
      %3292 = vmatpush1.bf16.msra.mxu0 %v2387
      %3293 = vmatprep.subr.bf16.mxu0 %v2398
      %3294 = vmatpush1.bf16.msra.mxu0 %v2397
      %3295 = vmatprep.subr.bf16.mxu0 %v2408
      %3296 = vmatpush1.bf16.msra.mxu0 %v2407
      %3297 = vmatprep.subr.bf16.mxu0 %v2418
      %3298 = vmatpush1.bf16.msra.mxu0 %v2417
      %3299 = vmatprep.subr.bf16.mxu0 %v2428
      %3300 = vmatpush1.bf16.msra.mxu0 %v2427
      %3301 = vmatprep.subr.bf16.mxu0 %v2438
      %3302 = vmatpush1.bf16.msra.mxu0 %v2437
      %3303 = vmatprep.subr.bf16.mxu0 %v2448
      %3304 = vmatpush1.bf16.msra.mxu0 %v2447
      %3305 = vmatprep.subr.bf16.mxu0 %v2458
      %3306 = vmatpush1.bf16.msra.mxu0 %v2457
      %3307 = vmatprep.subr.bf16.mxu0 %v2468
      %3308 = vmatpush1.bf16.msra.mxu0 %v2467
      %3309 = vmatprep.mubr.bf16.mxu0 %v866
      %3310 = vmatmul.mubr.bf16.gmra.mrb[0].mxu0 %v865
      %v3311 = vpop.f32.mrb[0].mxu0
      %v3312 = vadd.f32 %v787, %v3311
      %v3313 = vpop.f32.mrb[0].mxu0
      %v3314 = vadd.f32 %v791, %v3313
      %v3315 = vpop.f32.mrb[0].mxu0
      %v3316 = vpop.f32.mrb[0].mxu0
      %3317 = vdwg.mxu0
      %3318 = vmatprep.subr.bf16.mxu0 %v2478
      %3319 = vmatpush1.bf16.msra.mxu0 %v2477
      %3320 = vmatprep.subr.bf16.mxu0 %v2488
      %3321 = vmatpush1.bf16.msra.mxu0 %v2487
      %3322 = vmatprep.subr.bf16.mxu0 %v2498
      %3323 = vmatpush1.bf16.msra.mxu0 %v2497
      %3324 = vmatprep.subr.bf16.mxu0 %v2508
      %3325 = vmatpush1.bf16.msra.mxu0 %v2507
      %3326 = vmatprep.subr.bf16.mxu0 %v2518
      %3327 = vmatpush1.bf16.msra.mxu0 %v2517
      %3328 = vmatprep.subr.bf16.mxu0 %v2528
      %3329 = vmatpush1.bf16.msra.mxu0 %v2527
      %3330 = vmatprep.subr.bf16.mxu0 %v2538
      %3331 = vmatpush1.bf16.msra.mxu0 %v2537
      %3332 = vmatprep.subr.bf16.mxu0 %v2548
      %3333 = vmatpush1.bf16.msra.mxu0 %v2547
      %3334 = vmatprep.subr.bf16.mxu0 %v2558
      %3335 = vmatpush1.bf16.msra.mxu0 %v2557
      %3336 = vmatprep.subr.bf16.mxu0 %v2568
      %3337 = vmatpush1.bf16.msra.mxu0 %v2567
      %3338 = vmatprep.subr.bf16.mxu0 %v2578
      %3339 = vmatpush1.bf16.msra.mxu0 %v2577
      %3340 = vmatprep.subr.bf16.mxu0 %v2588
      %3341 = vmatpush1.bf16.msra.mxu0 %v2587
      %3342 = vmatprep.subr.bf16.mxu0 %v2598
      %3343 = vmatpush1.bf16.msra.mxu0 %v2597
      %3344 = vmatprep.subr.bf16.mxu0 %v2608
      %3345 = vmatpush1.bf16.msra.mxu0 %v2607
      %3346 = vmatprep.subr.bf16.mxu0 %v2618
      %3347 = vmatpush1.bf16.msra.mxu0 %v2617
      %3348 = vmatprep.subr.bf16.mxu0 %v2628
      %3349 = vmatpush1.bf16.msra.mxu0 %v2627
      %3350 = vmatprep.mubr.bf16.mxu0 %v868
      %3351 = vmatmul.mubr.bf16.gmra.mrb[0].mxu0 %v867
      %v3352 = vpop.f32.mrb[0].mxu0
      %v3353 = vadd.f32 %v3312, %v3352
      %v3354 = vpop.f32.mrb[0].mxu0
      %v3355 = vadd.f32 %v3314, %v3354
      %v3356 = vpop.f32.mrb[0].mxu0
      %v3357 = vpop.f32.mrb[0].mxu0
      %3358 = vdwg.mxu0
      %3359 = vmatprep.subr.bf16.mxu0 %v2638
      %3360 = vmatpush1.bf16.msra.mxu0 %v2637
      %3361 = vmatprep.subr.bf16.mxu0 %v2648
      %3362 = vmatpush1.bf16.msra.mxu0 %v2647
      %3363 = vmatprep.subr.bf16.mxu0 %v2658
      %3364 = vmatpush1.bf16.msra.mxu0 %v2657
      %3365 = vmatprep.subr.bf16.mxu0 %v2668
      %3366 = vmatpush1.bf16.msra.mxu0 %v2667
      %3367 = vmatprep.subr.bf16.mxu0 %v2678
      %3368 = vmatpush1.bf16.msra.mxu0 %v2677
      %3369 = vmatprep.subr.bf16.mxu0 %v2688
      %3370 = vmatpush1.bf16.msra.mxu0 %v2687
      %3371 = vmatprep.subr.bf16.mxu0 %v2698
      %3372 = vmatpush1.bf16.msra.mxu0 %v2697
      %3373 = vmatprep.subr.bf16.mxu0 %v2708
      %3374 = vmatpush1.bf16.msra.mxu0 %v2707
      %3375 = vmatprep.subr.bf16.mxu0 %v2718
      %3376 = vmatpush1.bf16.msra.mxu0 %v2717
      %3377 = vmatprep.subr.bf16.mxu0 %v2728
      %3378 = vmatpush1.bf16.msra.mxu0 %v2727
      %3379 = vmatprep.subr.bf16.mxu0 %v2738
      %3380 = vmatpush1.bf16.msra.mxu0 %v2737
      %3381 = vmatprep.subr.bf16.mxu0 %v2748
      %3382 = vmatpush1.bf16.msra.mxu0 %v2747
      %3383 = vmatprep.subr.bf16.mxu0 %v2758
      %3384 = vmatpush1.bf16.msra.mxu0 %v2757
      %3385 = vmatprep.subr.bf16.mxu0 %v2768
      %3386 = vmatpush1.bf16.msra.mxu0 %v2767
      %3387 = vmatprep.subr.bf16.mxu0 %v2778
      %3388 = vmatpush1.bf16.msra.mxu0 %v2777
      %3389 = vmatprep.subr.bf16.mxu0 %v2788
      %3390 = vmatpush1.bf16.msra.mxu0 %v2787
      %3391 = vmatprep.mubr.bf16.mxu0 %v870
      %3392 = vmatmul.mubr.bf16.gmra.mrb[0].mxu0 %v869
      %v3393 = vpop.f32.mrb[0].mxu0
      %v3394 = vadd.f32 %v3353, %v3393
      %v3395 = vpop.f32.mrb[0].mxu0
      %v3396 = vadd.f32 %v3355, %v3395
      %v3397 = vpop.f32.mrb[0].mxu0
      %v3398 = vpop.f32.mrb[0].mxu0
      %3399 = vdwg.mxu0
      %3400 = vmatprep.subr.bf16.mxu0 %v2320
      %3401 = vmatpush1.bf16.msra.mxu0 %v2319
      %3402 = vmatprep.subr.bf16.mxu0 %v2330
      %3403 = vmatpush1.bf16.msra.mxu0 %v2329
      %3404 = vmatprep.subr.bf16.mxu0 %v2340
      %3405 = vmatpush1.bf16.msra.mxu0 %v2339
      %3406 = vmatprep.subr.bf16.mxu0 %v2350
      %3407 = vmatpush1.bf16.msra.mxu0 %v2349
      %3408 = vmatprep.subr.bf16.mxu0 %v2360
      %3409 = vmatpush1.bf16.msra.mxu0 %v2359
      %3410 = vmatprep.subr.bf16.mxu0 %v2370
      %3411 = vmatpush1.bf16.msra.mxu0 %v2369
      %3412 = vmatprep.subr.bf16.mxu0 %v2380
      %3413 = vmatpush1.bf16.msra.mxu0 %v2379
      %3414 = vmatprep.subr.bf16.mxu0 %v2390
      %3415 = vmatpush1.bf16.msra.mxu0 %v2389
      %3416 = vmatprep.subr.bf16.mxu0 %v2400
      %3417 = vmatpush1.bf16.msra.mxu0 %v2399
      %3418 = vmatprep.subr.bf16.mxu0 %v2410
      %3419 = vmatpush1.bf16.msra.mxu0 %v2409
      %3420 = vmatprep.subr.bf16.mxu0 %v2420
      %3421 = vmatpush1.bf16.msra.mxu0 %v2419
      %3422 = vmatprep.subr.bf16.mxu0 %v2430
      %3423 = vmatpush1.bf16.msra.mxu0 %v2429
      %3424 = vmatprep.subr.bf16.mxu0 %v2440
      %3425 = vmatpush1.bf16.msra.mxu0 %v2439
      %3426 = vmatprep.subr.bf16.mxu0 %v2450
      %3427 = vmatpush1.bf16.msra.mxu0 %v2449
      %3428 = vmatprep.subr.bf16.mxu0 %v2460
      %3429 = vmatpush1.bf16.msra.mxu0 %v2459
      %3430 = vmatprep.subr.bf16.mxu0 %v2470
      %3431 = vmatpush1.bf16.msra.mxu0 %v2469
      %3432 = vmatprep.mubr.bf16.mxu0 %v866
      %3433 = vmatmul.mubr.bf16.gmra.mrb[0].mxu0 %v865
      %v3434 = vpop.f32.mrb[0].mxu0
      %v3435 = vadd.f32 %v795, %v3434
      %v3436 = vpop.f32.mrb[0].mxu0
      %v3437 = vadd.f32 %v799, %v3436
      %v3438 = vpop.f32.mrb[0].mxu0
      %v3439 = vpop.f32.mrb[0].mxu0
      %3440 = vdwg.mxu0
      %3441 = vmatprep.subr.bf16.mxu0 %v2480
      %3442 = vmatpush1.bf16.msra.mxu0 %v2479
      %3443 = vmatprep.subr.bf16.mxu0 %v2490
      %3444 = vmatpush1.bf16.msra.mxu0 %v2489
      %3445 = vmatprep.subr.bf16.mxu0 %v2500
      %3446 = vmatpush1.bf16.msra.mxu0 %v2499
      %3447 = vmatprep.subr.bf16.mxu0 %v2510
      %3448 = vmatpush1.bf16.msra.mxu0 %v2509
      %3449 = vmatprep.subr.bf16.mxu0 %v2520
      %3450 = vmatpush1.bf16.msra.mxu0 %v2519
      %3451 = vmatprep.subr.bf16.mxu0 %v2530
      %3452 = vmatpush1.bf16.msra.mxu0 %v2529
      %3453 = vmatprep.subr.bf16.mxu0 %v2540
      %3454 = vmatpush1.bf16.msra.mxu0 %v2539
      %3455 = vmatprep.subr.bf16.mxu0 %v2550
      %3456 = vmatpush1.bf16.msra.mxu0 %v2549
      %3457 = vmatprep.subr.bf16.mxu0 %v2560
      %3458 = vmatpush1.bf16.msra.mxu0 %v2559
      %3459 = vmatprep.subr.bf16.mxu0 %v2570
      %3460 = vmatpush1.bf16.msra.mxu0 %v2569
      %3461 = vmatprep.subr.bf16.mxu0 %v2580
      %3462 = vmatpush1.bf16.msra.mxu0 %v2579
      %3463 = vmatprep.subr.bf16.mxu0 %v2590
      %3464 = vmatpush1.bf16.msra.mxu0 %v2589
      %3465 = vmatprep.subr.bf16.mxu0 %v2600
      %3466 = vmatpush1.bf16.msra.mxu0 %v2599
      %3467 = vmatprep.subr.bf16.mxu0 %v2610
      %3468 = vmatpush1.bf16.msra.mxu0 %v2609
      %3469 = vmatprep.subr.bf16.mxu0 %v2620
      %3470 = vmatpush1.bf16.msra.mxu0 %v2619
      %3471 = vmatprep.subr.bf16.mxu0 %v2630
      %3472 = vmatpush1.bf16.msra.mxu0 %v2629
      %3473 = vmatprep.mubr.bf16.mxu0 %v868
      %3474 = vmatmul.mubr.bf16.gmra.mrb[0].mxu0 %v867
      %v3475 = vpop.f32.mrb[0].mxu0
      %v3476 = vadd.f32 %v3435, %v3475
      %v3477 = vpop.f32.mrb[0].mxu0
      %v3478 = vadd.f32 %v3437, %v3477
      %v3479 = vpop.f32.mrb[0].mxu0
      %v3480 = vpop.f32.mrb[0].mxu0
      %3481 = vdwg.mxu0
      %3482 = vmatprep.subr.bf16.mxu0 %v2640
      %3483 = vmatpush1.bf16.msra.mxu0 %v2639
      %3484 = vmatprep.subr.bf16.mxu0 %v2650
      %3485 = vmatpush1.bf16.msra.mxu0 %v2649
      %3486 = vmatprep.subr.bf16.mxu0 %v2660
      %3487 = vmatpush1.bf16.msra.mxu0 %v2659
      %3488 = vmatprep.subr.bf16.mxu0 %v2670
      %3489 = vmatpush1.bf16.msra.mxu0 %v2669
      %3490 = vmatprep.subr.bf16.mxu0 %v2680
      %3491 = vmatpush1.bf16.msra.mxu0 %v2679
      %3492 = vmatprep.subr.bf16.mxu0 %v2690
      %3493 = vmatpush1.bf16.msra.mxu0 %v2689
      %3494 = vmatprep.subr.bf16.mxu0 %v2700
      %3495 = vmatpush1.bf16.msra.mxu0 %v2699
      %3496 = vmatprep.subr.bf16.mxu0 %v2710
      %3497 = vmatpush1.bf16.msra.mxu0 %v2709
      %3498 = vmatprep.subr.bf16.mxu0 %v2720
      %3499 = vmatpush1.bf16.msra.mxu0 %v2719
      %3500 = vmatprep.subr.bf16.mxu0 %v2730
      %3501 = vmatpush1.bf16.msra.mxu0 %v2729
      %3502 = vmatprep.subr.bf16.mxu0 %v2740
      %3503 = vmatpush1.bf16.msra.mxu0 %v2739
      %3504 = vmatprep.subr.bf16.mxu0 %v2750
      %3505 = vmatpush1.bf16.msra.mxu0 %v2749
      %3506 = vmatprep.subr.bf16.mxu0 %v2760
      %3507 = vmatpush1.bf16.msra.mxu0 %v2759
      %3508 = vmatprep.subr.bf16.mxu0 %v2770
      %3509 = vmatpush1.bf16.msra.mxu0 %v2769
      %3510 = vmatprep.subr.bf16.mxu0 %v2780
      %3511 = vmatpush1.bf16.msra.mxu0 %v2779
      %3512 = vmatprep.subr.bf16.mxu0 %v2790
      %3513 = vmatpush1.bf16.msra.mxu0 %v2789
      %3514 = vmatprep.mubr.bf16.mxu0 %v870
      %3515 = vmatmul.mubr.bf16.gmra.mrb[0].mxu0 %v869
      %v3516 = vpop.f32.mrb[0].mxu0
      %v3517 = vadd.f32 %v3476, %v3516
      %v3518 = vpop.f32.mrb[0].mxu0
      %v3519 = vadd.f32 %v3478, %v3518
      %v3520 = vpop.f32.mrb[0].mxu0
      %v3521 = vpop.f32.mrb[0].mxu0
      %3522 = vdwg.mxu0
      %3523 = vmatprep.subr.bf16.mxu0 %v2322
      %3524 = vmatpush1.bf16.msra.mxu0 %v2321
      %3525 = vmatprep.subr.bf16.mxu0 %v2332
      %3526 = vmatpush1.bf16.msra.mxu0 %v2331
      %3527 = vmatprep.subr.bf16.mxu0 %v2342
      %3528 = vmatpush1.bf16.msra.mxu0 %v2341
      %3529 = vmatprep.subr.bf16.mxu0 %v2352
      %3530 = vmatpush1.bf16.msra.mxu0 %v2351
      %3531 = vmatprep.subr.bf16.mxu0 %v2362
      %3532 = vmatpush1.bf16.msra.mxu0 %v2361
      %3533 = vmatprep.subr.bf16.mxu0 %v2372
      %3534 = vmatpush1.bf16.msra.mxu0 %v2371
      %3535 = vmatprep.subr.bf16.mxu0 %v2382
      %3536 = vmatpush1.bf16.msra.mxu0 %v2381
      %3537 = vmatprep.subr.bf16.mxu0 %v2392
      %3538 = vmatpush1.bf16.msra.mxu0 %v2391
      %3539 = vmatprep.subr.bf16.mxu0 %v2402
      %3540 = vmatpush1.bf16.msra.mxu0 %v2401
      %3541 = vmatprep.subr.bf16.mxu0 %v2412
      %3542 = vmatpush1.bf16.msra.mxu0 %v2411
      %3543 = vmatprep.subr.bf16.mxu0 %v2422
      %3544 = vmatpush1.bf16.msra.mxu0 %v2421
      %3545 = vmatprep.subr.bf16.mxu0 %v2432
      %3546 = vmatpush1.bf16.msra.mxu0 %v2431
      %3547 = vmatprep.subr.bf16.mxu0 %v2442
      %3548 = vmatpush1.bf16.msra.mxu0 %v2441
      %3549 = vmatprep.subr.bf16.mxu0 %v2452
      %3550 = vmatpush1.bf16.msra.mxu0 %v2451
      %3551 = vmatprep.subr.bf16.mxu0 %v2462
      %3552 = vmatpush1.bf16.msra.mxu0 %v2461
      %3553 = vmatprep.subr.bf16.mxu0 %v2472
      %3554 = vmatpush1.bf16.msra.mxu0 %v2471
      %3555 = vmatprep.mubr.bf16.mxu0 %v866
      %3556 = vmatmul.mubr.bf16.gmra.mrb[0].mxu0 %v865
      %v3557 = vpop.f32.mrb[0].mxu0
      %v3558 = vadd.f32 %v803, %v3557
      %v3559 = vpop.f32.mrb[0].mxu0
      %v3560 = vadd.f32 %v807, %v3559
      %v3561 = vpop.f32.mrb[0].mxu0
      %v3562 = vpop.f32.mrb[0].mxu0
      %3563 = vdwg.mxu0
      %3564 = vmatprep.subr.bf16.mxu0 %v2482
      %3565 = vmatpush1.bf16.msra.mxu0 %v2481
      %3566 = vmatprep.subr.bf16.mxu0 %v2492
      %3567 = vmatpush1.bf16.msra.mxu0 %v2491
      %3568 = vmatprep.subr.bf16.mxu0 %v2502
      %3569 = vmatpush1.bf16.msra.mxu0 %v2501
      %3570 = vmatprep.subr.bf16.mxu0 %v2512
      %3571 = vmatpush1.bf16.msra.mxu0 %v2511
      %3572 = vmatprep.subr.bf16.mxu0 %v2522
      %3573 = vmatpush1.bf16.msra.mxu0 %v2521
      %3574 = vmatprep.subr.bf16.mxu0 %v2532
      %3575 = vmatpush1.bf16.msra.mxu0 %v2531
      %3576 = vmatprep.subr.bf16.mxu0 %v2542
      %3577 = vmatpush1.bf16.msra.mxu0 %v2541
      %3578 = vmatprep.subr.bf16.mxu0 %v2552
      %3579 = vmatpush1.bf16.msra.mxu0 %v2551
      %3580 = vmatprep.subr.bf16.mxu0 %v2562
      %3581 = vmatpush1.bf16.msra.mxu0 %v2561
      %3582 = vmatprep.subr.bf16.mxu0 %v2572
      %3583 = vmatpush1.bf16.msra.mxu0 %v2571
      %3584 = vmatprep.subr.bf16.mxu0 %v2582
      %3585 = vmatpush1.bf16.msra.mxu0 %v2581
      %3586 = vmatprep.subr.bf16.mxu0 %v2592
      %3587 = vmatpush1.bf16.msra.mxu0 %v2591
      %3588 = vmatprep.subr.bf16.mxu0 %v2602
      %3589 = vmatpush1.bf16.msra.mxu0 %v2601
      %3590 = vmatprep.subr.bf16.mxu0 %v2612
      %3591 = vmatpush1.bf16.msra.mxu0 %v2611
      %3592 = vmatprep.subr.bf16.mxu0 %v2622
      %3593 = vmatpush1.bf16.msra.mxu0 %v2621
      %3594 = vmatprep.subr.bf16.mxu0 %v2632
      %3595 = vmatpush1.bf16.msra.mxu0 %v2631
      %3596 = vmatprep.mubr.bf16.mxu0 %v868
      %3597 = vmatmul.mubr.bf16.gmra.mrb[0].mxu0 %v867
      %v3598 = vpop.f32.mrb[0].mxu0
      %v3599 = vadd.f32 %v3558, %v3598
      %v3600 = vpop.f32.mrb[0].mxu0
      %v3601 = vadd.f32 %v3560, %v3600
      %v3602 = vpop.f32.mrb[0].mxu0
      %v3603 = vpop.f32.mrb[0].mxu0
      %3604 = vdwg.mxu0
      %3605 = vmatprep.subr.bf16.mxu0 %v2642
      %3606 = vmatpush1.bf16.msra.mxu0 %v2641
      %3607 = vmatprep.subr.bf16.mxu0 %v2652
      %3608 = vmatpush1.bf16.msra.mxu0 %v2651
      %3609 = vmatprep.subr.bf16.mxu0 %v2662
      %3610 = vmatpush1.bf16.msra.mxu0 %v2661
      %3611 = vmatprep.subr.bf16.mxu0 %v2672
      %3612 = vmatpush1.bf16.msra.mxu0 %v2671
      %3613 = vmatprep.subr.bf16.mxu0 %v2682
      %3614 = vmatpush1.bf16.msra.mxu0 %v2681
      %3615 = vmatprep.subr.bf16.mxu0 %v2692
      %3616 = vmatpush1.bf16.msra.mxu0 %v2691
      %3617 = vmatprep.subr.bf16.mxu0 %v2702
      %3618 = vmatpush1.bf16.msra.mxu0 %v2701
      %3619 = vmatprep.subr.bf16.mxu0 %v2712
      %3620 = vmatpush1.bf16.msra.mxu0 %v2711
      %3621 = vmatprep.subr.bf16.mxu0 %v2722
      %3622 = vmatpush1.bf16.msra.mxu0 %v2721
      %3623 = vmatprep.subr.bf16.mxu0 %v2732
      %3624 = vmatpush1.bf16.msra.mxu0 %v2731
      %3625 = vmatprep.subr.bf16.mxu0 %v2742
      %3626 = vmatpush1.bf16.msra.mxu0 %v2741
      %3627 = vmatprep.subr.bf16.mxu0 %v2752
      %3628 = vmatpush1.bf16.msra.mxu0 %v2751
      %3629 = vmatprep.subr.bf16.mxu0 %v2762
      %3630 = vmatpush1.bf16.msra.mxu0 %v2761
      %3631 = vmatprep.subr.bf16.mxu0 %v2772
      %3632 = vmatpush1.bf16.msra.mxu0 %v2771
      %3633 = vmatprep.subr.bf16.mxu0 %v2782
      %3634 = vmatpush1.bf16.msra.mxu0 %v2781
      %3635 = vmatprep.subr.bf16.mxu0 %v2792
      %3636 = vmatpush1.bf16.msra.mxu0 %v2791
      %3637 = vmatprep.mubr.bf16.mxu0 %v870
      %3638 = vmatmul.mubr.bf16.gmra.mrb[0].mxu0 %v869
      %v3639 = vpop.f32.mrb[0].mxu0
      %v3640 = vadd.f32 %v3599, %v3639
      %v3641 = vpop.f32.mrb[0].mxu0
      %v3642 = vadd.f32 %v3601, %v3641
      %v3643 = vpop.f32.mrb[0].mxu0
      %v3644 = vpop.f32.mrb[0].mxu0
      %3645 = vdwg.mxu0
      %3646 = vmatprep.subr.bf16.mxu0 %v2324
      %3647 = vmatpush1.bf16.msra.mxu0 %v2323
      %3648 = vmatprep.subr.bf16.mxu0 %v2334
      %3649 = vmatpush1.bf16.msra.mxu0 %v2333
      %3650 = vmatprep.subr.bf16.mxu0 %v2344
      %3651 = vmatpush1.bf16.msra.mxu0 %v2343
      %3652 = vmatprep.subr.bf16.mxu0 %v2354
      %3653 = vmatpush1.bf16.msra.mxu0 %v2353
      %3654 = vmatprep.subr.bf16.mxu0 %v2364
      %3655 = vmatpush1.bf16.msra.mxu0 %v2363
      %3656 = vmatprep.subr.bf16.mxu0 %v2374
      %3657 = vmatpush1.bf16.msra.mxu0 %v2373
      %3658 = vmatprep.subr.bf16.mxu0 %v2384
      %3659 = vmatpush1.bf16.msra.mxu0 %v2383
      %3660 = vmatprep.subr.bf16.mxu0 %v2394
      %3661 = vmatpush1.bf16.msra.mxu0 %v2393
      %3662 = vmatprep.subr.bf16.mxu0 %v2404
      %3663 = vmatpush1.bf16.msra.mxu0 %v2403
      %3664 = vmatprep.subr.bf16.mxu0 %v2414
      %3665 = vmatpush1.bf16.msra.mxu0 %v2413
      %3666 = vmatprep.subr.bf16.mxu0 %v2424
      %3667 = vmatpush1.bf16.msra.mxu0 %v2423
      %3668 = vmatprep.subr.bf16.mxu0 %v2434
      %3669 = vmatpush1.bf16.msra.mxu0 %v2433
      %3670 = vmatprep.subr.bf16.mxu0 %v2444
      %3671 = vmatpush1.bf16.msra.mxu0 %v2443
      %3672 = vmatprep.subr.bf16.mxu0 %v2454
      %3673 = vmatpush1.bf16.msra.mxu0 %v2453
      %3674 = vmatprep.subr.bf16.mxu0 %v2464
      %3675 = vmatpush1.bf16.msra.mxu0 %v2463
      %3676 = vmatprep.subr.bf16.mxu0 %v2474
      %3677 = vmatpush1.bf16.msra.mxu0 %v2473
      %3678 = vmatprep.mubr.bf16.mxu0 %v866
      %3679 = vmatmul.mubr.bf16.gmra.mrb[0].mxu0 %v865
      %v3680 = vpop.f32.mrb[0].mxu0
      %v3681 = vadd.f32 %v811, %v3680
      %v3682 = vpop.f32.mrb[0].mxu0
      %v3683 = vadd.f32 %v815, %v3682
      %v3684 = vpop.f32.mrb[0].mxu0
      %v3685 = vpop.f32.mrb[0].mxu0
      %3686 = vdwg.mxu0
      %3687 = vmatprep.subr.bf16.mxu0 %v2484
      %3688 = vmatpush1.bf16.msra.mxu0 %v2483
      %3689 = vmatprep.subr.bf16.mxu0 %v2494
      %3690 = vmatpush1.bf16.msra.mxu0 %v2493
      %3691 = vmatprep.subr.bf16.mxu0 %v2504
      %3692 = vmatpush1.bf16.msra.mxu0 %v2503
      %3693 = vmatprep.subr.bf16.mxu0 %v2514
      %3694 = vmatpush1.bf16.msra.mxu0 %v2513
      %3695 = vmatprep.subr.bf16.mxu0 %v2524
      %3696 = vmatpush1.bf16.msra.mxu0 %v2523
      %3697 = vmatprep.subr.bf16.mxu0 %v2534
      %3698 = vmatpush1.bf16.msra.mxu0 %v2533
      %3699 = vmatprep.subr.bf16.mxu0 %v2544
      %3700 = vmatpush1.bf16.msra.mxu0 %v2543
      %3701 = vmatprep.subr.bf16.mxu0 %v2554
      %3702 = vmatpush1.bf16.msra.mxu0 %v2553
      %3703 = vmatprep.subr.bf16.mxu0 %v2564
      %3704 = vmatpush1.bf16.msra.mxu0 %v2563
      %3705 = vmatprep.subr.bf16.mxu0 %v2574
      %3706 = vmatpush1.bf16.msra.mxu0 %v2573
      %3707 = vmatprep.subr.bf16.mxu0 %v2584
      %3708 = vmatpush1.bf16.msra.mxu0 %v2583
      %3709 = vmatprep.subr.bf16.mxu0 %v2594
      %3710 = vmatpush1.bf16.msra.mxu0 %v2593
      %3711 = vmatprep.subr.bf16.mxu0 %v2604
      %3712 = vmatpush1.bf16.msra.mxu0 %v2603
      %3713 = vmatprep.subr.bf16.mxu0 %v2614
      %3714 = vmatpush1.bf16.msra.mxu0 %v2613
      %3715 = vmatprep.subr.bf16.mxu0 %v2624
      %3716 = vmatpush1.bf16.msra.mxu0 %v2623
      %3717 = vmatprep.subr.bf16.mxu0 %v2634
      %3718 = vmatpush1.bf16.msra.mxu0 %v2633
      %3719 = vmatprep.mubr.bf16.mxu0 %v868
      %3720 = vmatmul.mubr.bf16.gmra.mrb[0].mxu0 %v867
      %v3721 = vpop.f32.mrb[0].mxu0
      %v3722 = vadd.f32 %v3681, %v3721
      %v3723 = vpop.f32.mrb[0].mxu0
      %v3724 = vadd.f32 %v3683, %v3723
      %v3725 = vpop.f32.mrb[0].mxu0
      %v3726 = vpop.f32.mrb[0].mxu0
      %3727 = vdwg.mxu0
      %3728 = vmatprep.subr.bf16.mxu0 %v2644
      %3729 = vmatpush1.bf16.msra.mxu0 %v2643
      %3730 = vmatprep.subr.bf16.mxu0 %v2654
      %3731 = vmatpush1.bf16.msra.mxu0 %v2653
      %3732 = vmatprep.subr.bf16.mxu0 %v2664
      %3733 = vmatpush1.bf16.msra.mxu0 %v2663
      %3734 = vmatprep.subr.bf16.mxu0 %v2674
      %3735 = vmatpush1.bf16.msra.mxu0 %v2673
      %3736 = vmatprep.subr.bf16.mxu0 %v2684
      %3737 = vmatpush1.bf16.msra.mxu0 %v2683
      %3738 = vmatprep.subr.bf16.mxu0 %v2694
      %3739 = vmatpush1.bf16.msra.mxu0 %v2693
      %3740 = vmatprep.subr.bf16.mxu0 %v2704
      %3741 = vmatpush1.bf16.msra.mxu0 %v2703
      %3742 = vmatprep.subr.bf16.mxu0 %v2714
      %3743 = vmatpush1.bf16.msra.mxu0 %v2713
      %3744 = vmatprep.subr.bf16.mxu0 %v2724
      %3745 = vmatpush1.bf16.msra.mxu0 %v2723
      %3746 = vmatprep.subr.bf16.mxu0 %v2734
      %3747 = vmatpush1.bf16.msra.mxu0 %v2733
      %3748 = vmatprep.subr.bf16.mxu0 %v2744
      %3749 = vmatpush1.bf16.msra.mxu0 %v2743
      %3750 = vmatprep.subr.bf16.mxu0 %v2754
      %3751 = vmatpush1.bf16.msra.mxu0 %v2753
      %3752 = vmatprep.subr.bf16.mxu0 %v2764
      %3753 = vmatpush1.bf16.msra.mxu0 %v2763
      %3754 = vmatprep.subr.bf16.mxu0 %v2774
      %3755 = vmatpush1.bf16.msra.mxu0 %v2773
      %3756 = vmatprep.subr.bf16.mxu0 %v2784
      %3757 = vmatpush1.bf16.msra.mxu0 %v2783
      %3758 = vmatprep.subr.bf16.mxu0 %v2794
      %3759 = vmatpush1.bf16.msra.mxu0 %v2793
      %3760 = vmatprep.mubr.bf16.mxu0 %v870
      %3761 = vmatmul.mubr.bf16.gmra.mrb[0].mxu0 %v869
      %v3762 = vpop.f32.mrb[0].mxu0
      %v3763 = vadd.f32 %v3722, %v3762
      %v3764 = vpop.f32.mrb[0].mxu0
      %v3765 = vadd.f32 %v3724, %v3764
      %v3766 = vpop.f32.mrb[0].mxu0
      %v3767 = vpop.f32.mrb[0].mxu0
      %3768 = vdwg.mxu0
      %3769 = vmatprep.subr.bf16.mxu0 %v2326
      %3770 = vmatpush1.bf16.msra.mxu0 %v2325
      %3771 = vmatprep.subr.bf16.mxu0 %v2336
      %3772 = vmatpush1.bf16.msra.mxu0 %v2335
      %3773 = vmatprep.subr.bf16.mxu0 %v2346
      %3774 = vmatpush1.bf16.msra.mxu0 %v2345
      %3775 = vmatprep.subr.bf16.mxu0 %v2356
      %3776 = vmatpush1.bf16.msra.mxu0 %v2355
      %3777 = vmatprep.subr.bf16.mxu0 %v2366
      %3778 = vmatpush1.bf16.msra.mxu0 %v2365
      %3779 = vmatprep.subr.bf16.mxu0 %v2376
      %3780 = vmatpush1.bf16.msra.mxu0 %v2375
      %3781 = vmatprep.subr.bf16.mxu0 %v2386
      %3782 = vmatpush1.bf16.msra.mxu0 %v2385
      %3783 = vmatprep.subr.bf16.mxu0 %v2396
      %3784 = vmatpush1.bf16.msra.mxu0 %v2395
      %3785 = vmatprep.subr.bf16.mxu0 %v2406
      %3786 = vmatpush1.bf16.msra.mxu0 %v2405
      %3787 = vmatprep.subr.bf16.mxu0 %v2416
      %3788 = vmatpush1.bf16.msra.mxu0 %v2415
      %3789 = vmatprep.subr.bf16.mxu0 %v2426
      %3790 = vmatpush1.bf16.msra.mxu0 %v2425
      %3791 = vmatprep.subr.bf16.mxu0 %v2436
      %3792 = vmatpush1.bf16.msra.mxu0 %v2435
      %3793 = vmatprep.subr.bf16.mxu0 %v2446
      %3794 = vmatpush1.bf16.msra.mxu0 %v2445
      %3795 = vmatprep.subr.bf16.mxu0 %v2456
      %3796 = vmatpush1.bf16.msra.mxu0 %v2455
      %3797 = vmatprep.subr.bf16.mxu0 %v2466
      %3798 = vmatpush1.bf16.msra.mxu0 %v2465
      %3799 = vmatprep.subr.bf16.mxu0 %v2476
      %3800 = vmatpush1.bf16.msra.mxu0 %v2475
      %3801 = vmatprep.mubr.bf16.mxu0 %v866
      %3802 = vmatmul.mubr.bf16.gmra.mrb[0].mxu0 %v865
      %v3803 = vpop.f32.mrb[0].mxu0
      %v3804 = vadd.f32 %v819, %v3803
      %v3805 = vpop.f32.mrb[0].mxu0
      %v3806 = vadd.f32 %v823, %v3805
      %v3807 = vpop.f32.mrb[0].mxu0
      %v3808 = vpop.f32.mrb[0].mxu0
      %3809 = vdwg.mxu0
      %3810 = vmatprep.subr.bf16.mxu0 %v2486
      %3811 = vmatpush1.bf16.msra.mxu0 %v2485
      %3812 = vmatprep.subr.bf16.mxu0 %v2496
      %3813 = vmatpush1.bf16.msra.mxu0 %v2495
      %3814 = vmatprep.subr.bf16.mxu0 %v2506
      %3815 = vmatpush1.bf16.msra.mxu0 %v2505
      %3816 = vmatprep.subr.bf16.mxu0 %v2516
      %3817 = vmatpush1.bf16.msra.mxu0 %v2515
      %3818 = vmatprep.subr.bf16.mxu0 %v2526
      %3819 = vmatpush1.bf16.msra.mxu0 %v2525
      %3820 = vmatprep.subr.bf16.mxu0 %v2536
      %3821 = vmatpush1.bf16.msra.mxu0 %v2535
      %3822 = vmatprep.subr.bf16.mxu0 %v2546
      %3823 = vmatpush1.bf16.msra.mxu0 %v2545
      %3824 = vmatprep.subr.bf16.mxu0 %v2556
      %3825 = vmatpush1.bf16.msra.mxu0 %v2555
      %3826 = vmatprep.subr.bf16.mxu0 %v2566
      %3827 = vmatpush1.bf16.msra.mxu0 %v2565
      %3828 = vmatprep.subr.bf16.mxu0 %v2576
      %3829 = vmatpush1.bf16.msra.mxu0 %v2575
      %3830 = vmatprep.subr.bf16.mxu0 %v2586
      %3831 = vmatpush1.bf16.msra.mxu0 %v2585
      %3832 = vmatprep.subr.bf16.mxu0 %v2596
      %3833 = vmatpush1.bf16.msra.mxu0 %v2595
      %3834 = vmatprep.subr.bf16.mxu0 %v2606
      %3835 = vmatpush1.bf16.msra.mxu0 %v2605
      %3836 = vmatprep.subr.bf16.mxu0 %v2616
      %3837 = vmatpush1.bf16.msra.mxu0 %v2615
      %3838 = vmatprep.subr.bf16.mxu0 %v2626
      %3839 = vmatpush1.bf16.msra.mxu0 %v2625
      %3840 = vmatprep.subr.bf16.mxu0 %v2636
      %3841 = vmatpush1.bf16.msra.mxu0 %v2635
      %3842 = vmatprep.mubr.bf16.mxu0 %v868
      %3843 = vmatmul.mubr.bf16.gmra.mrb[0].mxu0 %v867
      %v3844 = vpop.f32.mrb[0].mxu0
      %v3845 = vadd.f32 %v3804, %v3844
      %v3846 = vpop.f32.mrb[0].mxu0
      %v3847 = vadd.f32 %v3806, %v3846
      %v3848 = vpop.f32.mrb[0].mxu0
      %v3849 = vpop.f32.mrb[0].mxu0
      %3850 = vdwg.mxu0
      %3851 = vmatprep.subr.bf16.mxu0 %v2646
      %3852 = vmatpush1.bf16.msra.mxu0 %v2645
      %3853 = vmatprep.subr.bf16.mxu0 %v2656
      %3854 = vmatpush1.bf16.msra.mxu0 %v2655
      %3855 = vmatprep.subr.bf16.mxu0 %v2666
      %3856 = vmatpush1.bf16.msra.mxu0 %v2665
      %3857 = vmatprep.subr.bf16.mxu0 %v2676
      %3858 = vmatpush1.bf16.msra.mxu0 %v2675
      %3859 = vmatprep.subr.bf16.mxu0 %v2686
      %3860 = vmatpush1.bf16.msra.mxu0 %v2685
      %3861 = vmatprep.subr.bf16.mxu0 %v2696
      %3862 = vmatpush1.bf16.msra.mxu0 %v2695
      %3863 = vmatprep.subr.bf16.mxu0 %v2706
      %3864 = vmatpush1.bf16.msra.mxu0 %v2705
      %3865 = vmatprep.subr.bf16.mxu0 %v2716
      %3866 = vmatpush1.bf16.msra.mxu0 %v2715
      %3867 = vmatprep.subr.bf16.mxu0 %v2726
      %3868 = vmatpush1.bf16.msra.mxu0 %v2725
      %3869 = vmatprep.subr.bf16.mxu0 %v2736
      %3870 = vmatpush1.bf16.msra.mxu0 %v2735
      %3871 = vmatprep.subr.bf16.mxu0 %v2746
      %3872 = vmatpush1.bf16.msra.mxu0 %v2745
      %3873 = vmatprep.subr.bf16.mxu0 %v2756
      %3874 = vmatpush1.bf16.msra.mxu0 %v2755
      %3875 = vmatprep.subr.bf16.mxu0 %v2766
      %3876 = vmatpush1.bf16.msra.mxu0 %v2765
      %3877 = vmatprep.subr.bf16.mxu0 %v2776
      %3878 = vmatpush1.bf16.msra.mxu0 %v2775
      %3879 = vmatprep.subr.bf16.mxu0 %v2786
      %3880 = vmatpush1.bf16.msra.mxu0 %v2785
      %3881 = vmatprep.subr.bf16.mxu0 %v2796
      %3882 = vmatpush1.bf16.msra.mxu0 %v2795
      %3883 = vmatprep.mubr.bf16.mxu0 %v870
      %3884 = vmatmul.mubr.bf16.gmra.mrb[0].mxu0 %v869
      %v3885 = vpop.f32.mrb[0].mxu0
      %v3886 = vadd.f32 %v3845, %v3885
      %v3887 = vpop.f32.mrb[0].mxu0
      %v3888 = vadd.f32 %v3847, %v3887
      %v3889 = vpop.f32.mrb[0].mxu0
      %v3890 = vpop.f32.mrb[0].mxu0
      %3891 = vdwg.mxu0
      %v3892 = vmax.f32 %v3394, 0.0
      %v3893 = vmax.f32 %v3396, 0.0
      %v3894 = vmax.f32 %v3517, 0.0
      %v3895 = vmax.f32 %v3519, 0.0
      %v3902 = vcombine.low %v3640, %v3642
      %v3903 = vcombine.low %v3763, %v3765
      %v3905 = vunpack.c.l.s4 1983009808
      %v3906 = vunpack.c.0.s8 %v3905
      %v3907 = vlaneseq
      %v3908 = vshrl.u32 %v3907, 7
      %v3909 = vsub.s32 %v3906, %v3908
      %v3910 = vrot.slane %v3902, %v3909
      %v3912 = vunpack.c.l.s4 1983009808
      %v3913 = vunpack.c.0.s8 %v3912
      %v3914 = vlaneseq
      %v3915 = vshrl.u32 %v3914, 7
      %v3916 = vsub.s32 %v3913, %v3915
      %v3917 = vrot.slane %v3903, %v3916
      %v3918 = vcombine.low %v3910, %v3917
      %v3919 = vcombine.low %v3886, %v3888
      %v3921 = vunpack.c.l.s4 1983009808
      %v3922 = vunpack.c.0.s8 %v3921
      %v3923 = vlaneseq
      %v3924 = vshrl.u32 %v3923, 7
      %v3925 = vsub.s32 %v3922, %v3924
      %v3926 = vrot.slane %v3919, %v3925
      %3929 = vst [vmem:[#allocation13] sm:$0xff] %v3918
      %3930 = vst [vmem:[#allocation13 + $0x8] sm:$0xf] %v3926
      %v3931 = vpack.c.bf16 %v3892, %v3892
      %v3932 = vpack.c.bf16 %v3893, %v3893
      %v3933 = vpack.c.bf16 %v3894, %v3894
      %v3934 = vpack.c.bf16 %v3895, %v3895
      %v3935 = vld [vmem:[#allocation9] sm:$0xf]
      %v3936 = vld [vmem:[#allocation9 + $0x4] sm:$0xf]
      %v3937 = vld [vmem:[#allocation9 + $0x8] sm:$0xf]
      %v3938 = vld [vmem:[#allocation9 + $0xc] sm:$0xf]
      %v3939 = vld [vmem:[#allocation9 + $0x10] sm:$0xf]
      %v3940 = vld [vmem:[#allocation9 + $0x14] sm:$0xf]
      %v3941 = vld [vmem:[#allocation9 + $0x18] sm:$0xf]
      %v3942 = vld [vmem:[#allocation9 + $0x1c] sm:$0xf]
      %v3943 = vld [vmem:[#allocation9 + $0x20] sm:$0xf]
      %v3944 = vld [vmem:[#allocation9 + $0x24] sm:$0xf]
      %v3945 = vld [vmem:[#allocation9 + $0x28] sm:$0xf]
      %v3946 = vld [vmem:[#allocation9 + $0x2c] sm:$0xf]
      %v3947 = vld [vmem:[#allocation9 + $0x30] sm:$0xf]
      %v3948 = vld [vmem:[#allocation9 + $0x34] sm:$0xf]
      %v3949 = vld [vmem:[#allocation9 + $0x38] sm:$0xf]
      %v3950 = vld [vmem:[#allocation9 + $0x3c] sm:$0xf]
      %v3951 = vld [vmem:[#allocation9 + $0x40] sm:$0xf]
      %v3952 = vld [vmem:[#allocation9 + $0x44] sm:$0xf]
      %v3953 = vld [vmem:[#allocation9 + $0x48] sm:$0xf]
      %v3954 = vld [vmem:[#allocation9 + $0x4c] sm:$0xf]
      %v3955 = vld [vmem:[#allocation9 + $0x50] sm:$0xf]
      %v3956 = vld [vmem:[#allocation9 + $0x54] sm:$0xf]
      %v3957 = vld [vmem:[#allocation9 + $0x58] sm:$0xf]
      %v3958 = vld [vmem:[#allocation9 + $0x5c] sm:$0xf]
      %v3959 = vld [vmem:[#allocation9 + $0x60] sm:$0xf]
      %v3960 = vld [vmem:[#allocation9 + $0x64] sm:$0xf]
      %v3961 = vld [vmem:[#allocation9 + $0x68] sm:$0xf]
      %v3962 = vld [vmem:[#allocation9 + $0x6c] sm:$0xf]
      %v3963 = vld [vmem:[#allocation9 + $0x70] sm:$0xf]
      %v3964 = vld [vmem:[#allocation9 + $0x74] sm:$0xf]
      %v3965 = vld [vmem:[#allocation9 + $0x78] sm:$0xf]
      %v3966 = vld [vmem:[#allocation9 + $0x7c] sm:$0xf]
      %v3967 = vld [vmem:[#allocation9 + $0x80] sm:$0xf]
      %v3968 = vld [vmem:[#allocation9 + $0x84] sm:$0xf]
      %v3969 = vld [vmem:[#allocation9 + $0x88] sm:$0xf]
      %v3970 = vld [vmem:[#allocation9 + $0x8c] sm:$0xf]
      %v3971 = vld [vmem:[#allocation9 + $0x90] sm:$0xf]
      %v3972 = vld [vmem:[#allocation9 + $0x94] sm:$0xf]
      %v3973 = vld [vmem:[#allocation9 + $0x98] sm:$0xf]
      %v3974 = vld [vmem:[#allocation9 + $0x9c] sm:$0xf]
      %v3975 = vld [vmem:[#allocation9 + $0xa0] sm:$0xf]
      %v3976 = vld [vmem:[#allocation9 + $0xa4] sm:$0xf]
      %v3977 = vld [vmem:[#allocation9 + $0xa8] sm:$0xf]
      %v3978 = vld [vmem:[#allocation9 + $0xac] sm:$0xf]
      %v3979 = vld [vmem:[#allocation9 + $0xb0] sm:$0xf]
      %v3980 = vld [vmem:[#allocation9 + $0xb4] sm:$0xf]
      %v3981 = vld [vmem:[#allocation9 + $0xb8] sm:$0xf]
      %v3982 = vld [vmem:[#allocation9 + $0xbc] sm:$0xf]
      %v3983 = vld [vmem:[#allocation9 + $0xc0] sm:$0xf]
      %v3984 = vld [vmem:[#allocation9 + $0xc4] sm:$0xf]
      %v3985 = vld [vmem:[#allocation9 + $0xc8] sm:$0xf]
      %v3986 = vld [vmem:[#allocation9 + $0xcc] sm:$0xf]
      %v3987 = vld [vmem:[#allocation9 + $0xd0] sm:$0xf]
      %v3988 = vld [vmem:[#allocation9 + $0xd4] sm:$0xf]
      %v3989 = vld [vmem:[#allocation9 + $0xd8] sm:$0xf]
      %v3990 = vld [vmem:[#allocation9 + $0xdc] sm:$0xf]
      %v3991 = vld [vmem:[#allocation9 + $0xe0] sm:$0xf]
      %v3992 = vld [vmem:[#allocation9 + $0xe4] sm:$0xf]
      %v3993 = vld [vmem:[#allocation9 + $0xe8] sm:$0xf]
      %v3994 = vld [vmem:[#allocation9 + $0xec] sm:$0xf]
      %v3995 = vld [vmem:[#allocation9 + $0xf0] sm:$0xf]
      %v3996 = vld [vmem:[#allocation9 + $0xf4] sm:$0xf]
      %v3997 = vld [vmem:[#allocation9 + $0xf8] sm:$0xf]
      %v3998 = vld [vmem:[#allocation9 + $0xfc] sm:$0xf]
      %v3999 = vld [vmem:[#allocation11] sm:$0x1]
      %v4001 = vlaneseq
      %v4002 = vshrl.u32 %v4001, 7
      %v4003 = vsub.s32 0, %v4002
      %v4004 = vrot.slane %v3999, %v4003
      %v4070 = vunpack.c.l.b16 %v3935
      %v4071 = vunpack.c.l.b16 %v3936
      %v4072 = vunpack.c.l.b16 %v3937
      %v4073 = vunpack.c.l.b16 %v3938
      %v4074 = vunpack.c.l.b16 %v3939
      %v4075 = vunpack.c.l.b16 %v3940
      %v4076 = vunpack.c.l.b16 %v3941
      %v4077 = vunpack.c.l.b16 %v3942
      %v4078 = vunpack.c.l.b16 %v3943
      %v4079 = vunpack.c.l.b16 %v3944
      %v4080 = vunpack.c.l.b16 %v3945
      %v4081 = vunpack.c.l.b16 %v3946
      %v4082 = vunpack.c.l.b16 %v3947
      %v4083 = vunpack.c.l.b16 %v3948
      %v4084 = vunpack.c.l.b16 %v3949
      %v4085 = vunpack.c.l.b16 %v3950
      %v4086 = vunpack.c.l.b16 %v3951
      %v4087 = vunpack.c.l.b16 %v3952
      %v4088 = vunpack.c.l.b16 %v3953
      %v4089 = vunpack.c.l.b16 %v3954
      %v4090 = vunpack.c.l.b16 %v3955
      %v4091 = vunpack.c.l.b16 %v3956
      %v4092 = vunpack.c.l.b16 %v3957
      %v4093 = vunpack.c.l.b16 %v3958
      %v4094 = vunpack.c.l.b16 %v3959
      %v4095 = vunpack.c.l.b16 %v3960
      %v4096 = vunpack.c.l.b16 %v3961
      %v4097 = vunpack.c.l.b16 %v3962
      %v4098 = vunpack.c.l.b16 %v3963
      %v4099 = vunpack.c.l.b16 %v3964
      %v4100 = vunpack.c.l.b16 %v3965
      %v4101 = vunpack.c.l.b16 %v3966
      %v4102 = vunpack.c.l.b16 %v3967
      %v4103 = vunpack.c.l.b16 %v3968
      %v4104 = vunpack.c.l.b16 %v3969
      %v4105 = vunpack.c.l.b16 %v3970
      %v4106 = vunpack.c.l.b16 %v3971
      %v4107 = vunpack.c.l.b16 %v3972
      %v4108 = vunpack.c.l.b16 %v3973
      %v4109 = vunpack.c.l.b16 %v3974
      %v4110 = vunpack.c.l.b16 %v3975
      %v4111 = vunpack.c.l.b16 %v3976
      %v4112 = vunpack.c.l.b16 %v3977
      %v4113 = vunpack.c.l.b16 %v3978
      %v4114 = vunpack.c.l.b16 %v3979
      %v4115 = vunpack.c.l.b16 %v3980
      %v4116 = vunpack.c.l.b16 %v3981
      %v4117 = vunpack.c.l.b16 %v3982
      %v4118 = vunpack.c.l.b16 %v3983
      %v4119 = vunpack.c.l.b16 %v3984
      %v4120 = vunpack.c.l.b16 %v3985
      %v4121 = vunpack.c.l.b16 %v3986
      %v4122 = vunpack.c.l.b16 %v3987
      %v4123 = vunpack.c.l.b16 %v3988
      %v4124 = vunpack.c.l.b16 %v3989
      %v4125 = vunpack.c.l.b16 %v3990
      %v4126 = vunpack.c.l.b16 %v3991
      %v4127 = vunpack.c.l.b16 %v3992
      %v4128 = vunpack.c.l.b16 %v3993
      %v4129 = vunpack.c.l.b16 %v3994
      %v4130 = vunpack.c.l.b16 %v3995
      %v4131 = vunpack.c.l.b16 %v3996
      %v4132 = vunpack.c.l.b16 %v3997
      %v4133 = vunpack.c.l.b16 %v3998
      %v4134 = vpack.c.b16 %v4071, %v4070
      %v4135 = vpack.c.b16 %v4073, %v4072
      %v4136 = vpack.c.b16 %v4075, %v4074
      %v4137 = vpack.c.b16 %v4077, %v4076
      %v4138 = vpack.c.b16 %v4079, %v4078
      %v4139 = vpack.c.b16 %v4081, %v4080
      %v4140 = vpack.c.b16 %v4083, %v4082
      %v4141 = vpack.c.b16 %v4085, %v4084
      %v4142 = vpack.c.b16 %v4087, %v4086
      %v4143 = vpack.c.b16 %v4089, %v4088
      %v4144 = vpack.c.b16 %v4091, %v4090
      %v4145 = vpack.c.b16 %v4093, %v4092
      %v4146 = vpack.c.b16 %v4095, %v4094
      %v4147 = vpack.c.b16 %v4097, %v4096
      %v4148 = vpack.c.b16 %v4099, %v4098
      %v4149 = vpack.c.b16 %v4101, %v4100
      %v4150 = vpack.c.b16 %v4103, %v4102
      %v4151 = vpack.c.b16 %v4105, %v4104
      %v4152 = vpack.c.b16 %v4107, %v4106
      %v4153 = vpack.c.b16 %v4109, %v4108
      %v4154 = vpack.c.b16 %v4111, %v4110
      %v4155 = vpack.c.b16 %v4113, %v4112
      %v4156 = vpack.c.b16 %v4115, %v4114
      %v4157 = vpack.c.b16 %v4117, %v4116
      %v4158 = vpack.c.b16 %v4119, %v4118
      %v4159 = vpack.c.b16 %v4121, %v4120
      %v4160 = vpack.c.b16 %v4123, %v4122
      %v4161 = vpack.c.b16 %v4125, %v4124
      %v4162 = vpack.c.b16 %v4127, %v4126
      %v4163 = vpack.c.b16 %v4129, %v4128
      %v4164 = vpack.c.b16 %v4131, %v4130
      %v4165 = vpack.c.b16 %v4133, %v4132
      %4198 = vmatprep.subr.bf16.mxu0 0
      %4199 = vmatpush1.bf16.msra.mxu0 %v4134
      %4200 = vmatprep.subr.bf16.mxu0 0
      %4201 = vmatpush1.bf16.msra.mxu0 %v4135
      %4202 = vmatprep.subr.bf16.mxu0 0
      %4203 = vmatpush1.bf16.msra.mxu0 %v4136
      %4204 = vmatprep.subr.bf16.mxu0 0
      %4205 = vmatpush1.bf16.msra.mxu0 %v4137
      %4206 = vmatprep.subr.bf16.mxu0 0
      %4207 = vmatpush1.bf16.msra.mxu0 %v4138
      %4208 = vmatprep.subr.bf16.mxu0 0
      %4209 = vmatpush1.bf16.msra.mxu0 %v4139
      %4210 = vmatprep.subr.bf16.mxu0 0
      %4211 = vmatpush1.bf16.msra.mxu0 %v4140
      %4212 = vmatprep.subr.bf16.mxu0 0
      %4213 = vmatpush1.bf16.msra.mxu0 %v4141
      %4214 = vmatprep.subr.bf16.mxu0 0
      %4215 = vmatpush1.bf16.msra.mxu0 %v4142
      %4216 = vmatprep.subr.bf16.mxu0 0
      %4217 = vmatpush1.bf16.msra.mxu0 %v4143
      %4218 = vmatprep.subr.bf16.mxu0 0
      %4219 = vmatpush1.bf16.msra.mxu0 %v4144
      %4220 = vmatprep.subr.bf16.mxu0 0
      %4221 = vmatpush1.bf16.msra.mxu0 %v4145
      %4222 = vmatprep.subr.bf16.mxu0 0
      %4223 = vmatpush1.bf16.msra.mxu0 %v4146
      %4224 = vmatprep.subr.bf16.mxu0 0
      %4225 = vmatpush1.bf16.msra.mxu0 %v4147
      %4226 = vmatprep.subr.bf16.mxu0 0
      %4227 = vmatpush1.bf16.msra.mxu0 %v4148
      %4228 = vmatprep.subr.bf16.mxu0 0
      %4229 = vmatpush1.bf16.msra.mxu0 %v4149
      %4230 = vmatprep.mubr.bf16.mxu0 %v3932
      %4231 = vmatmul.mubr.bf16.gmra.mrb[0].mxu0 %v3931
      %v4232 = vpop.f32.mrb[0].mxu0
      %v4233 = vadd.f32 %v4004, %v4232
      %v4234 = vpop.f32.mrb[0].mxu0
      %v4235 = vpop.f32.mrb[0].mxu0
      %v4236 = vpop.f32.mrb[0].mxu0
      %4237 = vdwg.mxu0
      %4238 = vmatprep.subr.bf16.mxu0 0
      %4239 = vmatpush1.bf16.msra.mxu0 %v4150
      %4240 = vmatprep.subr.bf16.mxu0 0
      %4241 = vmatpush1.bf16.msra.mxu0 %v4151
      %4242 = vmatprep.subr.bf16.mxu0 0
      %4243 = vmatpush1.bf16.msra.mxu0 %v4152
      %4244 = vmatprep.subr.bf16.mxu0 0
      %4245 = vmatpush1.bf16.msra.mxu0 %v4153
      %4246 = vmatprep.subr.bf16.mxu0 0
      %4247 = vmatpush1.bf16.msra.mxu0 %v4154
      %4248 = vmatprep.subr.bf16.mxu0 0
      %4249 = vmatpush1.bf16.msra.mxu0 %v4155
      %4250 = vmatprep.subr.bf16.mxu0 0
      %4251 = vmatpush1.bf16.msra.mxu0 %v4156
      %4252 = vmatprep.subr.bf16.mxu0 0
      %4253 = vmatpush1.bf16.msra.mxu0 %v4157
      %4254 = vmatprep.subr.bf16.mxu0 0
      %4255 = vmatpush1.bf16.msra.mxu0 %v4158
      %4256 = vmatprep.subr.bf16.mxu0 0
      %4257 = vmatpush1.bf16.msra.mxu0 %v4159
      %4258 = vmatprep.subr.bf16.mxu0 0
      %4259 = vmatpush1.bf16.msra.mxu0 %v4160
      %4260 = vmatprep.subr.bf16.mxu0 0
      %4261 = vmatpush1.bf16.msra.mxu0 %v4161
      %4262 = vmatprep.subr.bf16.mxu0 0
      %4263 = vmatpush1.bf16.msra.mxu0 %v4162
      %4264 = vmatprep.subr.bf16.mxu0 0
      %4265 = vmatpush1.bf16.msra.mxu0 %v4163
      %4266 = vmatprep.subr.bf16.mxu0 0
      %4267 = vmatpush1.bf16.msra.mxu0 %v4164
      %4268 = vmatprep.subr.bf16.mxu0 0
      %4269 = vmatpush1.bf16.msra.mxu0 %v4165
      %4270 = vmatprep.mubr.bf16.mxu0 %v3934
      %4271 = vmatmul.mubr.bf16.gmra.mrb[0].mxu0 %v3933
      %v4272 = vpop.f32.mrb[0].mxu0
      %v4273 = vadd.f32 %v4233, %v4272
      %v4274 = vpop.f32.mrb[0].mxu0
      %v4275 = vpop.f32.mrb[0].mxu0
      %v4276 = vpop.f32.mrb[0].mxu0
      %4277 = vdwg.mxu0
      %4278 = vst [vmem:[#allocation12] sm:$0x3] %v4273
    $region49: #{tpu_custom_call.1} parent=1 // pred_fallthru
      _
    // Predicated region
    $region50: #{tpu_custom_call.1} parent=1 // pred_check
      _
    $region51: #{tpu_custom_call.1} parent=1 // pred_check_branch
      %4280 = sbr.rel (0) target = $region53
    $region52: #{tpu_custom_call.1} parent=1 // pred_region
      %s4282 = ssub.s32 32, 32
      %4283 = vsyncadd [#allocation5], %s4282
      %s4285 = sshll.u32 [#allocation12], 4
      %s4286 = int_to_ptr.vmem [resolvable:$true] %s4285
      %4288 = dma.vmem_to_hbm [thread:$0]  %s4286, 32, %s5, [#allocation5]
    $region53: #{tpu_custom_call.1} parent=1 // pred_fallthru
      _
    // Predicated region
    $region54: #{tpu_custom_call.1} parent=1 // pred_check
      _
    $region55: #{tpu_custom_call.1} parent=1 // pred_check_branch
      %4290 = sbr.rel (0) target = $region57
    $region56: #{tpu_custom_call.1} parent=1 // pred_region
      %s4292 = ssub.s32 192, 192
      %4293 = vsyncadd [#allocation14], %s4292
      %s4295 = sshll.u32 [#allocation13], 4
      %s4296 = int_to_ptr.vmem [resolvable:$true] %s4295
      %4298 = dma.vmem_to_hbm [thread:$0]  %s4296, 192, %s6, [#allocation14]
    $region57: #{tpu_custom_call.1} parent=1 // pred_fallthru
      _
    // Predicated region
    $region58: #{tpu_custom_call.1} parent=1 // pred_check
      _
    $region59: #{tpu_custom_call.1} parent=1 // pred_check_branch
      %4300 = sbr.rel (0) target = $region61
    $region60: #{tpu_custom_call.1} parent=1 // pred_region
      %4301 = dma.done [#allocation5], 32
    $region61: #{tpu_custom_call.1} parent=1 // pred_fallthru
      _
    // Predicated region
    $region62: #{tpu_custom_call.1} parent=1 // pred_check
      _
    $region63: #{tpu_custom_call.1} parent=1 // pred_check_branch
      %4303 = sbr.rel (0) target = $region65
    $region64: #{tpu_custom_call.1} parent=1 // pred_region
      %4304 = dma.done [#allocation14], 192
    $region65: #{tpu_custom_call.1} parent=1 // pred_fallthru
      _
    %4305 = vsyncpa [#allocation4], 1
    %4306 = vsyncpa [#allocation7], 1
    %4307 = vsyncpa [#allocation10], 1
    %4308 = vsyncpa [#allocation5], 1
    %4309 = vsyncpa [#allocation14], 1

</llo_original>
